<compile_context>
chip_gen: v7x
topology: tpu7x:2x2x1
jax: 0.10.0
libtpu: 0.0.40
codegen_flags: <defaults>
</compile_context>

<pallas_src>
import functools

import jax
import jax.numpy as jnp
from jax.experimental import pallas as pl
from jax.experimental.pallas import tpu as pltpu


def attention_pair_kernel(x_ref, w1_ref, b1_ref, w2_ref, b2_ref, out_ref,
                          *, R, C, O):
    """One grid step processes Bp site-PAIRS (2*Bp sites).

    x_ref : (Bp, 2*R*C)  packed reads (two sites per row), lane-dense
    w1_ref: (R*C, R*H)   block-diagonal kron(I_R, W1)
    b1_ref: (1, R*H)     tiled b1
    w2_ref: (R*H, O*R)   block-diagonal W2, columns grouped by head o
    b2_ref: (1, O*R)     grouped b2
    out_ref:(Bp, 2*O*C)  two flattened (O, C) site outputs per row
    """
    xp = x_ref[...]                      # (Bp, 2*R*C) f32
    w1 = w1_ref[...]
    b1 = b1_ref[...]
    w2 = w2_ref[...]
    b2 = b2_ref[...]
    half = R * C

    chunks = []
    for m in range(2):                   # the two sites packed in each row
        xm = xp[:, m * half:(m + 1) * half]          # (Bp, R*C), lane-dense

        # Attention MLP in packed layout (block-diagonal weights):
        #   h[:, r*H + h'] = relu(x_read_r @ W1 + b1)[h']
        h = jnp.dot(xm, w1, preferred_element_type=jnp.float32) + b1
        h = jnp.maximum(h, 0.0)                       # (Bp, R*H)
        #   wg[:, o*R + r] = logit of read r for attention head o
        wg = jnp.dot(h, w2, preferred_element_type=jnp.float32) + b2  # (Bp, O*R)

        # Softmax over reads + attention-weighted pooling, per head o.
        for o in range(O):
            lo = wg[:, o * R:(o + 1) * R]             # (Bp, R)
            lo = lo - jnp.max(lo, axis=-1, keepdims=True)
            e = jnp.exp(lo)
            p = e / jnp.sum(e, axis=-1, keepdims=True)  # (Bp, R) softmax over reads

            # pooled_o = sum_r p[:, r] * x_read_r  (VPU multiply-accumulate)
            acc = p[:, 0:1] * xm[:, 0:C]
            for r in range(1, R):
                acc = acc + p[:, r:r + 1] * xm[:, r * C:(r + 1) * C]
            chunks.append(acc)                        # (Bp, C)

    # Row layout: [site 2j: o0..o{O-1} each C lanes | site 2j+1: o0..o{O-1}]
    out_ref[...] = jnp.concatenate(chunks, axis=-1).astype(out_ref.dtype)


def _round_up(v, m):
    return ((v + m - 1) // m) * m


def attention_forward(x, params, n_reads_per_site, sites_per_block=4096):
    """x: (N*R, C) float32. Returns (N, O*C), matching Attention.forward."""
    w1, b1, w2, b2 = params
    NR, C = x.shape
    R = n_reads_per_site
    N = NR // R
    H = w1.shape[1]
    O = w2.shape[1]

    # --- block-diagonal / head-grouped weights (tiny, built once) -----------
    eye_r = jnp.eye(R, dtype=w1.dtype)
    w1b = jnp.kron(eye_r, w1)                                   # (R*C, R*H)
    b1b = jnp.tile(b1, (1, R))                                  # (1, R*H)
    # w2g[r*H + h, o*R + r'] = W2[h, o] * delta(r, r')
    w2g = jnp.einsum('ho,rp->rhop', w2, eye_r).reshape(R * H, O * R)
    b2g = jnp.repeat(b2, R, axis=1)                             # (1, O*R)

    # --- choose pairs-per-block ---------------------------------------------
    pairs_needed = _round_up(N, 2) // 2
    # Double-buffered in/out bytes per pair-row (f32) + weight slabs.
    per_pair_bytes = 2 * 4 * (2 * R * C + 2 * O * C)
    weight_bytes = 2 * 4 * (R * C * R * H + R * H + R * H * O * R + O * R)
    vmem_budget = 12 * 1024 * 1024      # safe under v5e 16 MiB / v7x 32 MiB scoped
    bp_cap = max(8, (vmem_budget - weight_bytes) // per_pair_bytes)

    bp = max(8, min(max(8, sites_per_block // 2), bp_cap))
    bp = (bp // 8) * 8
    if bp >= pairs_needed:
        # A single block would cover all sites.  If there is enough work, split
        # into two blocks so both v7x TensorCores get a share of the "parallel"
        # grid axis; for tiny inputs keep one block (per-step overhead wins).
        target = pairs_needed if pairs_needed < 16 else _round_up(pairs_needed, 2) // 2
        bp = _round_up(max(target, 1), 8)
    n_blocks = pl.cdiv(pairs_needed, bp)

    p_pad = n_blocks * bp
    n_pad = 2 * p_pad
    if n_pad > N:
        pad_rows = (n_pad - N) * R
        x = jnp.concatenate([x, jnp.zeros((pad_rows, C), x.dtype)], axis=0)

    # Free, contiguous reshape: two sites (2*R reads) per lane-dense row.
    x_pairs = x.reshape(p_pad, 2 * R * C)

    kernel = functools.partial(attention_pair_kernel, R=R, C=C, O=O)

    out = pl.pallas_call(
        kernel,
        out_shape=jax.ShapeDtypeStruct((p_pad, 2 * O * C), x.dtype),
        grid_spec=pltpu.PrefetchScalarGridSpec(
            num_scalar_prefetch=0,
            grid=(n_blocks,),
            in_specs=[
                pl.BlockSpec((bp, 2 * R * C), lambda i: (i, 0)),   # packed reads
                pl.BlockSpec((R * C, R * H), lambda i: (0, 0)),    # kron(I_R, W1)
                pl.BlockSpec((1, R * H), lambda i: (0, 0)),        # tiled b1
                pl.BlockSpec((R * H, O * R), lambda i: (0, 0)),    # grouped W2
                pl.BlockSpec((1, O * R), lambda i: (0, 0)),        # grouped b2
            ],
            out_specs=pl.BlockSpec((bp, 2 * O * C), lambda i: (i, 0)),
        ),
        compiler_params=pltpu.CompilerParams(
            dimension_semantics=("parallel",)),
    )(x_pairs, w1b, b1b, w2g, b2g)

    # Free contiguous reshape back to one site per row, then drop padding.
    return out.reshape(n_pad, O * C)[:N]


def reference_forward(x, params, n_reads_per_site):
    """Pure-JAX reference mirroring the PyTorch module."""
    w1, b1, w2, b2 = params
    NR, C = x.shape
    R = n_reads_per_site
    N = NR // R
    O = w2.shape[1]

    h = jnp.maximum(x @ w1 + b1, 0.0)
    w = h @ w2 + b2                                   # (N*R, O)
    w = w.reshape(N, R, O).transpose(0, 2, 1)         # (N, O, R)
    w = jax.nn.softmax(w, axis=2)
    m = jnp.einsum("nor,nrc->noc", w, x.reshape(N, R, C))
    return m.reshape(N, O * C)


if __name__ == "__main__":
    # Module configuration (small, consistent with the PyTorch module):
    #   input_channel C=16, hidden_layers=[32, 4], n_reads_per_site R=8.
    # N=128 sites -> 2 grid blocks of 32 site-pairs (64 sites) each.
    C = 16
    H = 32
    O = 4
    R = 8
    N = 128

    key = jax.random.PRNGKey(0)
    kx, k1, k2, k3, k4 = jax.random.split(key, 5)

    x = jax.random.normal(kx, (N * R, C), dtype=jnp.float32)

    # Deterministic parameter init (PyTorch Linear default: U(-1/sqrt(fan_in), ...))
    lim1 = 1.0 / jnp.sqrt(jnp.float32(C))
    lim2 = 1.0 / jnp.sqrt(jnp.float32(H))
    w1 = jax.random.uniform(k1, (C, H), jnp.float32, -lim1, lim1)
    b1 = jax.random.uniform(k2, (1, H), jnp.float32, -lim1, lim1)
    w2 = jax.random.uniform(k3, (H, O), jnp.float32, -lim2, lim2)
    b2 = jax.random.uniform(k4, (1, O), jnp.float32, -lim2, lim2)
    params = (w1, b1, w2, b2)

    out = attention_forward(x, params, n_reads_per_site=R)
    out = jax.block_until_ready(out)

    ref = reference_forward(x, params, n_reads_per_site=R)
    assert out.shape == (N, O * C), out.shape
    assert jnp.allclose(out, ref, atol=1e-5, rtol=1e-5), "mismatch vs JAX reference"

    print("KERNEL_OK")
</pallas_src>

<mosaic_0001>
module attributes {stable_mosaic.version = 11 : i64} {
  func.func @attention_pair_kernel(%arg0: i32, %arg1: memref<32x256xf32, #tpu.memory_space<vmem>>, %arg2: memref<128x256xf32, #tpu.memory_space<vmem>>, %arg3: memref<1x256xf32, #tpu.memory_space<vmem>>, %arg4: memref<256x32xf32, #tpu.memory_space<vmem>>, %arg5: memref<1x32xf32, #tpu.memory_space<vmem>>, %arg6: memref<32x128xf32, #tpu.memory_space<vmem>>) attributes {dimension_semantics = [#tpu.dimension_semantics<parallel>], iteration_bounds = array<i64: 2>, scalar_prefetch = 0 : i64, scratch_operands = 0 : i64, tpu.core_type = #tpu.core_type<tc>, window_params = [{transform_indices = @transform_0, window_bounds = array<i64: 32, 256>}, {pipeline_mode = #tpu.pipeline_mode<synchronous>, transform_indices = @transform_1, window_bounds = array<i64: 128, 256>}, {pipeline_mode = #tpu.pipeline_mode<synchronous>, transform_indices = @transform_2, window_bounds = array<i64: 1, 256>}, {pipeline_mode = #tpu.pipeline_mode<synchronous>, transform_indices = @transform_3, window_bounds = array<i64: 256, 32>}, {pipeline_mode = #tpu.pipeline_mode<synchronous>, transform_indices = @transform_4, window_bounds = array<i64: 1, 32>}, {transform_indices = @transform_5, window_bounds = array<i64: 32, 128>}]} {
    %c0 = arith.constant 0 : index
    %c0_0 = arith.constant 0 : index
    %0 = vector.load %arg1[%c0, %c0_0] : memref<32x256xf32, #tpu.memory_space<vmem>>, vector<32x256xf32>
    %c0_1 = arith.constant 0 : index
    %c0_2 = arith.constant 0 : index
    %1 = vector.load %arg2[%c0_1, %c0_2] : memref<128x256xf32, #tpu.memory_space<vmem>>, vector<128x256xf32>
    %c0_3 = arith.constant 0 : index
    %c0_4 = arith.constant 0 : index
    %2 = vector.load %arg3[%c0_3, %c0_4] : memref<1x256xf32, #tpu.memory_space<vmem>>, vector<1x256xf32>
    %c0_5 = arith.constant 0 : index
    %c0_6 = arith.constant 0 : index
    %3 = vector.load %arg4[%c0_5, %c0_6] : memref<256x32xf32, #tpu.memory_space<vmem>>, vector<256x32xf32>
    %c0_7 = arith.constant 0 : index
    %c0_8 = arith.constant 0 : index
    %4 = vector.load %arg5[%c0_7, %c0_8] : memref<1x32xf32, #tpu.memory_space<vmem>>, vector<1x32xf32>
    %5 = vector.extract_strided_slice %0 {offsets = [0, 0], sizes = [32, 128], strides = [1, 1]} : vector<32x256xf32> to vector<32x128xf32>
    %cst = arith.constant dense<0.000000e+00> : vector<32x256xf32>
    %6 = tpu.matmul %5, %1, %cst {dimension_numbers = #tpu.dot_dimension_numbers<[1], [0], [0], [1], [0, 0, 1, 1], [], []>} : vector<32x128xf32>, vector<128x256xf32>, vector<32x256xf32> -> vector<32x256xf32>
    %7 = vector.broadcast %2 : vector<1x256xf32> to vector<32x256xf32>
    %8 = arith.addf %6, %7 : vector<32x256xf32>
    %cst_9 = arith.constant 0.000000e+00 : f32
    %9 = vector.broadcast %cst_9 : f32 to vector<32x256xf32>
    %10 = arith.maximumf %8, %9 : vector<32x256xf32>
    %cst_10 = arith.constant dense<0.000000e+00> : vector<32x32xf32>
    %11 = tpu.matmul %10, %3, %cst_10 {dimension_numbers = #tpu.dot_dimension_numbers<[1], [0], [0], [1], [0, 0, 1, 1], [], []>} : vector<32x256xf32>, vector<256x32xf32>, vector<32x32xf32> -> vector<32x32xf32>
    %12 = vector.broadcast %4 : vector<1x32xf32> to vector<32x32xf32>
    %13 = arith.addf %11, %12 : vector<32x32xf32>
    %14 = vector.extract_strided_slice %13 {offsets = [0, 0], sizes = [32, 8], strides = [1, 1]} : vector<32x32xf32> to vector<32x8xf32>
    %cst_11 = arith.constant dense<0xFF800000> : vector<32xf32>
    %15 = vector.multi_reduction <maximumf>, %14, %cst_11 [1] : vector<32x8xf32> to vector<32xf32>
    %16 = vector.shape_cast %15 : vector<32xf32> to vector<32x1xf32>
    %17 = vector.broadcast %16 : vector<32x1xf32> to vector<32x8xf32>
    %18 = arith.subf %14, %17 : vector<32x8xf32>
    %19 = math.exp %18 : vector<32x8xf32>
    %cst_12 = arith.constant dense<0.000000e+00> : vector<32xf32>
    %20 = vector.multi_reduction <add>, %19, %cst_12 [1] : vector<32x8xf32> to vector<32xf32>
    %21 = vector.shape_cast %20 : vector<32xf32> to vector<32x1xf32>
    %22 = vector.broadcast %21 : vector<32x1xf32> to vector<32x8xf32>
    %23 = arith.divf %19, %22 : vector<32x8xf32>
    %24 = vector.extract_strided_slice %23 {offsets = [0, 0], sizes = [32, 1], strides = [1, 1]} : vector<32x8xf32> to vector<32x1xf32>
    %25 = vector.extract_strided_slice %5 {offsets = [0, 0], sizes = [32, 16], strides = [1, 1]} : vector<32x128xf32> to vector<32x16xf32>
    %26 = vector.broadcast %24 : vector<32x1xf32> to vector<32x16xf32>
    %27 = arith.mulf %26, %25 : vector<32x16xf32>
    %28 = vector.extract_strided_slice %23 {offsets = [0, 1], sizes = [32, 1], strides = [1, 1]} : vector<32x8xf32> to vector<32x1xf32>
    %29 = vector.extract_strided_slice %5 {offsets = [0, 16], sizes = [32, 16], strides = [1, 1]} : vector<32x128xf32> to vector<32x16xf32>
    %30 = vector.broadcast %28 : vector<32x1xf32> to vector<32x16xf32>
    %31 = arith.mulf %30, %29 : vector<32x16xf32>
    %32 = arith.addf %27, %31 : vector<32x16xf32>
    %33 = vector.extract_strided_slice %23 {offsets = [0, 2], sizes = [32, 1], strides = [1, 1]} : vector<32x8xf32> to vector<32x1xf32>
    %34 = vector.extract_strided_slice %5 {offsets = [0, 32], sizes = [32, 16], strides = [1, 1]} : vector<32x128xf32> to vector<32x16xf32>
    %35 = vector.broadcast %33 : vector<32x1xf32> to vector<32x16xf32>
    %36 = arith.mulf %35, %34 : vector<32x16xf32>
    %37 = arith.addf %32, %36 : vector<32x16xf32>
    %38 = vector.extract_strided_slice %23 {offsets = [0, 3], sizes = [32, 1], strides = [1, 1]} : vector<32x8xf32> to vector<32x1xf32>
    %39 = vector.extract_strided_slice %5 {offsets = [0, 48], sizes = [32, 16], strides = [1, 1]} : vector<32x128xf32> to vector<32x16xf32>
    %40 = vector.broadcast %38 : vector<32x1xf32> to vector<32x16xf32>
    %41 = arith.mulf %40, %39 : vector<32x16xf32>
    %42 = arith.addf %37, %41 : vector<32x16xf32>
    %43 = vector.extract_strided_slice %23 {offsets = [0, 4], sizes = [32, 1], strides = [1, 1]} : vector<32x8xf32> to vector<32x1xf32>
    %44 = vector.extract_strided_slice %5 {offsets = [0, 64], sizes = [32, 16], strides = [1, 1]} : vector<32x128xf32> to vector<32x16xf32>
    %45 = vector.broadcast %43 : vector<32x1xf32> to vector<32x16xf32>
    %46 = arith.mulf %45, %44 : vector<32x16xf32>
    %47 = arith.addf %42, %46 : vector<32x16xf32>
    %48 = vector.extract_strided_slice %23 {offsets = [0, 5], sizes = [32, 1], strides = [1, 1]} : vector<32x8xf32> to vector<32x1xf32>
    %49 = vector.extract_strided_slice %5 {offsets = [0, 80], sizes = [32, 16], strides = [1, 1]} : vector<32x128xf32> to vector<32x16xf32>
    %50 = vector.broadcast %48 : vector<32x1xf32> to vector<32x16xf32>
    %51 = arith.mulf %50, %49 : vector<32x16xf32>
    %52 = arith.addf %47, %51 : vector<32x16xf32>
    %53 = vector.extract_strided_slice %23 {offsets = [0, 6], sizes = [32, 1], strides = [1, 1]} : vector<32x8xf32> to vector<32x1xf32>
    %54 = vector.extract_strided_slice %5 {offsets = [0, 96], sizes = [32, 16], strides = [1, 1]} : vector<32x128xf32> to vector<32x16xf32>
    %55 = vector.broadcast %53 : vector<32x1xf32> to vector<32x16xf32>
    %56 = arith.mulf %55, %54 : vector<32x16xf32>
    %57 = arith.addf %52, %56 : vector<32x16xf32>
    %58 = vector.extract_strided_slice %23 {offsets = [0, 7], sizes = [32, 1], strides = [1, 1]} : vector<32x8xf32> to vector<32x1xf32>
    %59 = vector.extract_strided_slice %5 {offsets = [0, 112], sizes = [32, 16], strides = [1, 1]} : vector<32x128xf32> to vector<32x16xf32>
    %60 = vector.broadcast %58 : vector<32x1xf32> to vector<32x16xf32>
    %61 = arith.mulf %60, %59 : vector<32x16xf32>
    %62 = arith.addf %57, %61 : vector<32x16xf32>
    %63 = vector.extract_strided_slice %13 {offsets = [0, 8], sizes = [32, 8], strides = [1, 1]} : vector<32x32xf32> to vector<32x8xf32>
    %cst_13 = arith.constant dense<0xFF800000> : vector<32xf32>
    %64 = vector.multi_reduction <maximumf>, %63, %cst_13 [1] : vector<32x8xf32> to vector<32xf32>
    %65 = vector.shape_cast %64 : vector<32xf32> to vector<32x1xf32>
    %66 = vector.broadcast %65 : vector<32x1xf32> to vector<32x8xf32>
    %67 = arith.subf %63, %66 : vector<32x8xf32>
    %68 = math.exp %67 : vector<32x8xf32>
    %cst_14 = arith.constant dense<0.000000e+00> : vector<32xf32>
    %69 = vector.multi_reduction <add>, %68, %cst_14 [1] : vector<32x8xf32> to vector<32xf32>
    %70 = vector.shape_cast %69 : vector<32xf32> to vector<32x1xf32>
    %71 = vector.broadcast %70 : vector<32x1xf32> to vector<32x8xf32>
    %72 = arith.divf %68, %71 : vector<32x8xf32>
    %73 = vector.extract_strided_slice %72 {offsets = [0, 0], sizes = [32, 1], strides = [1, 1]} : vector<32x8xf32> to vector<32x1xf32>
    %74 = vector.extract_strided_slice %5 {offsets = [0, 0], sizes = [32, 16], strides = [1, 1]} : vector<32x128xf32> to vector<32x16xf32>
    %75 = vector.broadcast %73 : vector<32x1xf32> to vector<32x16xf32>
    %76 = arith.mulf %75, %74 : vector<32x16xf32>
    %77 = vector.extract_strided_slice %72 {offsets = [0, 1], sizes = [32, 1], strides = [1, 1]} : vector<32x8xf32> to vector<32x1xf32>
    %78 = vector.extract_strided_slice %5 {offsets = [0, 16], sizes = [32, 16], strides = [1, 1]} : vector<32x128xf32> to vector<32x16xf32>
    %79 = vector.broadcast %77 : vector<32x1xf32> to vector<32x16xf32>
    %80 = arith.mulf %79, %78 : vector<32x16xf32>
    %81 = arith.addf %76, %80 : vector<32x16xf32>
    %82 = vector.extract_strided_slice %72 {offsets = [0, 2], sizes = [32, 1], strides = [1, 1]} : vector<32x8xf32> to vector<32x1xf32>
    %83 = vector.extract_strided_slice %5 {offsets = [0, 32], sizes = [32, 16], strides = [1, 1]} : vector<32x128xf32> to vector<32x16xf32>
    %84 = vector.broadcast %82 : vector<32x1xf32> to vector<32x16xf32>
    %85 = arith.mulf %84, %83 : vector<32x16xf32>
    %86 = arith.addf %81, %85 : vector<32x16xf32>
    %87 = vector.extract_strided_slice %72 {offsets = [0, 3], sizes = [32, 1], strides = [1, 1]} : vector<32x8xf32> to vector<32x1xf32>
    %88 = vector.extract_strided_slice %5 {offsets = [0, 48], sizes = [32, 16], strides = [1, 1]} : vector<32x128xf32> to vector<32x16xf32>
    %89 = vector.broadcast %87 : vector<32x1xf32> to vector<32x16xf32>
    %90 = arith.mulf %89, %88 : vector<32x16xf32>
    %91 = arith.addf %86, %90 : vector<32x16xf32>
    %92 = vector.extract_strided_slice %72 {offsets = [0, 4], sizes = [32, 1], strides = [1, 1]} : vector<32x8xf32> to vector<32x1xf32>
    %93 = vector.extract_strided_slice %5 {offsets = [0, 64], sizes = [32, 16], strides = [1, 1]} : vector<32x128xf32> to vector<32x16xf32>
    %94 = vector.broadcast %92 : vector<32x1xf32> to vector<32x16xf32>
    %95 = arith.mulf %94, %93 : vector<32x16xf32>
    %96 = arith.addf %91, %95 : vector<32x16xf32>
    %97 = vector.extract_strided_slice %72 {offsets = [0, 5], sizes = [32, 1], strides = [1, 1]} : vector<32x8xf32> to vector<32x1xf32>
    %98 = vector.extract_strided_slice %5 {offsets = [0, 80], sizes = [32, 16], strides = [1, 1]} : vector<32x128xf32> to vector<32x16xf32>
    %99 = vector.broadcast %97 : vector<32x1xf32> to vector<32x16xf32>
    %100 = arith.mulf %99, %98 : vector<32x16xf32>
    %101 = arith.addf %96, %100 : vector<32x16xf32>
    %102 = vector.extract_strided_slice %72 {offsets = [0, 6], sizes = [32, 1], strides = [1, 1]} : vector<32x8xf32> to vector<32x1xf32>
    %103 = vector.extract_strided_slice %5 {offsets = [0, 96], sizes = [32, 16], strides = [1, 1]} : vector<32x128xf32> to vector<32x16xf32>
    %104 = vector.broadcast %102 : vector<32x1xf32> to vector<32x16xf32>
    %105 = arith.mulf %104, %103 : vector<32x16xf32>
    %106 = arith.addf %101, %105 : vector<32x16xf32>
    %107 = vector.extract_strided_slice %72 {offsets = [0, 7], sizes = [32, 1], strides = [1, 1]} : vector<32x8xf32> to vector<32x1xf32>
    %108 = vector.extract_strided_slice %5 {offsets = [0, 112], sizes = [32, 16], strides = [1, 1]} : vector<32x128xf32> to vector<32x16xf32>
    %109 = vector.broadcast %107 : vector<32x1xf32> to vector<32x16xf32>
    %110 = arith.mulf %109, %108 : vector<32x16xf32>
    %111 = arith.addf %106, %110 : vector<32x16xf32>
    %112 = vector.extract_strided_slice %13 {offsets = [0, 16], sizes = [32, 8], strides = [1, 1]} : vector<32x32xf32> to vector<32x8xf32>
    %cst_15 = arith.constant dense<0xFF800000> : vector<32xf32>
    %113 = vector.multi_reduction <maximumf>, %112, %cst_15 [1] : vector<32x8xf32> to vector<32xf32>
    %114 = vector.shape_cast %113 : vector<32xf32> to vector<32x1xf32>
    %115 = vector.broadcast %114 : vector<32x1xf32> to vector<32x8xf32>
    %116 = arith.subf %112, %115 : vector<32x8xf32>
    %117 = math.exp %116 : vector<32x8xf32>
    %cst_16 = arith.constant dense<0.000000e+00> : vector<32xf32>
    %118 = vector.multi_reduction <add>, %117, %cst_16 [1] : vector<32x8xf32> to vector<32xf32>
    %119 = vector.shape_cast %118 : vector<32xf32> to vector<32x1xf32>
    %120 = vector.broadcast %119 : vector<32x1xf32> to vector<32x8xf32>
    %121 = arith.divf %117, %120 : vector<32x8xf32>
    %122 = vector.extract_strided_slice %121 {offsets = [0, 0], sizes = [32, 1], strides = [1, 1]} : vector<32x8xf32> to vector<32x1xf32>
    %123 = vector.extract_strided_slice %5 {offsets = [0, 0], sizes = [32, 16], strides = [1, 1]} : vector<32x128xf32> to vector<32x16xf32>
    %124 = vector.broadcast %122 : vector<32x1xf32> to vector<32x16xf32>
    %125 = arith.mulf %124, %123 : vector<32x16xf32>
    %126 = vector.extract_strided_slice %121 {offsets = [0, 1], sizes = [32, 1], strides = [1, 1]} : vector<32x8xf32> to vector<32x1xf32>
    %127 = vector.extract_strided_slice %5 {offsets = [0, 16], sizes = [32, 16], strides = [1, 1]} : vector<32x128xf32> to vector<32x16xf32>
    %128 = vector.broadcast %126 : vector<32x1xf32> to vector<32x16xf32>
    %129 = arith.mulf %128, %127 : vector<32x16xf32>
    %130 = arith.addf %125, %129 : vector<32x16xf32>
    %131 = vector.extract_strided_slice %121 {offsets = [0, 2], sizes = [32, 1], strides = [1, 1]} : vector<32x8xf32> to vector<32x1xf32>
    %132 = vector.extract_strided_slice %5 {offsets = [0, 32], sizes = [32, 16], strides = [1, 1]} : vector<32x128xf32> to vector<32x16xf32>
    %133 = vector.broadcast %131 : vector<32x1xf32> to vector<32x16xf32>
    %134 = arith.mulf %133, %132 : vector<32x16xf32>
    %135 = arith.addf %130, %134 : vector<32x16xf32>
    %136 = vector.extract_strided_slice %121 {offsets = [0, 3], sizes = [32, 1], strides = [1, 1]} : vector<32x8xf32> to vector<32x1xf32>
    %137 = vector.extract_strided_slice %5 {offsets = [0, 48], sizes = [32, 16], strides = [1, 1]} : vector<32x128xf32> to vector<32x16xf32>
    %138 = vector.broadcast %136 : vector<32x1xf32> to vector<32x16xf32>
    %139 = arith.mulf %138, %137 : vector<32x16xf32>
    %140 = arith.addf %135, %139 : vector<32x16xf32>
    %141 = vector.extract_strided_slice %121 {offsets = [0, 4], sizes = [32, 1], strides = [1, 1]} : vector<32x8xf32> to vector<32x1xf32>
    %142 = vector.extract_strided_slice %5 {offsets = [0, 64], sizes = [32, 16], strides = [1, 1]} : vector<32x128xf32> to vector<32x16xf32>
    %143 = vector.broadcast %141 : vector<32x1xf32> to vector<32x16xf32>
    %144 = arith.mulf %143, %142 : vector<32x16xf32>
    %145 = arith.addf %140, %144 : vector<32x16xf32>
    %146 = vector.extract_strided_slice %121 {offsets = [0, 5], sizes = [32, 1], strides = [1, 1]} : vector<32x8xf32> to vector<32x1xf32>
    %147 = vector.extract_strided_slice %5 {offsets = [0, 80], sizes = [32, 16], strides = [1, 1]} : vector<32x128xf32> to vector<32x16xf32>
    %148 = vector.broadcast %146 : vector<32x1xf32> to vector<32x16xf32>
    %149 = arith.mulf %148, %147 : vector<32x16xf32>
    %150 = arith.addf %145, %149 : vector<32x16xf32>
    %151 = vector.extract_strided_slice %121 {offsets = [0, 6], sizes = [32, 1], strides = [1, 1]} : vector<32x8xf32> to vector<32x1xf32>
    %152 = vector.extract_strided_slice %5 {offsets = [0, 96], sizes = [32, 16], strides = [1, 1]} : vector<32x128xf32> to vector<32x16xf32>
    %153 = vector.broadcast %151 : vector<32x1xf32> to vector<32x16xf32>
    %154 = arith.mulf %153, %152 : vector<32x16xf32>
    %155 = arith.addf %150, %154 : vector<32x16xf32>
    %156 = vector.extract_strided_slice %121 {offsets = [0, 7], sizes = [32, 1], strides = [1, 1]} : vector<32x8xf32> to vector<32x1xf32>
    %157 = vector.extract_strided_slice %5 {offsets = [0, 112], sizes = [32, 16], strides = [1, 1]} : vector<32x128xf32> to vector<32x16xf32>
    %158 = vector.broadcast %156 : vector<32x1xf32> to vector<32x16xf32>
    %159 = arith.mulf %158, %157 : vector<32x16xf32>
    %160 = arith.addf %155, %159 : vector<32x16xf32>
    %161 = vector.extract_strided_slice %13 {offsets = [0, 24], sizes = [32, 8], strides = [1, 1]} : vector<32x32xf32> to vector<32x8xf32>
    %cst_17 = arith.constant dense<0xFF800000> : vector<32xf32>
    %162 = vector.multi_reduction <maximumf>, %161, %cst_17 [1] : vector<32x8xf32> to vector<32xf32>
    %163 = vector.shape_cast %162 : vector<32xf32> to vector<32x1xf32>
    %164 = vector.broadcast %163 : vector<32x1xf32> to vector<32x8xf32>
    %165 = arith.subf %161, %164 : vector<32x8xf32>
    %166 = math.exp %165 : vector<32x8xf32>
    %cst_18 = arith.constant dense<0.000000e+00> : vector<32xf32>
    %167 = vector.multi_reduction <add>, %166, %cst_18 [1] : vector<32x8xf32> to vector<32xf32>
    %168 = vector.shape_cast %167 : vector<32xf32> to vector<32x1xf32>
    %169 = vector.broadcast %168 : vector<32x1xf32> to vector<32x8xf32>
    %170 = arith.divf %166, %169 : vector<32x8xf32>
    %171 = vector.extract_strided_slice %170 {offsets = [0, 0], sizes = [32, 1], strides = [1, 1]} : vector<32x8xf32> to vector<32x1xf32>
    %172 = vector.extract_strided_slice %5 {offsets = [0, 0], sizes = [32, 16], strides = [1, 1]} : vector<32x128xf32> to vector<32x16xf32>
    %173 = vector.broadcast %171 : vector<32x1xf32> to vector<32x16xf32>
    %174 = arith.mulf %173, %172 : vector<32x16xf32>
    %175 = vector.extract_strided_slice %170 {offsets = [0, 1], sizes = [32, 1], strides = [1, 1]} : vector<32x8xf32> to vector<32x1xf32>
    %176 = vector.extract_strided_slice %5 {offsets = [0, 16], sizes = [32, 16], strides = [1, 1]} : vector<32x128xf32> to vector<32x16xf32>
    %177 = vector.broadcast %175 : vector<32x1xf32> to vector<32x16xf32>
    %178 = arith.mulf %177, %176 : vector<32x16xf32>
    %179 = arith.addf %174, %178 : vector<32x16xf32>
    %180 = vector.extract_strided_slice %170 {offsets = [0, 2], sizes = [32, 1], strides = [1, 1]} : vector<32x8xf32> to vector<32x1xf32>
    %181 = vector.extract_strided_slice %5 {offsets = [0, 32], sizes = [32, 16], strides = [1, 1]} : vector<32x128xf32> to vector<32x16xf32>
    %182 = vector.broadcast %180 : vector<32x1xf32> to vector<32x16xf32>
    %183 = arith.mulf %182, %181 : vector<32x16xf32>
    %184 = arith.addf %179, %183 : vector<32x16xf32>
    %185 = vector.extract_strided_slice %170 {offsets = [0, 3], sizes = [32, 1], strides = [1, 1]} : vector<32x8xf32> to vector<32x1xf32>
    %186 = vector.extract_strided_slice %5 {offsets = [0, 48], sizes = [32, 16], strides = [1, 1]} : vector<32x128xf32> to vector<32x16xf32>
    %187 = vector.broadcast %185 : vector<32x1xf32> to vector<32x16xf32>
    %188 = arith.mulf %187, %186 : vector<32x16xf32>
    %189 = arith.addf %184, %188 : vector<32x16xf32>
    %190 = vector.extract_strided_slice %170 {offsets = [0, 4], sizes = [32, 1], strides = [1, 1]} : vector<32x8xf32> to vector<32x1xf32>
    %191 = vector.extract_strided_slice %5 {offsets = [0, 64], sizes = [32, 16], strides = [1, 1]} : vector<32x128xf32> to vector<32x16xf32>
    %192 = vector.broadcast %190 : vector<32x1xf32> to vector<32x16xf32>
    %193 = arith.mulf %192, %191 : vector<32x16xf32>
    %194 = arith.addf %189, %193 : vector<32x16xf32>
    %195 = vector.extract_strided_slice %170 {offsets = [0, 5], sizes = [32, 1], strides = [1, 1]} : vector<32x8xf32> to vector<32x1xf32>
    %196 = vector.extract_strided_slice %5 {offsets = [0, 80], sizes = [32, 16], strides = [1, 1]} : vector<32x128xf32> to vector<32x16xf32>
    %197 = vector.broadcast %195 : vector<32x1xf32> to vector<32x16xf32>
    %198 = arith.mulf %197, %196 : vector<32x16xf32>
    %199 = arith.addf %194, %198 : vector<32x16xf32>
    %200 = vector.extract_strided_slice %170 {offsets = [0, 6], sizes = [32, 1], strides = [1, 1]} : vector<32x8xf32> to vector<32x1xf32>
    %201 = vector.extract_strided_slice %5 {offsets = [0, 96], sizes = [32, 16], strides = [1, 1]} : vector<32x128xf32> to vector<32x16xf32>
    %202 = vector.broadcast %200 : vector<32x1xf32> to vector<32x16xf32>
    %203 = arith.mulf %202, %201 : vector<32x16xf32>
    %204 = arith.addf %199, %203 : vector<32x16xf32>
    %205 = vector.extract_strided_slice %170 {offsets = [0, 7], sizes = [32, 1], strides = [1, 1]} : vector<32x8xf32> to vector<32x1xf32>
    %206 = vector.extract_strided_slice %5 {offsets = [0, 112], sizes = [32, 16], strides = [1, 1]} : vector<32x128xf32> to vector<32x16xf32>
    %207 = vector.broadcast %205 : vector<32x1xf32> to vector<32x16xf32>
    %208 = arith.mulf %207, %206 : vector<32x16xf32>
    %209 = arith.addf %204, %208 : vector<32x16xf32>
    %210 = vector.extract_strided_slice %0 {offsets = [0, 128], sizes = [32, 128], strides = [1, 1]} : vector<32x256xf32> to vector<32x128xf32>
    %cst_19 = arith.constant dense<0.000000e+00> : vector<32x256xf32>
    %211 = tpu.matmul %210, %1, %cst_19 {dimension_numbers = #tpu.dot_dimension_numbers<[1], [0], [0], [1], [0, 0, 1, 1], [], []>} : vector<32x128xf32>, vector<128x256xf32>, vector<32x256xf32> -> vector<32x256xf32>
    %212 = vector.broadcast %2 : vector<1x256xf32> to vector<32x256xf32>
    %213 = arith.addf %211, %212 : vector<32x256xf32>
    %cst_20 = arith.constant 0.000000e+00 : f32
    %214 = vector.broadcast %cst_20 : f32 to vector<32x256xf32>
    %215 = arith.maximumf %213, %214 : vector<32x256xf32>
    %cst_21 = arith.constant dense<0.000000e+00> : vector<32x32xf32>
    %216 = tpu.matmul %215, %3, %cst_21 {dimension_numbers = #tpu.dot_dimension_numbers<[1], [0], [0], [1], [0, 0, 1, 1], [], []>} : vector<32x256xf32>, vector<256x32xf32>, vector<32x32xf32> -> vector<32x32xf32>
    %217 = vector.broadcast %4 : vector<1x32xf32> to vector<32x32xf32>
    %218 = arith.addf %216, %217 : vector<32x32xf32>
    %219 = vector.extract_strided_slice %218 {offsets = [0, 0], sizes = [32, 8], strides = [1, 1]} : vector<32x32xf32> to vector<32x8xf32>
    %cst_22 = arith.constant dense<0xFF800000> : vector<32xf32>
    %220 = vector.multi_reduction <maximumf>, %219, %cst_22 [1] : vector<32x8xf32> to vector<32xf32>
    %221 = vector.shape_cast %220 : vector<32xf32> to vector<32x1xf32>
    %222 = vector.broadcast %221 : vector<32x1xf32> to vector<32x8xf32>
    %223 = arith.subf %219, %222 : vector<32x8xf32>
    %224 = math.exp %223 : vector<32x8xf32>
    %cst_23 = arith.constant dense<0.000000e+00> : vector<32xf32>
    %225 = vector.multi_reduction <add>, %224, %cst_23 [1] : vector<32x8xf32> to vector<32xf32>
    %226 = vector.shape_cast %225 : vector<32xf32> to vector<32x1xf32>
    %227 = vector.broadcast %226 : vector<32x1xf32> to vector<32x8xf32>
    %228 = arith.divf %224, %227 : vector<32x8xf32>
    %229 = vector.extract_strided_slice %228 {offsets = [0, 0], sizes = [32, 1], strides = [1, 1]} : vector<32x8xf32> to vector<32x1xf32>
    %230 = vector.extract_strided_slice %210 {offsets = [0, 0], sizes = [32, 16], strides = [1, 1]} : vector<32x128xf32> to vector<32x16xf32>
    %231 = vector.broadcast %229 : vector<32x1xf32> to vector<32x16xf32>
    %232 = arith.mulf %231, %230 : vector<32x16xf32>
    %233 = vector.extract_strided_slice %228 {offsets = [0, 1], sizes = [32, 1], strides = [1, 1]} : vector<32x8xf32> to vector<32x1xf32>
    %234 = vector.extract_strided_slice %210 {offsets = [0, 16], sizes = [32, 16], strides = [1, 1]} : vector<32x128xf32> to vector<32x16xf32>
    %235 = vector.broadcast %233 : vector<32x1xf32> to vector<32x16xf32>
    %236 = arith.mulf %235, %234 : vector<32x16xf32>
    %237 = arith.addf %232, %236 : vector<32x16xf32>
    %238 = vector.extract_strided_slice %228 {offsets = [0, 2], sizes = [32, 1], strides = [1, 1]} : vector<32x8xf32> to vector<32x1xf32>
    %239 = vector.extract_strided_slice %210 {offsets = [0, 32], sizes = [32, 16], strides = [1, 1]} : vector<32x128xf32> to vector<32x16xf32>
    %240 = vector.broadcast %238 : vector<32x1xf32> to vector<32x16xf32>
    %241 = arith.mulf %240, %239 : vector<32x16xf32>
    %242 = arith.addf %237, %241 : vector<32x16xf32>
    %243 = vector.extract_strided_slice %228 {offsets = [0, 3], sizes = [32, 1], strides = [1, 1]} : vector<32x8xf32> to vector<32x1xf32>
    %244 = vector.extract_strided_slice %210 {offsets = [0, 48], sizes = [32, 16], strides = [1, 1]} : vector<32x128xf32> to vector<32x16xf32>
    %245 = vector.broadcast %243 : vector<32x1xf32> to vector<32x16xf32>
    %246 = arith.mulf %245, %244 : vector<32x16xf32>
    %247 = arith.addf %242, %246 : vector<32x16xf32>
    %248 = vector.extract_strided_slice %228 {offsets = [0, 4], sizes = [32, 1], strides = [1, 1]} : vector<32x8xf32> to vector<32x1xf32>
    %249 = vector.extract_strided_slice %210 {offsets = [0, 64], sizes = [32, 16], strides = [1, 1]} : vector<32x128xf32> to vector<32x16xf32>
    %250 = vector.broadcast %248 : vector<32x1xf32> to vector<32x16xf32>
    %251 = arith.mulf %250, %249 : vector<32x16xf32>
    %252 = arith.addf %247, %251 : vector<32x16xf32>
    %253 = vector.extract_strided_slice %228 {offsets = [0, 5], sizes = [32, 1], strides = [1, 1]} : vector<32x8xf32> to vector<32x1xf32>
    %254 = vector.extract_strided_slice %210 {offsets = [0, 80], sizes = [32, 16], strides = [1, 1]} : vector<32x128xf32> to vector<32x16xf32>
    %255 = vector.broadcast %253 : vector<32x1xf32> to vector<32x16xf32>
    %256 = arith.mulf %255, %254 : vector<32x16xf32>
    %257 = arith.addf %252, %256 : vector<32x16xf32>
    %258 = vector.extract_strided_slice %228 {offsets = [0, 6], sizes = [32, 1], strides = [1, 1]} : vector<32x8xf32> to vector<32x1xf32>
    %259 = vector.extract_strided_slice %210 {offsets = [0, 96], sizes = [32, 16], strides = [1, 1]} : vector<32x128xf32> to vector<32x16xf32>
    %260 = vector.broadcast %258 : vector<32x1xf32> to vector<32x16xf32>
    %261 = arith.mulf %260, %259 : vector<32x16xf32>
    %262 = arith.addf %257, %261 : vector<32x16xf32>
    %263 = vector.extract_strided_slice %228 {offsets = [0, 7], sizes = [32, 1], strides = [1, 1]} : vector<32x8xf32> to vector<32x1xf32>
    %264 = vector.extract_strided_slice %210 {offsets = [0, 112], sizes = [32, 16], strides = [1, 1]} : vector<32x128xf32> to vector<32x16xf32>
    %265 = vector.broadcast %263 : vector<32x1xf32> to vector<32x16xf32>
    %266 = arith.mulf %265, %264 : vector<32x16xf32>
    %267 = arith.addf %262, %266 : vector<32x16xf32>
    %268 = vector.extract_strided_slice %218 {offsets = [0, 8], sizes = [32, 8], strides = [1, 1]} : vector<32x32xf32> to vector<32x8xf32>
    %cst_24 = arith.constant dense<0xFF800000> : vector<32xf32>
    %269 = vector.multi_reduction <maximumf>, %268, %cst_24 [1] : vector<32x8xf32> to vector<32xf32>
    %270 = vector.shape_cast %269 : vector<32xf32> to vector<32x1xf32>
    %271 = vector.broadcast %270 : vector<32x1xf32> to vector<32x8xf32>
    %272 = arith.subf %268, %271 : vector<32x8xf32>
    %273 = math.exp %272 : vector<32x8xf32>
    %cst_25 = arith.constant dense<0.000000e+00> : vector<32xf32>
    %274 = vector.multi_reduction <add>, %273, %cst_25 [1] : vector<32x8xf32> to vector<32xf32>
    %275 = vector.shape_cast %274 : vector<32xf32> to vector<32x1xf32>
    %276 = vector.broadcast %275 : vector<32x1xf32> to vector<32x8xf32>
    %277 = arith.divf %273, %276 : vector<32x8xf32>
    %278 = vector.extract_strided_slice %277 {offsets = [0, 0], sizes = [32, 1], strides = [1, 1]} : vector<32x8xf32> to vector<32x1xf32>
    %279 = vector.extract_strided_slice %210 {offsets = [0, 0], sizes = [32, 16], strides = [1, 1]} : vector<32x128xf32> to vector<32x16xf32>
    %280 = vector.broadcast %278 : vector<32x1xf32> to vector<32x16xf32>
    %281 = arith.mulf %280, %279 : vector<32x16xf32>
    %282 = vector.extract_strided_slice %277 {offsets = [0, 1], sizes = [32, 1], strides = [1, 1]} : vector<32x8xf32> to vector<32x1xf32>
    %283 = vector.extract_strided_slice %210 {offsets = [0, 16], sizes = [32, 16], strides = [1, 1]} : vector<32x128xf32> to vector<32x16xf32>
    %284 = vector.broadcast %282 : vector<32x1xf32> to vector<32x16xf32>
    %285 = arith.mulf %284, %283 : vector<32x16xf32>
    %286 = arith.addf %281, %285 : vector<32x16xf32>
    %287 = vector.extract_strided_slice %277 {offsets = [0, 2], sizes = [32, 1], strides = [1, 1]} : vector<32x8xf32> to vector<32x1xf32>
    %288 = vector.extract_strided_slice %210 {offsets = [0, 32], sizes = [32, 16], strides = [1, 1]} : vector<32x128xf32> to vector<32x16xf32>
    %289 = vector.broadcast %287 : vector<32x1xf32> to vector<32x16xf32>
    %290 = arith.mulf %289, %288 : vector<32x16xf32>
    %291 = arith.addf %286, %290 : vector<32x16xf32>
    %292 = vector.extract_strided_slice %277 {offsets = [0, 3], sizes = [32, 1], strides = [1, 1]} : vector<32x8xf32> to vector<32x1xf32>
    %293 = vector.extract_strided_slice %210 {offsets = [0, 48], sizes = [32, 16], strides = [1, 1]} : vector<32x128xf32> to vector<32x16xf32>
    %294 = vector.broadcast %292 : vector<32x1xf32> to vector<32x16xf32>
    %295 = arith.mulf %294, %293 : vector<32x16xf32>
    %296 = arith.addf %291, %295 : vector<32x16xf32>
    %297 = vector.extract_strided_slice %277 {offsets = [0, 4], sizes = [32, 1], strides = [1, 1]} : vector<32x8xf32> to vector<32x1xf32>
    %298 = vector.extract_strided_slice %210 {offsets = [0, 64], sizes = [32, 16], strides = [1, 1]} : vector<32x128xf32> to vector<32x16xf32>
    %299 = vector.broadcast %297 : vector<32x1xf32> to vector<32x16xf32>
    %300 = arith.mulf %299, %298 : vector<32x16xf32>
    %301 = arith.addf %296, %300 : vector<32x16xf32>
    %302 = vector.extract_strided_slice %277 {offsets = [0, 5], sizes = [32, 1], strides = [1, 1]} : vector<32x8xf32> to vector<32x1xf32>
    %303 = vector.extract_strided_slice %210 {offsets = [0, 80], sizes = [32, 16], strides = [1, 1]} : vector<32x128xf32> to vector<32x16xf32>
    %304 = vector.broadcast %302 : vector<32x1xf32> to vector<32x16xf32>
    %305 = arith.mulf %304, %303 : vector<32x16xf32>
    %306 = arith.addf %301, %305 : vector<32x16xf32>
    %307 = vector.extract_strided_slice %277 {offsets = [0, 6], sizes = [32, 1], strides = [1, 1]} : vector<32x8xf32> to vector<32x1xf32>
    %308 = vector.extract_strided_slice %210 {offsets = [0, 96], sizes = [32, 16], strides = [1, 1]} : vector<32x128xf32> to vector<32x16xf32>
    %309 = vector.broadcast %307 : vector<32x1xf32> to vector<32x16xf32>
    %310 = arith.mulf %309, %308 : vector<32x16xf32>
    %311 = arith.addf %306, %310 : vector<32x16xf32>
    %312 = vector.extract_strided_slice %277 {offsets = [0, 7], sizes = [32, 1], strides = [1, 1]} : vector<32x8xf32> to vector<32x1xf32>
    %313 = vector.extract_strided_slice %210 {offsets = [0, 112], sizes = [32, 16], strides = [1, 1]} : vector<32x128xf32> to vector<32x16xf32>
    %314 = vector.broadcast %312 : vector<32x1xf32> to vector<32x16xf32>
    %315 = arith.mulf %314, %313 : vector<32x16xf32>
    %316 = arith.addf %311, %315 : vector<32x16xf32>
    %317 = vector.extract_strided_slice %218 {offsets = [0, 16], sizes = [32, 8], strides = [1, 1]} : vector<32x32xf32> to vector<32x8xf32>
    %cst_26 = arith.constant dense<0xFF800000> : vector<32xf32>
    %318 = vector.multi_reduction <maximumf>, %317, %cst_26 [1] : vector<32x8xf32> to vector<32xf32>
    %319 = vector.shape_cast %318 : vector<32xf32> to vector<32x1xf32>
    %320 = vector.broadcast %319 : vector<32x1xf32> to vector<32x8xf32>
    %321 = arith.subf %317, %320 : vector<32x8xf32>
    %322 = math.exp %321 : vector<32x8xf32>
    %cst_27 = arith.constant dense<0.000000e+00> : vector<32xf32>
    %323 = vector.multi_reduction <add>, %322, %cst_27 [1] : vector<32x8xf32> to vector<32xf32>
    %324 = vector.shape_cast %323 : vector<32xf32> to vector<32x1xf32>
    %325 = vector.broadcast %324 : vector<32x1xf32> to vector<32x8xf32>
    %326 = arith.divf %322, %325 : vector<32x8xf32>
    %327 = vector.extract_strided_slice %326 {offsets = [0, 0], sizes = [32, 1], strides = [1, 1]} : vector<32x8xf32> to vector<32x1xf32>
    %328 = vector.extract_strided_slice %210 {offsets = [0, 0], sizes = [32, 16], strides = [1, 1]} : vector<32x128xf32> to vector<32x16xf32>
    %329 = vector.broadcast %327 : vector<32x1xf32> to vector<32x16xf32>
    %330 = arith.mulf %329, %328 : vector<32x16xf32>
    %331 = vector.extract_strided_slice %326 {offsets = [0, 1], sizes = [32, 1], strides = [1, 1]} : vector<32x8xf32> to vector<32x1xf32>
    %332 = vector.extract_strided_slice %210 {offsets = [0, 16], sizes = [32, 16], strides = [1, 1]} : vector<32x128xf32> to vector<32x16xf32>
    %333 = vector.broadcast %331 : vector<32x1xf32> to vector<32x16xf32>
    %334 = arith.mulf %333, %332 : vector<32x16xf32>
    %335 = arith.addf %330, %334 : vector<32x16xf32>
    %336 = vector.extract_strided_slice %326 {offsets = [0, 2], sizes = [32, 1], strides = [1, 1]} : vector<32x8xf32> to vector<32x1xf32>
    %337 = vector.extract_strided_slice %210 {offsets = [0, 32], sizes = [32, 16], strides = [1, 1]} : vector<32x128xf32> to vector<32x16xf32>
    %338 = vector.broadcast %336 : vector<32x1xf32> to vector<32x16xf32>
    %339 = arith.mulf %338, %337 : vector<32x16xf32>
    %340 = arith.addf %335, %339 : vector<32x16xf32>
    %341 = vector.extract_strided_slice %326 {offsets = [0, 3], sizes = [32, 1], strides = [1, 1]} : vector<32x8xf32> to vector<32x1xf32>
    %342 = vector.extract_strided_slice %210 {offsets = [0, 48], sizes = [32, 16], strides = [1, 1]} : vector<32x128xf32> to vector<32x16xf32>
    %343 = vector.broadcast %341 : vector<32x1xf32> to vector<32x16xf32>
    %344 = arith.mulf %343, %342 : vector<32x16xf32>
    %345 = arith.addf %340, %344 : vector<32x16xf32>
    %346 = vector.extract_strided_slice %326 {offsets = [0, 4], sizes = [32, 1], strides = [1, 1]} : vector<32x8xf32> to vector<32x1xf32>
    %347 = vector.extract_strided_slice %210 {offsets = [0, 64], sizes = [32, 16], strides = [1, 1]} : vector<32x128xf32> to vector<32x16xf32>
    %348 = vector.broadcast %346 : vector<32x1xf32> to vector<32x16xf32>
    %349 = arith.mulf %348, %347 : vector<32x16xf32>
    %350 = arith.addf %345, %349 : vector<32x16xf32>
    %351 = vector.extract_strided_slice %326 {offsets = [0, 5], sizes = [32, 1], strides = [1, 1]} : vector<32x8xf32> to vector<32x1xf32>
    %352 = vector.extract_strided_slice %210 {offsets = [0, 80], sizes = [32, 16], strides = [1, 1]} : vector<32x128xf32> to vector<32x16xf32>
    %353 = vector.broadcast %351 : vector<32x1xf32> to vector<32x16xf32>
    %354 = arith.mulf %353, %352 : vector<32x16xf32>
    %355 = arith.addf %350, %354 : vector<32x16xf32>
    %356 = vector.extract_strided_slice %326 {offsets = [0, 6], sizes = [32, 1], strides = [1, 1]} : vector<32x8xf32> to vector<32x1xf32>
    %357 = vector.extract_strided_slice %210 {offsets = [0, 96], sizes = [32, 16], strides = [1, 1]} : vector<32x128xf32> to vector<32x16xf32>
    %358 = vector.broadcast %356 : vector<32x1xf32> to vector<32x16xf32>
    %359 = arith.mulf %358, %357 : vector<32x16xf32>
    %360 = arith.addf %355, %359 : vector<32x16xf32>
    %361 = vector.extract_strided_slice %326 {offsets = [0, 7], sizes = [32, 1], strides = [1, 1]} : vector<32x8xf32> to vector<32x1xf32>
    %362 = vector.extract_strided_slice %210 {offsets = [0, 112], sizes = [32, 16], strides = [1, 1]} : vector<32x128xf32> to vector<32x16xf32>
    %363 = vector.broadcast %361 : vector<32x1xf32> to vector<32x16xf32>
    %364 = arith.mulf %363, %362 : vector<32x16xf32>
    %365 = arith.addf %360, %364 : vector<32x16xf32>
    %366 = vector.extract_strided_slice %218 {offsets = [0, 24], sizes = [32, 8], strides = [1, 1]} : vector<32x32xf32> to vector<32x8xf32>
    %cst_28 = arith.constant dense<0xFF800000> : vector<32xf32>
    %367 = vector.multi_reduction <maximumf>, %366, %cst_28 [1] : vector<32x8xf32> to vector<32xf32>
    %368 = vector.shape_cast %367 : vector<32xf32> to vector<32x1xf32>
    %369 = vector.broadcast %368 : vector<32x1xf32> to vector<32x8xf32>
    %370 = arith.subf %366, %369 : vector<32x8xf32>
    %371 = math.exp %370 : vector<32x8xf32>
    %cst_29 = arith.constant dense<0.000000e+00> : vector<32xf32>
    %372 = vector.multi_reduction <add>, %371, %cst_29 [1] : vector<32x8xf32> to vector<32xf32>
    %373 = vector.shape_cast %372 : vector<32xf32> to vector<32x1xf32>
    %374 = vector.broadcast %373 : vector<32x1xf32> to vector<32x8xf32>
    %375 = arith.divf %371, %374 : vector<32x8xf32>
    %376 = vector.extract_strided_slice %375 {offsets = [0, 0], sizes = [32, 1], strides = [1, 1]} : vector<32x8xf32> to vector<32x1xf32>
    %377 = vector.extract_strided_slice %210 {offsets = [0, 0], sizes = [32, 16], strides = [1, 1]} : vector<32x128xf32> to vector<32x16xf32>
    %378 = vector.broadcast %376 : vector<32x1xf32> to vector<32x16xf32>
    %379 = arith.mulf %378, %377 : vector<32x16xf32>
    %380 = vector.extract_strided_slice %375 {offsets = [0, 1], sizes = [32, 1], strides = [1, 1]} : vector<32x8xf32> to vector<32x1xf32>
    %381 = vector.extract_strided_slice %210 {offsets = [0, 16], sizes = [32, 16], strides = [1, 1]} : vector<32x128xf32> to vector<32x16xf32>
    %382 = vector.broadcast %380 : vector<32x1xf32> to vector<32x16xf32>
    %383 = arith.mulf %382, %381 : vector<32x16xf32>
    %384 = arith.addf %379, %383 : vector<32x16xf32>
    %385 = vector.extract_strided_slice %375 {offsets = [0, 2], sizes = [32, 1], strides = [1, 1]} : vector<32x8xf32> to vector<32x1xf32>
    %386 = vector.extract_strided_slice %210 {offsets = [0, 32], sizes = [32, 16], strides = [1, 1]} : vector<32x128xf32> to vector<32x16xf32>
    %387 = vector.broadcast %385 : vector<32x1xf32> to vector<32x16xf32>
    %388 = arith.mulf %387, %386 : vector<32x16xf32>
    %389 = arith.addf %384, %388 : vector<32x16xf32>
    %390 = vector.extract_strided_slice %375 {offsets = [0, 3], sizes = [32, 1], strides = [1, 1]} : vector<32x8xf32> to vector<32x1xf32>
    %391 = vector.extract_strided_slice %210 {offsets = [0, 48], sizes = [32, 16], strides = [1, 1]} : vector<32x128xf32> to vector<32x16xf32>
    %392 = vector.broadcast %390 : vector<32x1xf32> to vector<32x16xf32>
    %393 = arith.mulf %392, %391 : vector<32x16xf32>
    %394 = arith.addf %389, %393 : vector<32x16xf32>
    %395 = vector.extract_strided_slice %375 {offsets = [0, 4], sizes = [32, 1], strides = [1, 1]} : vector<32x8xf32> to vector<32x1xf32>
    %396 = vector.extract_strided_slice %210 {offsets = [0, 64], sizes = [32, 16], strides = [1, 1]} : vector<32x128xf32> to vector<32x16xf32>
    %397 = vector.broadcast %395 : vector<32x1xf32> to vector<32x16xf32>
    %398 = arith.mulf %397, %396 : vector<32x16xf32>
    %399 = arith.addf %394, %398 : vector<32x16xf32>
    %400 = vector.extract_strided_slice %375 {offsets = [0, 5], sizes = [32, 1], strides = [1, 1]} : vector<32x8xf32> to vector<32x1xf32>
    %401 = vector.extract_strided_slice %210 {offsets = [0, 80], sizes = [32, 16], strides = [1, 1]} : vector<32x128xf32> to vector<32x16xf32>
    %402 = vector.broadcast %400 : vector<32x1xf32> to vector<32x16xf32>
    %403 = arith.mulf %402, %401 : vector<32x16xf32>
    %404 = arith.addf %399, %403 : vector<32x16xf32>
    %405 = vector.extract_strided_slice %375 {offsets = [0, 6], sizes = [32, 1], strides = [1, 1]} : vector<32x8xf32> to vector<32x1xf32>
    %406 = vector.extract_strided_slice %210 {offsets = [0, 96], sizes = [32, 16], strides = [1, 1]} : vector<32x128xf32> to vector<32x16xf32>
    %407 = vector.broadcast %405 : vector<32x1xf32> to vector<32x16xf32>
    %408 = arith.mulf %407, %406 : vector<32x16xf32>
    %409 = arith.addf %404, %408 : vector<32x16xf32>
    %410 = vector.extract_strided_slice %375 {offsets = [0, 7], sizes = [32, 1], strides = [1, 1]} : vector<32x8xf32> to vector<32x1xf32>
    %411 = vector.extract_strided_slice %210 {offsets = [0, 112], sizes = [32, 16], strides = [1, 1]} : vector<32x128xf32> to vector<32x16xf32>
    %412 = vector.broadcast %410 : vector<32x1xf32> to vector<32x16xf32>
    %413 = arith.mulf %412, %411 : vector<32x16xf32>
    %414 = arith.addf %409, %413 : vector<32x16xf32>
    %415 = tpu.concatenate %62, %111, %160, %209, %267, %316, %365, %414 in 1 : vector<32x16xf32>, vector<32x16xf32>, vector<32x16xf32>, vector<32x16xf32>, vector<32x16xf32>, vector<32x16xf32>, vector<32x16xf32>, vector<32x16xf32> -> vector<32x128xf32>
    %c0_30 = arith.constant 0 : index
    %c0_31 = arith.constant 0 : index
    %416 = vector.load %arg6[%c0_30, %c0_31] : memref<32x128xf32, #tpu.memory_space<vmem>>, vector<32x128xf32>
    tpu.vector_store %arg6[%c0_30, %c0_31], %415 {strides = array<i32>} : memref<32x128xf32, #tpu.memory_space<vmem>>, vector<32x128xf32>,
    return
  }
  func.func @transform_0(%arg0: i32) -> (i32, i32) {
    %c0_i32 = arith.constant 0 : i32
    %c0_i32_0 = arith.constant 0 : i32
    return %arg0, %c0_i32 : i32, i32
  }
  func.func @transform_1(%arg0: i32) -> (i32, i32) {
    %c0_i32 = arith.constant 0 : i32
    %c0_i32_0 = arith.constant 0 : i32
    %c0_i32_1 = arith.constant 0 : i32
    return %c0_i32, %c0_i32_0 : i32, i32
  }
  func.func @transform_2(%arg0: i32) -> (i32, i32) {
    %c0_i32 = arith.constant 0 : i32
    %c0_i32_0 = arith.constant 0 : i32
    %c0_i32_1 = arith.constant 0 : i32
    return %c0_i32, %c0_i32_0 : i32, i32
  }
  func.func @transform_3(%arg0: i32) -> (i32, i32) {
    %c0_i32 = arith.constant 0 : i32
    %c0_i32_0 = arith.constant 0 : i32
    %c0_i32_1 = arith.constant 0 : i32
    return %c0_i32, %c0_i32_0 : i32, i32
  }
  func.func @transform_4(%arg0: i32) -> (i32, i32) {
    %c0_i32 = arith.constant 0 : i32
    %c0_i32_0 = arith.constant 0 : i32
    %c0_i32_1 = arith.constant 0 : i32
    return %c0_i32, %c0_i32_0 : i32, i32
  }
  func.func @transform_5(%arg0: i32) -> (i32, i32) {
    %c0_i32 = arith.constant 0 : i32
    %c0_i32_0 = arith.constant 0 : i32
    return %arg0, %c0_i32 : i32, i32
  }
}

</mosaic_0001>

<llo_original>
// kernel: tpu_custom_call.1
$region0: #{tpu_custom_call.1}
  #allocation0 [shape = 'u32[]', space=smem, size = 0x4, offset = 0x4, fixed_abs, tag = 'smem constant byte address 0x4 - core index']
  #allocation1 [shape = 'u32[144,128]{1,0:T(1,128)}', space=vmem, size = 0x12000, scoped, tag = 'internal scratch']
  %s0 = inlined_call_operand.hbm [shape: f32[64,256], index: 0, kind: input, shape index: {}]
  %s1 = inlined_call_operand.vmem [shape: f32[128,256], index: 1, kind: input, shape index: {}]
  %s2 = inlined_call_operand.vmem [shape: f32[1,256], index: 2, kind: input, shape index: {}]
  %s3 = inlined_call_operand.vmem [shape: f32[256,32], index: 3, kind: input, shape index: {}]
  %s4 = inlined_call_operand.vmem [shape: f32[1,32], index: 4, kind: input, shape index: {}]
  %s5 = inlined_call_operand.hbm [shape: f32[64,128], index: 5, kind: output, shape index: {}]
  %s6 = sld [smem:[#allocation0]]
  $region57: #{tpu_custom_call.1} parent=0
    _
  %s8 = ssub.s32 1, %s6
  %s9 = scalar_select 0, %s8, %s6
  $region1: #{tpu_custom_call.1} parent=0
    #allocation2 [shape = 'u8[65536]{0}', space=vmem, size = 0x10000, scoped, tag = 'input window, operand 0']
    #allocation3 [shape = 's32[2]{0}', space=sflag, size = 0x8, scoped, tag = 'scoped memory for tpu_custom_call.1']
    #allocation4 [shape = 's32[2]{0}', space=sflag, size = 0x8, scoped, tag = 'scoped memory for tpu_custom_call.1']
    #allocation5 [shape = 'u8[32768]{0}', space=vmem, size = 0x8000, scoped, tag = 'output window, operand 0']
    %10 = vsyncpa [#allocation3], 0
    %s11 = scalar_lea.sflag [#allocation3], 1
    %12 = vsyncpa %s11, 0
    %13 = vsyncpa [#allocation4], 0
    %s14 = scalar_lea.sflag [#allocation4], 1
    %15 = vsyncpa %s14, 0
    loop: start=0, step=1, limit=4
    $region2: #{tpu_custom_call.1} parent=1 // loop_pre_header
      _
    $region3: #{tpu_custom_call.1} parent=1 // loop_header
      %s17 = sphi 0, %s21
      %p18 = scmp.ge.s32.totalorder %s17, 4
      %s27 = sphi 0, %s29
      %s30 = sphi 0, %s27
      %s31 = sphi 0, %s30
      %s47 = sphi 0, %s31
      %s51 = sphi 0, %s51
      %s53 = sphi 0, %s51
      %s54 = sphi 0, %s53
      %s68 = sphi 0, %s54
      %s72 = sphi 0, %s72
      %s74 = sphi 0, %s72
      %s75 = sphi 0, %s74
      %s89 = sphi 0, %s75
      %s93 = sphi 0, %s93
      %s95 = sphi 0, %s93
      %s96 = sphi 0, %s95
      %s110 = sphi 0, %s96
      %s114 = sphi 0, %s114
      %s116 = sphi 0, %s114
      %s117 = sphi 0, %s116
      %s131 = sphi 0, %s117
      %s137 = sphi 0, %s139
      %s140 = sphi 0, %s137
      %s141 = sphi 0, %s140
      %s157 = sphi 0, %s141
    $region4: #{tpu_custom_call.1} parent=1 // loop_header_branch
      %20 = sbr.rel (%p18) target = $region8
    $region5: #{tpu_custom_call.1} parent=1 // loop_body
      %s22 = ssub.s32 %s17, 1
      %s23 = ssub.s32 %s17, 2
      %s24 = sadd.s32 %s17, 1
      %s25 = ssub.s32 %s17, %s24
      %p26 = scmp.eq.s32.totalorder %s25, 0
      %s28 = sadd.s32 %s27, 1
      %s29 = scalar_select %p26, %s27, %s28
      %p32 = pneg %p26
      %p33 = scmp.eq.s32.totalorder %s17, 1
      %p34 = por %p32, %p33
      %p35 = scmp.ne.s32.totalorder %s27, %s30
      %p36 = scmp.eq.s32.totalorder %s17, 0
      %p37 = por %p35, %p36
      %p38 = scmp.ne.s32.totalorder %s27, %s30
      %p39 = scmp.eq.s32.totalorder %s22, 1
      %p40 = por %p38, %p39
      %p41 = scmp.ne.s32.totalorder %s30, %s31
      %p42 = scmp.eq.s32.totalorder %s22, 0
      %p43 = por %p41, %p42
      %p44 = scmp.ne.s32.totalorder %s30, %s31
      %p45 = scmp.eq.s32.totalorder %s23, 1
      %p46 = por %p44, %p45
      %p48 = scmp.ne.s32.totalorder %s31, %s47
      %p49 = scmp.eq.s32.totalorder %s23, 0
      %p50 = por %p48, %p49
      %s52 = sadd.s32 %s51, 1
      %p55 = scmp.eq.s32.totalorder %s17, 1
      %p56 = scmp.ne.s32.totalorder %s51, %s53
      %p57 = scmp.eq.s32.totalorder %s17, 0
      %p58 = por %p56, %p57
      %p59 = scmp.ne.s32.totalorder %s51, %s53
      %p60 = scmp.eq.s32.totalorder %s22, 1
      %p61 = por %p59, %p60
      %p62 = scmp.ne.s32.totalorder %s53, %s54
      %p63 = scmp.eq.s32.totalorder %s22, 0
      %p64 = por %p62, %p63
      %p65 = scmp.ne.s32.totalorder %s53, %s54
      %p66 = scmp.eq.s32.totalorder %s23, 1
      %p67 = por %p65, %p66
      %p69 = scmp.ne.s32.totalorder %s54, %s68
      %p70 = scmp.eq.s32.totalorder %s23, 0
      %p71 = por %p69, %p70
      %s73 = sadd.s32 %s72, 1
      %p76 = scmp.eq.s32.totalorder %s17, 1
      %p77 = scmp.ne.s32.totalorder %s72, %s74
      %p78 = scmp.eq.s32.totalorder %s17, 0
      %p79 = por %p77, %p78
      %p80 = scmp.ne.s32.totalorder %s72, %s74
      %p81 = scmp.eq.s32.totalorder %s22, 1
      %p82 = por %p80, %p81
      %p83 = scmp.ne.s32.totalorder %s74, %s75
      %p84 = scmp.eq.s32.totalorder %s22, 0
      %p85 = por %p83, %p84
      %p86 = scmp.ne.s32.totalorder %s74, %s75
      %p87 = scmp.eq.s32.totalorder %s23, 1
      %p88 = por %p86, %p87
      %p90 = scmp.ne.s32.totalorder %s75, %s89
      %p91 = scmp.eq.s32.totalorder %s23, 0
      %p92 = por %p90, %p91
      %s94 = sadd.s32 %s93, 1
      %p97 = scmp.eq.s32.totalorder %s17, 1
      %p98 = scmp.ne.s32.totalorder %s93, %s95
      %p99 = scmp.eq.s32.totalorder %s17, 0
      %p100 = por %p98, %p99
      %p101 = scmp.ne.s32.totalorder %s93, %s95
      %p102 = scmp.eq.s32.totalorder %s22, 1
      %p103 = por %p101, %p102
      %p104 = scmp.ne.s32.totalorder %s95, %s96
      %p105 = scmp.eq.s32.totalorder %s22, 0
      %p106 = por %p104, %p105
      %p107 = scmp.ne.s32.totalorder %s95, %s96
      %p108 = scmp.eq.s32.totalorder %s23, 1
      %p109 = por %p107, %p108
      %p111 = scmp.ne.s32.totalorder %s96, %s110
      %p112 = scmp.eq.s32.totalorder %s23, 0
      %p113 = por %p111, %p112
      %s115 = sadd.s32 %s114, 1
      %p118 = scmp.eq.s32.totalorder %s17, 1
      %p119 = scmp.ne.s32.totalorder %s114, %s116
      %p120 = scmp.eq.s32.totalorder %s17, 0
      %p121 = por %p119, %p120
      %p122 = scmp.ne.s32.totalorder %s114, %s116
      %p123 = scmp.eq.s32.totalorder %s22, 1
      %p124 = por %p122, %p123
      %p125 = scmp.ne.s32.totalorder %s116, %s117
      %p126 = scmp.eq.s32.totalorder %s22, 0
      %p127 = por %p125, %p126
      %p128 = scmp.ne.s32.totalorder %s116, %s117
      %p129 = scmp.eq.s32.totalorder %s23, 1
      %p130 = por %p128, %p129
      %p132 = scmp.ne.s32.totalorder %s117, %s131
      %p133 = scmp.eq.s32.totalorder %s23, 0
      %p134 = por %p132, %p133
      %s135 = ssub.s32 %s17, %s24
      %p136 = scmp.eq.s32.totalorder %s135, 0
      %s138 = sadd.s32 %s137, 1
      %s139 = scalar_select %p136, %s137, %s138
      %p142 = pneg %p136
      %p143 = scmp.eq.s32.totalorder %s17, 1
      %p144 = por %p142, %p143
      %p145 = scmp.ne.s32.totalorder %s137, %s140
      %p146 = scmp.eq.s32.totalorder %s17, 0
      %p147 = por %p145, %p146
      %p148 = scmp.ne.s32.totalorder %s137, %s140
      %p149 = scmp.eq.s32.totalorder %s22, 1
      %p150 = por %p148, %p149
      %p151 = scmp.ne.s32.totalorder %s140, %s141
      %p152 = scmp.eq.s32.totalorder %s22, 0
      %p153 = por %p151, %p152
      %p154 = scmp.ne.s32.totalorder %s140, %s141
      %p155 = scmp.eq.s32.totalorder %s23, 1
      %p156 = por %p154, %p155
      %p158 = scmp.ne.s32.totalorder %s141, %s157
      %p159 = scmp.eq.s32.totalorder %s23, 0
      %p160 = por %p158, %p159
      %p161 = scmp.le.s32.totalorder 1, %s17
      %p162 = scmp.lt.s32.totalorder %s17, 3
      %p163 = pnand %p161, %p162
      %p164 = pneg %p163
      // Predicated region
      $region9: #{tpu_custom_call.1} parent=5 // pred_check
        _
      $region10: #{tpu_custom_call.1} parent=5 // pred_check_branch
        %166 = sbr.rel (%p163) target = $region12
      $region11: #{tpu_custom_call.1} parent=5 // pred_region
        %s167 = ssub.s32 %s17, 1
        // Predicated region
        $region13: #{tpu_custom_call.1} parent=11 // pred_check
          %p168 = pneg %p64
        $region14: #{tpu_custom_call.1} parent=11 // pred_check_branch
          %170 = sbr.rel (%p168) target = $region16
        $region15: #{tpu_custom_call.1} parent=11 // pred_region
          _
        $region16: #{tpu_custom_call.1} parent=11 // pred_fallthru
          _
        // Predicated region
        $region17: #{tpu_custom_call.1} parent=11 // pred_check
          %p171 = pneg %p85
        $region18: #{tpu_custom_call.1} parent=11 // pred_check_branch
          %173 = sbr.rel (%p171) target = $region20
        $region19: #{tpu_custom_call.1} parent=11 // pred_region
          _
        $region20: #{tpu_custom_call.1} parent=11 // pred_fallthru
          _
        // Predicated region
        $region21: #{tpu_custom_call.1} parent=11 // pred_check
          %p174 = pneg %p106
        $region22: #{tpu_custom_call.1} parent=11 // pred_check_branch
          %176 = sbr.rel (%p174) target = $region24
        $region23: #{tpu_custom_call.1} parent=11 // pred_region
          _
        $region24: #{tpu_custom_call.1} parent=11 // pred_fallthru
          _
        // Predicated region
        $region25: #{tpu_custom_call.1} parent=11 // pred_check
          %p177 = pneg %p127
        $region26: #{tpu_custom_call.1} parent=11 // pred_check_branch
          %179 = sbr.rel (%p177) target = $region28
        $region27: #{tpu_custom_call.1} parent=11 // pred_region
          _
        $region28: #{tpu_custom_call.1} parent=11 // pred_fallthru
          _
      $region12: #{tpu_custom_call.1} parent=5 // pred_fallthru
        _
      %p180 = scmp.lt.s32.totalorder %s17, 2
      // Predicated region
      $region29: #{tpu_custom_call.1} parent=5 // pred_check
        %p181 = pneg %p180
      $region30: #{tpu_custom_call.1} parent=5 // pred_check_branch
        %183 = sbr.rel (%p181) target = $region32
      $region31: #{tpu_custom_call.1} parent=5 // pred_region
        // Predicated region
        $region33: #{tpu_custom_call.1} parent=31 // pred_check
          %p184 = pneg %p37
        $region34: #{tpu_custom_call.1} parent=31 // pred_check_branch
          %186 = sbr.rel (%p184) target = $region36
        $region35: #{tpu_custom_call.1} parent=31 // pred_region
          %s187 = sand.u32 %s27, 1
          %s188 = scalar_lea.sflag [#allocation3], %s187
          %s189 = sand.u32 %s27, 1
          %s190 = smul.addr %s189, 64
          %s191 = scalar_lea.vmem [#allocation2], %s190
          %s192 = smul.u32 4, %s17
          %s194 = ssub.s32 1024, 1024
          %195 = vsyncadd %s188, %s194
          %s196 = smul.addr %s192, 2
          %s197 = smul.addr %s196, 128
          %s198 = scalar_lea.hbm %s0, %s197
          %s199 = sshll.u32 %s191, 4
          %s200 = int_to_ptr.vmem [resolvable:$true] %s199
          %205 = dma.hbm_to_vmem [thread:$0]  %s198, 1024, %s200, %s188, 256, 256, 16
        $region36: #{tpu_custom_call.1} parent=31 // pred_fallthru
          _
      $region32: #{tpu_custom_call.1} parent=5 // pred_fallthru
        _
      %p206 = scmp.le.s32.totalorder 1, %s17
      %p207 = scmp.lt.s32.totalorder %s17, 3
      %p208 = pnand %p206, %p207
      %p209 = pneg %p208
      // Predicated region
      $region37: #{tpu_custom_call.1} parent=5 // pred_check
        _
      $region38: #{tpu_custom_call.1} parent=5 // pred_check_branch
        %211 = sbr.rel (%p208) target = $region40
      $region39: #{tpu_custom_call.1} parent=5 // pred_region
        %s212 = ssub.s32 %s17, 1
        %s213 = sand.u32 %s30, 1
        %s214 = scalar_lea.sflag [#allocation3], %s213
        %s215 = sand.u32 %s30, 1
        %s216 = smul.addr %s215, 64
        %s217 = scalar_lea.vmem [#allocation2], %s216
        // Predicated region
        $region41: #{tpu_custom_call.1} parent=39 // pred_check
          %p218 = pneg %p43
        $region42: #{tpu_custom_call.1} parent=39 // pred_check_branch
          %220 = sbr.rel (%p218) target = $region44
        $region43: #{tpu_custom_call.1} parent=39 // pred_region
          %221 = dma.done %s214, 1024
        $region44: #{tpu_custom_call.1} parent=39 // pred_fallthru
          _
        %s222 = sand.u32 %s30, 1
        %s223 = scalar_lea.sflag [#allocation3], %s222
        %s224 = sand.u32 %s30, 1
        %s225 = smul.addr %s224, 64
        %s226 = scalar_lea.vmem [#allocation2], %s225
        %p227 = pneg %p43
        %p228 = pneg %p40
        %p229 = pneg %p64
        %p230 = pneg %p61
        %p231 = pneg %p85
        %p232 = pneg %p82
        %p233 = pneg %p106
        %p234 = pneg %p103
        %p235 = pneg %p127
        %p236 = pneg %p124
        %p237 = pneg %p153
        %p238 = pneg %p150
        %s239 = sand.u32 %s140, 1
        %s240 = scalar_lea.sflag [#allocation4], %s239
        %s241 = sand.u32 %s140, 1
        %s242 = smul.addr %s241, 32
        %s243 = scalar_lea.vmem [#allocation5], %s242
        %s244 = smul.u32 4, %s22
        %s245 = smul.u32 4, %s22
        %v246 = vld [vmem:[%s217] sm:$0xff]
        %v247 = vld [vmem:[%s217 + $0x8] sm:$0xff]
        %v248 = vld [vmem:[%s217 + $0x10] sm:$0xff]
        %v249 = vld [vmem:[%s217 + $0x18] sm:$0xff]
        %v250 = vld [vmem:[%s217 + $0x20] sm:$0xff]
        %v251 = vld [vmem:[%s217 + $0x28] sm:$0xff]
        %v252 = vld [vmem:[%s217 + $0x30] sm:$0xff]
        %v253 = vld [vmem:[%s217 + $0x38] sm:$0xff]
        %v254 = vld [vmem:[%s1] sm:$0xff]
        %v255 = vld [vmem:[%s1 + $0x8] sm:$0xff]
        %v256 = vld [vmem:[%s1 + $0x10] sm:$0xff]
        %v257 = vld [vmem:[%s1 + $0x18] sm:$0xff]
        %v258 = vld [vmem:[%s1 + $0x20] sm:$0xff]
        %v259 = vld [vmem:[%s1 + $0x28] sm:$0xff]
        %v260 = vld [vmem:[%s1 + $0x30] sm:$0xff]
        %v261 = vld [vmem:[%s1 + $0x38] sm:$0xff]
        %v262 = vld [vmem:[%s1 + $0x40] sm:$0xff]
        %v263 = vld [vmem:[%s1 + $0x48] sm:$0xff]
        %v264 = vld [vmem:[%s1 + $0x50] sm:$0xff]
        %v265 = vld [vmem:[%s1 + $0x58] sm:$0xff]
        %v266 = vld [vmem:[%s1 + $0x60] sm:$0xff]
        %v267 = vld [vmem:[%s1 + $0x68] sm:$0xff]
        %v268 = vld [vmem:[%s1 + $0x70] sm:$0xff]
        %v269 = vld [vmem:[%s1 + $0x78] sm:$0xff]
        %v270 = vld [vmem:[%s1 + $0x80] sm:$0xff]
        %v271 = vld [vmem:[%s1 + $0x88] sm:$0xff]
        %v272 = vld [vmem:[%s1 + $0x90] sm:$0xff]
        %v273 = vld [vmem:[%s1 + $0x98] sm:$0xff]
        %v274 = vld [vmem:[%s1 + $0xa0] sm:$0xff]
        %v275 = vld [vmem:[%s1 + $0xa8] sm:$0xff]
        %v276 = vld [vmem:[%s1 + $0xb0] sm:$0xff]
        %v277 = vld [vmem:[%s1 + $0xb8] sm:$0xff]
        %v278 = vld [vmem:[%s1 + $0xc0] sm:$0xff]
        %v279 = vld [vmem:[%s1 + $0xc8] sm:$0xff]
        %v280 = vld [vmem:[%s1 + $0xd0] sm:$0xff]
        %v281 = vld [vmem:[%s1 + $0xd8] sm:$0xff]
        %v282 = vld [vmem:[%s1 + $0xe0] sm:$0xff]
        %v283 = vld [vmem:[%s1 + $0xe8] sm:$0xff]
        %v284 = vld [vmem:[%s1 + $0xf0] sm:$0xff]
        %v285 = vld [vmem:[%s1 + $0xf8] sm:$0xff]
        %v286 = vld [vmem:[%s2] sm:$0x3]
        %v287 = vld [vmem:[%s3] sm:$0xff]
        %v288 = vld [vmem:[%s3 + $0x8] sm:$0xff]
        %v289 = vld [vmem:[%s3 + $0x10] sm:$0xff]
        %v290 = vld [vmem:[%s3 + $0x18] sm:$0xff]
        %v291 = vld [vmem:[%s3 + $0x20] sm:$0xff]
        %v292 = vld [vmem:[%s3 + $0x28] sm:$0xff]
        %v293 = vld [vmem:[%s3 + $0x30] sm:$0xff]
        %v294 = vld [vmem:[%s3 + $0x38] sm:$0xff]
        %v295 = vld [vmem:[%s3 + $0x40] sm:$0xff]
        %v296 = vld [vmem:[%s3 + $0x48] sm:$0xff]
        %v297 = vld [vmem:[%s3 + $0x50] sm:$0xff]
        %v298 = vld [vmem:[%s3 + $0x58] sm:$0xff]
        %v299 = vld [vmem:[%s3 + $0x60] sm:$0xff]
        %v300 = vld [vmem:[%s3 + $0x68] sm:$0xff]
        %v301 = vld [vmem:[%s3 + $0x70] sm:$0xff]
        %v302 = vld [vmem:[%s3 + $0x78] sm:$0xff]
        %v303 = vld [vmem:[%s3 + $0x80] sm:$0xff]
        %v304 = vld [vmem:[%s3 + $0x88] sm:$0xff]
        %v305 = vld [vmem:[%s3 + $0x90] sm:$0xff]
        %v306 = vld [vmem:[%s3 + $0x98] sm:$0xff]
        %v307 = vld [vmem:[%s3 + $0xa0] sm:$0xff]
        %v308 = vld [vmem:[%s3 + $0xa8] sm:$0xff]
        %v309 = vld [vmem:[%s3 + $0xb0] sm:$0xff]
        %v310 = vld [vmem:[%s3 + $0xb8] sm:$0xff]
        %v311 = vld [vmem:[%s3 + $0xc0] sm:$0xff]
        %v312 = vld [vmem:[%s3 + $0xc8] sm:$0xff]
        %v313 = vld [vmem:[%s3 + $0xd0] sm:$0xff]
        %v314 = vld [vmem:[%s3 + $0xd8] sm:$0xff]
        %v315 = vld [vmem:[%s3 + $0xe0] sm:$0xff]
        %v316 = vld [vmem:[%s3 + $0xe8] sm:$0xff]
        %v317 = vld [vmem:[%s3 + $0xf0] sm:$0xff]
        %v318 = vld [vmem:[%s3 + $0xf8] sm:$0xff]
        %v319 = vld [vmem:[%s4] sm:$0x1]
        %v321 = vlaneseq
        %v322 = vshrl.u32 %v321, 7
        %v323 = vsub.s32 0, %v322
        %v324 = vrot.slane %v286, %v323
        %v325 = vlaneseq
        %v326 = vshrl.u32 %v325, 7
        %v327 = vsub.s32 1, %v326
        %v328 = vrot.slane %v286, %v327
        %331 = vmatprep.subr.mxu0 %v255
        %332 = vmatpush1.msra.mxu0 %v254
        %333 = vmatprep.subr.mxu0 %v257
        %334 = vmatpush1.msra.mxu0 %v256
        %335 = vmatprep.subr.mxu0 %v259
        %336 = vmatpush1.msra.mxu0 %v258
        %337 = vmatprep.subr.mxu0 %v261
        %338 = vmatpush1.msra.mxu0 %v260
        %339 = vmatprep.subr.mxu0 %v263
        %340 = vmatpush1.msra.mxu0 %v262
        %341 = vmatprep.subr.mxu0 %v265
        %342 = vmatpush1.msra.mxu0 %v264
        %343 = vmatprep.subr.mxu0 %v267
        %344 = vmatpush1.msra.mxu0 %v266
        %345 = vmatprep.subr.mxu0 %v269
        %346 = vmatpush1.msra.mxu0 %v268
        %347 = vmatprep.subr.mxu0 %v271
        %348 = vmatpush1.msra.mxu0 %v270
        %349 = vmatprep.subr.mxu0 %v273
        %350 = vmatpush1.msra.mxu0 %v272
        %351 = vmatprep.subr.mxu0 %v275
        %352 = vmatpush1.msra.mxu0 %v274
        %353 = vmatprep.subr.mxu0 %v277
        %354 = vmatpush1.msra.mxu0 %v276
        %355 = vmatprep.subr.mxu0 %v279
        %356 = vmatpush1.msra.mxu0 %v278
        %357 = vmatprep.subr.mxu0 %v281
        %358 = vmatpush1.msra.mxu0 %v280
        %359 = vmatprep.subr.mxu0 %v283
        %360 = vmatpush1.msra.mxu0 %v282
        %361 = vmatprep.subr.mxu0 %v285
        %362 = vmatpush1.msra.mxu0 %v284
        %363 = vmatprep.subr.mxu0 0.0
        %364 = vmatpush1.msra.mxu0 0.0
        %365 = vmatprep.subr.mxu0 0.0
        %366 = vmatpush1.msra.mxu0 0.0
        %367 = vmatprep.subr.mxu0 0.0
        %368 = vmatpush1.msra.mxu0 0.0
        %369 = vmatprep.subr.mxu0 0.0
        %370 = vmatpush1.msra.mxu0 0.0
        %371 = vmatprep.subr.mxu0 0.0
        %372 = vmatpush1.msra.mxu0 0.0
        %373 = vmatprep.subr.mxu0 0.0
        %374 = vmatpush1.msra.mxu0 0.0
        %375 = vmatprep.subr.mxu0 0.0
        %376 = vmatpush1.msra.mxu0 0.0
        %377 = vmatprep.subr.mxu0 0.0
        %378 = vmatpush1.msra.mxu0 0.0
        %379 = vmatprep.subr.mxu0 0.0
        %380 = vmatpush1.msra.mxu0 0.0
        %381 = vmatprep.subr.mxu0 0.0
        %382 = vmatpush1.msra.mxu0 0.0
        %383 = vmatprep.subr.mxu0 0.0
        %384 = vmatpush1.msra.mxu0 0.0
        %385 = vmatprep.subr.mxu0 0.0
        %386 = vmatpush1.msra.mxu0 0.0
        %387 = vmatprep.subr.mxu0 0.0
        %388 = vmatpush1.msra.mxu0 0.0
        %389 = vmatprep.subr.mxu0 0.0
        %390 = vmatpush1.msra.mxu0 0.0
        %391 = vmatprep.subr.mxu0 0.0
        %392 = vmatpush1.msra.mxu0 0.0
        %393 = vmatprep.subr.mxu0 0.0
        %394 = vmatpush1.msra.mxu0 0.0
        %395 = vmatprep.mubr.f32.mxu0 0.0
        %396 = vmatmul.mubr.f32.gmra.mrb[0].mxu0 %v246
        %v397 = vpop.f32.mrb[0].mxu0
        %v398 = vadd.f32 %v324, %v397
        %v399 = vpop.f32.mrb[0].mxu0
        %v400 = vadd.f32 %v328, %v399
        %401 = vmatprep.mubr.f32.mxu0 0.0
        %402 = vmatmul.mubr.f32.gmra.mrb[0].mxu0 %v248
        %v403 = vpop.f32.mrb[0].mxu0
        %v404 = vadd.f32 %v324, %v403
        %v405 = vpop.f32.mrb[0].mxu0
        %v406 = vadd.f32 %v328, %v405
        %407 = vmatprep.mubr.f32.mxu0 0.0
        %408 = vmatmul.mubr.f32.gmra.mrb[0].mxu0 %v250
        %v409 = vpop.f32.mrb[0].mxu0
        %v410 = vadd.f32 %v324, %v409
        %v411 = vpop.f32.mrb[0].mxu0
        %v412 = vadd.f32 %v328, %v411
        %413 = vmatprep.mubr.f32.mxu0 0.0
        %414 = vmatmul.mubr.f32.gmra.mrb[0].mxu0 %v252
        %v415 = vpop.f32.mrb[0].mxu0
        %v416 = vadd.f32 %v324, %v415
        %v417 = vpop.f32.mrb[0].mxu0
        %v418 = vadd.f32 %v328, %v417
        %419 = vdwg.mxu0
        %v420 = vmax.f32 %v398, 0.0
        %v421 = vmax.f32 %v400, 0.0
        %v422 = vmax.f32 %v404, 0.0
        %v423 = vmax.f32 %v406, 0.0
        %v424 = vmax.f32 %v410, 0.0
        %v425 = vmax.f32 %v412, 0.0
        %v426 = vmax.f32 %v416, 0.0
        %v427 = vmax.f32 %v418, 0.0
        %v429 = vlaneseq
        %v430 = vshrl.u32 %v429, 7
        %v431 = vsub.s32 0, %v430
        %v432 = vrot.slane %v319, %v431
        %434 = vmatprep.subr.mxu0 0.0
        %435 = vmatpush1.msra.mxu0 %v287
        %436 = vmatprep.subr.mxu0 0.0
        %437 = vmatpush1.msra.mxu0 %v288
        %438 = vmatprep.subr.mxu0 0.0
        %439 = vmatpush1.msra.mxu0 %v289
        %440 = vmatprep.subr.mxu0 0.0
        %441 = vmatpush1.msra.mxu0 %v290
        %442 = vmatprep.subr.mxu0 0.0
        %443 = vmatpush1.msra.mxu0 %v291
        %444 = vmatprep.subr.mxu0 0.0
        %445 = vmatpush1.msra.mxu0 %v292
        %446 = vmatprep.subr.mxu0 0.0
        %447 = vmatpush1.msra.mxu0 %v293
        %448 = vmatprep.subr.mxu0 0.0
        %449 = vmatpush1.msra.mxu0 %v294
        %450 = vmatprep.subr.mxu0 0.0
        %451 = vmatpush1.msra.mxu0 %v295
        %452 = vmatprep.subr.mxu0 0.0
        %453 = vmatpush1.msra.mxu0 %v296
        %454 = vmatprep.subr.mxu0 0.0
        %455 = vmatpush1.msra.mxu0 %v297
        %456 = vmatprep.subr.mxu0 0.0
        %457 = vmatpush1.msra.mxu0 %v298
        %458 = vmatprep.subr.mxu0 0.0
        %459 = vmatpush1.msra.mxu0 %v299
        %460 = vmatprep.subr.mxu0 0.0
        %461 = vmatpush1.msra.mxu0 %v300
        %462 = vmatprep.subr.mxu0 0.0
        %463 = vmatpush1.msra.mxu0 %v301
        %464 = vmatprep.subr.mxu0 0.0
        %465 = vmatpush1.msra.mxu0 %v302
        %466 = vmatprep.subr.mxu0 0.0
        %467 = vmatpush1.msra.mxu0 %v303
        %468 = vmatprep.subr.mxu0 0.0
        %469 = vmatpush1.msra.mxu0 %v304
        %470 = vmatprep.subr.mxu0 0.0
        %471 = vmatpush1.msra.mxu0 %v305
        %472 = vmatprep.subr.mxu0 0.0
        %473 = vmatpush1.msra.mxu0 %v306
        %474 = vmatprep.subr.mxu0 0.0
        %475 = vmatpush1.msra.mxu0 %v307
        %476 = vmatprep.subr.mxu0 0.0
        %477 = vmatpush1.msra.mxu0 %v308
        %478 = vmatprep.subr.mxu0 0.0
        %479 = vmatpush1.msra.mxu0 %v309
        %480 = vmatprep.subr.mxu0 0.0
        %481 = vmatpush1.msra.mxu0 %v310
        %482 = vmatprep.subr.mxu0 0.0
        %483 = vmatpush1.msra.mxu0 %v311
        %484 = vmatprep.subr.mxu0 0.0
        %485 = vmatpush1.msra.mxu0 %v312
        %486 = vmatprep.subr.mxu0 0.0
        %487 = vmatpush1.msra.mxu0 %v313
        %488 = vmatprep.subr.mxu0 0.0
        %489 = vmatpush1.msra.mxu0 %v314
        %490 = vmatprep.subr.mxu0 0.0
        %491 = vmatpush1.msra.mxu0 %v315
        %492 = vmatprep.subr.mxu0 0.0
        %493 = vmatpush1.msra.mxu0 %v316
        %494 = vmatprep.subr.mxu0 0.0
        %495 = vmatpush1.msra.mxu0 %v317
        %496 = vmatprep.subr.mxu0 0.0
        %497 = vmatpush1.msra.mxu0 %v318
        %498 = vmatprep.mubr.f32.mxu0 %v421
        %499 = vmatmul.mubr.f32.gmra.mrb[0].mxu0 %v420
        %v500 = vpop.f32.mrb[0].mxu0
        %v501 = vadd.f32 %v432, %v500
        %v502 = vpop.f32.mrb[0].mxu0
        %503 = vmatprep.mubr.f32.mxu0 %v423
        %504 = vmatmul.mubr.f32.gmra.mrb[0].mxu0 %v422
        %v505 = vpop.f32.mrb[0].mxu0
        %v506 = vadd.f32 %v432, %v505
        %v507 = vpop.f32.mrb[0].mxu0
        %508 = vmatprep.mubr.f32.mxu0 %v425
        %509 = vmatmul.mubr.f32.gmra.mrb[0].mxu0 %v424
        %v510 = vpop.f32.mrb[0].mxu0
        %v511 = vadd.f32 %v432, %v510
        %v512 = vpop.f32.mrb[0].mxu0
        %513 = vmatprep.mubr.f32.mxu0 %v427
        %514 = vmatmul.mubr.f32.gmra.mrb[0].mxu0 %v426
        %v515 = vpop.f32.mrb[0].mxu0
        %v516 = vadd.f32 %v432, %v515
        %v517 = vpop.f32.mrb[0].mxu0
        %518 = vdwg.mxu0
        %vm519 = vcmask 64512
        %v520 = vsel %vm519, %v501, -inf
        %521 = vmax.xlane.f32.xlu0 %v520
        %v522 = vpop.xlane.xlu0 %521
        %v523 = vsel %vm519, %v506, -inf
        %524 = vmax.xlane.f32.xlu0 %v523
        %v525 = vpop.xlane.xlu0 %524
        %v526 = vsel %vm519, %v511, -inf
        %527 = vmax.xlane.f32.xlu0 %v526
        %v528 = vpop.xlane.xlu0 %527
        %v529 = vsel %vm519, %v516, -inf
        %530 = vmax.xlane.f32.xlu0 %v529
        %v531 = vpop.xlane.xlu0 %530
        %v532 = vsub.f32 %v501, %v522
        %v533 = vsub.f32 %v506, %v525
        %v534 = vsub.f32 %v511, %v528
        %v535 = vsub.f32 %v516, %v531
        %v536 = vmul.f32 %v532, 1.442695
        %v537 = vpow.pop %v536
        %v538 = vmul.f32 %v533, 1.442695
        %v539 = vpow.pop %v538
        %v540 = vmul.f32 %v534, 1.442695
        %v541 = vpow.pop %v540
        %v542 = vmul.f32 %v535, 1.442695
        %v543 = vpow.pop %v542
        %v544 = vsel %vm519, %v537, 0.0
        %545 = vadd.xlane.f32.xlu0 %v544
        %v546 = vpop.xlane.xlu0 %545
        %v547 = vsel %vm519, %v539, 0.0
        %548 = vadd.xlane.f32.xlu0 %v547
        %v549 = vpop.xlane.xlu0 %548
        %v550 = vsel %vm519, %v541, 0.0
        %551 = vadd.xlane.f32.xlu0 %v550
        %v552 = vpop.xlane.xlu0 %551
        %v553 = vsel %vm519, %v543, 0.0
        %554 = vadd.xlane.f32.xlu0 %v553
        %v555 = vpop.xlane.xlu0 %554
        %v556 = vrcp.pop %v546
        %v557 = vmul.f32 %v537, %v556
        %v558 = vrcp.pop %v549
        %v559 = vmul.f32 %v539, %v558
        %v560 = vrcp.pop %v552
        %v561 = vmul.f32 %v541, %v560
        %v562 = vrcp.pop %v555
        %v563 = vmul.f32 %v543, %v562
        %565 = vset.pattern.permute.xlu0 0
        %566 = vperm.xlu0 %565, %v557
        %v567 = vpop.permute.xlu0 %566
        %570 = vset.pattern.permute.xlu0 0
        %571 = vperm.xlu0 %570, %v559
        %v572 = vpop.permute.xlu0 %571
        %575 = vset.pattern.permute.xlu0 0
        %576 = vperm.xlu0 %575, %v561
        %v577 = vpop.permute.xlu0 %576
        %580 = vset.pattern.permute.xlu0 0
        %581 = vperm.xlu0 %580, %v563
        %v582 = vpop.permute.xlu0 %581
        %v584 = vmul.f32 %v567, %v246
        %v585 = vmul.f32 %v572, %v248
        %v586 = vmul.f32 %v577, %v250
        %v587 = vmul.f32 %v582, %v252
        %588 = vset.pattern.permute.xlu0 1
        %589 = vperm.xlu0 %588, %v557
        %v590 = vpop.permute.xlu0 %589
        %592 = vset.pattern.permute.xlu0 1
        %593 = vperm.xlu0 %592, %v559
        %v594 = vpop.permute.xlu0 %593
        %596 = vset.pattern.permute.xlu0 1
        %597 = vperm.xlu0 %596, %v561
        %v598 = vpop.permute.xlu0 %597
        %600 = vset.pattern.permute.xlu0 1
        %601 = vperm.xlu0 %600, %v563
        %v602 = vpop.permute.xlu0 %601
        %v604 = vmul.f32 %v590, %v246
        %v605 = vmul.f32 %v594, %v248
        %v606 = vmul.f32 %v598, %v250
        %v607 = vmul.f32 %v602, %v252
        %612 = vrot.lane.b32.xlu0 %v604, 112
        %v613 = vpop.permute.xlu0 %612
        %614 = vrot.lane.b32.xlu0 %v605, 112
        %v615 = vpop.permute.xlu0 %614
        %616 = vrot.lane.b32.xlu0 %v606, 112
        %v617 = vpop.permute.xlu0 %616
        %618 = vrot.lane.b32.xlu0 %v607, 112
        %v619 = vpop.permute.xlu0 %618
        %v624 = vadd.f32 %v584, %v613
        %v625 = vadd.f32 %v585, %v615
        %v626 = vadd.f32 %v586, %v617
        %v627 = vadd.f32 %v587, %v619
        %628 = vset.pattern.permute.xlu0 2
        %629 = vperm.xlu0 %628, %v557
        %v630 = vpop.permute.xlu0 %629
        %632 = vset.pattern.permute.xlu0 2
        %633 = vperm.xlu0 %632, %v559
        %v634 = vpop.permute.xlu0 %633
        %636 = vset.pattern.permute.xlu0 2
        %637 = vperm.xlu0 %636, %v561
        %v638 = vpop.permute.xlu0 %637
        %640 = vset.pattern.permute.xlu0 2
        %641 = vperm.xlu0 %640, %v563
        %v642 = vpop.permute.xlu0 %641
        %v644 = vmul.f32 %v630, %v246
        %v645 = vmul.f32 %v634, %v248
        %v646 = vmul.f32 %v638, %v250
        %v647 = vmul.f32 %v642, %v252
        %652 = vrot.lane.b32.xlu0 %v644, 96
        %v653 = vpop.permute.xlu0 %652
        %654 = vrot.lane.b32.xlu0 %v645, 96
        %v655 = vpop.permute.xlu0 %654
        %656 = vrot.lane.b32.xlu0 %v646, 96
        %v657 = vpop.permute.xlu0 %656
        %658 = vrot.lane.b32.xlu0 %v647, 96
        %v659 = vpop.permute.xlu0 %658
        %v664 = vadd.f32 %v624, %v653
        %v665 = vadd.f32 %v625, %v655
        %v666 = vadd.f32 %v626, %v657
        %v667 = vadd.f32 %v627, %v659
        %668 = vset.pattern.permute.xlu0 3
        %669 = vperm.xlu0 %668, %v557
        %v670 = vpop.permute.xlu0 %669
        %672 = vset.pattern.permute.xlu0 3
        %673 = vperm.xlu0 %672, %v559
        %v674 = vpop.permute.xlu0 %673
        %676 = vset.pattern.permute.xlu0 3
        %677 = vperm.xlu0 %676, %v561
        %v678 = vpop.permute.xlu0 %677
        %680 = vset.pattern.permute.xlu0 3
        %681 = vperm.xlu0 %680, %v563
        %v682 = vpop.permute.xlu0 %681
        %v684 = vmul.f32 %v670, %v246
        %v685 = vmul.f32 %v674, %v248
        %v686 = vmul.f32 %v678, %v250
        %v687 = vmul.f32 %v682, %v252
        %692 = vrot.lane.b32.xlu0 %v684, 80
        %v693 = vpop.permute.xlu0 %692
        %694 = vrot.lane.b32.xlu0 %v685, 80
        %v695 = vpop.permute.xlu0 %694
        %696 = vrot.lane.b32.xlu0 %v686, 80
        %v697 = vpop.permute.xlu0 %696
        %698 = vrot.lane.b32.xlu0 %v687, 80
        %v699 = vpop.permute.xlu0 %698
        %v704 = vadd.f32 %v664, %v693
        %v705 = vadd.f32 %v665, %v695
        %v706 = vadd.f32 %v666, %v697
        %v707 = vadd.f32 %v667, %v699
        %708 = vset.pattern.permute.xlu0 4
        %709 = vperm.xlu0 %708, %v557
        %v710 = vpop.permute.xlu0 %709
        %712 = vset.pattern.permute.xlu0 4
        %713 = vperm.xlu0 %712, %v559
        %v714 = vpop.permute.xlu0 %713
        %716 = vset.pattern.permute.xlu0 4
        %717 = vperm.xlu0 %716, %v561
        %v718 = vpop.permute.xlu0 %717
        %720 = vset.pattern.permute.xlu0 4
        %721 = vperm.xlu0 %720, %v563
        %v722 = vpop.permute.xlu0 %721
        %v724 = vmul.f32 %v710, %v246
        %v725 = vmul.f32 %v714, %v248
        %v726 = vmul.f32 %v718, %v250
        %v727 = vmul.f32 %v722, %v252
        %732 = vrot.lane.b32.xlu0 %v724, 64
        %v733 = vpop.permute.xlu0 %732
        %734 = vrot.lane.b32.xlu0 %v725, 64
        %v735 = vpop.permute.xlu0 %734
        %736 = vrot.lane.b32.xlu0 %v726, 64
        %v737 = vpop.permute.xlu0 %736
        %738 = vrot.lane.b32.xlu0 %v727, 64
        %v739 = vpop.permute.xlu0 %738
        %v744 = vadd.f32 %v704, %v733
        %v745 = vadd.f32 %v705, %v735
        %v746 = vadd.f32 %v706, %v737
        %v747 = vadd.f32 %v707, %v739
        %748 = vset.pattern.permute.xlu0 5
        %749 = vperm.xlu0 %748, %v557
        %v750 = vpop.permute.xlu0 %749
        %752 = vset.pattern.permute.xlu0 5
        %753 = vperm.xlu0 %752, %v559
        %v754 = vpop.permute.xlu0 %753
        %756 = vset.pattern.permute.xlu0 5
        %757 = vperm.xlu0 %756, %v561
        %v758 = vpop.permute.xlu0 %757
        %760 = vset.pattern.permute.xlu0 5
        %761 = vperm.xlu0 %760, %v563
        %v762 = vpop.permute.xlu0 %761
        %v764 = vmul.f32 %v750, %v246
        %v765 = vmul.f32 %v754, %v248
        %v766 = vmul.f32 %v758, %v250
        %v767 = vmul.f32 %v762, %v252
        %772 = vrot.lane.b32.xlu0 %v764, 48
        %v773 = vpop.permute.xlu0 %772
        %774 = vrot.lane.b32.xlu0 %v765, 48
        %v775 = vpop.permute.xlu0 %774
        %776 = vrot.lane.b32.xlu0 %v766, 48
        %v777 = vpop.permute.xlu0 %776
        %778 = vrot.lane.b32.xlu0 %v767, 48
        %v779 = vpop.permute.xlu0 %778
        %v784 = vadd.f32 %v744, %v773
        %v785 = vadd.f32 %v745, %v775
        %v786 = vadd.f32 %v746, %v777
        %v787 = vadd.f32 %v747, %v779
        %788 = vset.pattern.permute.xlu0 6
        %789 = vperm.xlu0 %788, %v557
        %v790 = vpop.permute.xlu0 %789
        %792 = vset.pattern.permute.xlu0 6
        %793 = vperm.xlu0 %792, %v559
        %v794 = vpop.permute.xlu0 %793
        %796 = vset.pattern.permute.xlu0 6
        %797 = vperm.xlu0 %796, %v561
        %v798 = vpop.permute.xlu0 %797
        %800 = vset.pattern.permute.xlu0 6
        %801 = vperm.xlu0 %800, %v563
        %v802 = vpop.permute.xlu0 %801
        %v804 = vmul.f32 %v790, %v246
        %v805 = vmul.f32 %v794, %v248
        %v806 = vmul.f32 %v798, %v250
        %v807 = vmul.f32 %v802, %v252
        %812 = vrot.lane.b32.xlu0 %v804, 32
        %v813 = vpop.permute.xlu0 %812
        %814 = vrot.lane.b32.xlu0 %v805, 32
        %v815 = vpop.permute.xlu0 %814
        %816 = vrot.lane.b32.xlu0 %v806, 32
        %v817 = vpop.permute.xlu0 %816
        %818 = vrot.lane.b32.xlu0 %v807, 32
        %v819 = vpop.permute.xlu0 %818
        %v824 = vadd.f32 %v784, %v813
        %v825 = vadd.f32 %v785, %v815
        %v826 = vadd.f32 %v786, %v817
        %v827 = vadd.f32 %v787, %v819
        %828 = vset.pattern.permute.xlu0 7
        %829 = vperm.xlu0 %828, %v557
        %v830 = vpop.permute.xlu0 %829
        %832 = vset.pattern.permute.xlu0 7
        %833 = vperm.xlu0 %832, %v559
        %v834 = vpop.permute.xlu0 %833
        %836 = vset.pattern.permute.xlu0 7
        %837 = vperm.xlu0 %836, %v561
        %v838 = vpop.permute.xlu0 %837
        %840 = vset.pattern.permute.xlu0 7
        %841 = vperm.xlu0 %840, %v563
        %v842 = vpop.permute.xlu0 %841
        %v844 = vmul.f32 %v830, %v246
        %v845 = vmul.f32 %v834, %v248
        %v846 = vmul.f32 %v838, %v250
        %v847 = vmul.f32 %v842, %v252
        %852 = vrot.lane.b32.xlu0 %v844, 16
        %v853 = vpop.permute.xlu0 %852
        %854 = vrot.lane.b32.xlu0 %v845, 16
        %v855 = vpop.permute.xlu0 %854
        %856 = vrot.lane.b32.xlu0 %v846, 16
        %v857 = vpop.permute.xlu0 %856
        %858 = vrot.lane.b32.xlu0 %v847, 16
        %v859 = vpop.permute.xlu0 %858
        %v864 = vadd.f32 %v824, %v853
        %v865 = vadd.f32 %v825, %v855
        %v866 = vadd.f32 %v826, %v857
        %v867 = vadd.f32 %v827, %v859
        %vm868 = vcmask 130112
        %v869 = vsel %vm868, %v501, -inf
        %870 = vmax.xlane.f32.xlu0 %v869
        %v871 = vpop.xlane.xlu0 %870
        %v872 = vsel %vm868, %v506, -inf
        %873 = vmax.xlane.f32.xlu0 %v872
        %v874 = vpop.xlane.xlu0 %873
        %v875 = vsel %vm868, %v511, -inf
        %876 = vmax.xlane.f32.xlu0 %v875
        %v877 = vpop.xlane.xlu0 %876
        %v878 = vsel %vm868, %v516, -inf
        %879 = vmax.xlane.f32.xlu0 %v878
        %v880 = vpop.xlane.xlu0 %879
        %v881 = vsub.f32 %v501, %v871
        %v882 = vsub.f32 %v506, %v874
        %v883 = vsub.f32 %v511, %v877
        %v884 = vsub.f32 %v516, %v880
        %v885 = vmul.f32 %v881, 1.442695
        %v886 = vpow.pop %v885
        %v887 = vmul.f32 %v882, 1.442695
        %v888 = vpow.pop %v887
        %v889 = vmul.f32 %v883, 1.442695
        %v890 = vpow.pop %v889
        %v891 = vmul.f32 %v884, 1.442695
        %v892 = vpow.pop %v891
        %897 = vrot.lane.b32.xlu0 %v886, 120
        %v898 = vpop.permute.xlu0 %897
        %899 = vrot.lane.b32.xlu0 %v888, 120
        %v900 = vpop.permute.xlu0 %899
        %901 = vrot.lane.b32.xlu0 %v890, 120
        %v902 = vpop.permute.xlu0 %901
        %903 = vrot.lane.b32.xlu0 %v892, 120
        %v904 = vpop.permute.xlu0 %903
        %v909 = vsel %vm519, %v898, 0.0
        %910 = vadd.xlane.f32.xlu0 %v909
        %v911 = vpop.xlane.xlu0 %910
        %v912 = vsel %vm519, %v900, 0.0
        %913 = vadd.xlane.f32.xlu0 %v912
        %v914 = vpop.xlane.xlu0 %913
        %v915 = vsel %vm519, %v902, 0.0
        %916 = vadd.xlane.f32.xlu0 %v915
        %v917 = vpop.xlane.xlu0 %916
        %v918 = vsel %vm519, %v904, 0.0
        %919 = vadd.xlane.f32.xlu0 %v918
        %v920 = vpop.xlane.xlu0 %919
        %v921 = vrcp.pop %v911
        %v922 = vmul.f32 %v886, %v921
        %v923 = vrcp.pop %v914
        %v924 = vmul.f32 %v888, %v923
        %v925 = vrcp.pop %v917
        %v926 = vmul.f32 %v890, %v925
        %v927 = vrcp.pop %v920
        %v928 = vmul.f32 %v892, %v927
        %930 = vset.pattern.permute.xlu0 8
        %931 = vperm.xlu0 %930, %v922
        %v932 = vpop.permute.xlu0 %931
        %935 = vset.pattern.permute.xlu0 8
        %936 = vperm.xlu0 %935, %v924
        %v937 = vpop.permute.xlu0 %936
        %940 = vset.pattern.permute.xlu0 8
        %941 = vperm.xlu0 %940, %v926
        %v942 = vpop.permute.xlu0 %941
        %945 = vset.pattern.permute.xlu0 8
        %946 = vperm.xlu0 %945, %v928
        %v947 = vpop.permute.xlu0 %946
        %v949 = vmul.f32 %v932, %v246
        %v950 = vmul.f32 %v937, %v248
        %v951 = vmul.f32 %v942, %v250
        %v952 = vmul.f32 %v947, %v252
        %953 = vset.pattern.permute.xlu0 9
        %954 = vperm.xlu0 %953, %v922
        %v955 = vpop.permute.xlu0 %954
        %957 = vset.pattern.permute.xlu0 9
        %958 = vperm.xlu0 %957, %v924
        %v959 = vpop.permute.xlu0 %958
        %961 = vset.pattern.permute.xlu0 9
        %962 = vperm.xlu0 %961, %v926
        %v963 = vpop.permute.xlu0 %962
        %965 = vset.pattern.permute.xlu0 9
        %966 = vperm.xlu0 %965, %v928
        %v967 = vpop.permute.xlu0 %966
        %v969 = vmul.f32 %v955, %v246
        %v970 = vmul.f32 %v959, %v248
        %v971 = vmul.f32 %v963, %v250
        %v972 = vmul.f32 %v967, %v252
        %977 = vrot.lane.b32.xlu0 %v969, 112
        %v978 = vpop.permute.xlu0 %977
        %979 = vrot.lane.b32.xlu0 %v970, 112
        %v980 = vpop.permute.xlu0 %979
        %981 = vrot.lane.b32.xlu0 %v971, 112
        %v982 = vpop.permute.xlu0 %981
        %983 = vrot.lane.b32.xlu0 %v972, 112
        %v984 = vpop.permute.xlu0 %983
        %v989 = vadd.f32 %v949, %v978
        %v990 = vadd.f32 %v950, %v980
        %v991 = vadd.f32 %v951, %v982
        %v992 = vadd.f32 %v952, %v984
        %993 = vset.pattern.permute.xlu0 10
        %994 = vperm.xlu0 %993, %v922
        %v995 = vpop.permute.xlu0 %994
        %997 = vset.pattern.permute.xlu0 10
        %998 = vperm.xlu0 %997, %v924
        %v999 = vpop.permute.xlu0 %998
        %1001 = vset.pattern.permute.xlu0 10
        %1002 = vperm.xlu0 %1001, %v926
        %v1003 = vpop.permute.xlu0 %1002
        %1005 = vset.pattern.permute.xlu0 10
        %1006 = vperm.xlu0 %1005, %v928
        %v1007 = vpop.permute.xlu0 %1006
        %v1009 = vmul.f32 %v995, %v246
        %v1010 = vmul.f32 %v999, %v248
        %v1011 = vmul.f32 %v1003, %v250
        %v1012 = vmul.f32 %v1007, %v252
        %1017 = vrot.lane.b32.xlu0 %v1009, 96
        %v1018 = vpop.permute.xlu0 %1017
        %1019 = vrot.lane.b32.xlu0 %v1010, 96
        %v1020 = vpop.permute.xlu0 %1019
        %1021 = vrot.lane.b32.xlu0 %v1011, 96
        %v1022 = vpop.permute.xlu0 %1021
        %1023 = vrot.lane.b32.xlu0 %v1012, 96
        %v1024 = vpop.permute.xlu0 %1023
        %v1029 = vadd.f32 %v989, %v1018
        %v1030 = vadd.f32 %v990, %v1020
        %v1031 = vadd.f32 %v991, %v1022
        %v1032 = vadd.f32 %v992, %v1024
        %1033 = vset.pattern.permute.xlu0 11
        %1034 = vperm.xlu0 %1033, %v922
        %v1035 = vpop.permute.xlu0 %1034
        %1037 = vset.pattern.permute.xlu0 11
        %1038 = vperm.xlu0 %1037, %v924
        %v1039 = vpop.permute.xlu0 %1038
        %1041 = vset.pattern.permute.xlu0 11
        %1042 = vperm.xlu0 %1041, %v926
        %v1043 = vpop.permute.xlu0 %1042
        %1045 = vset.pattern.permute.xlu0 11
        %1046 = vperm.xlu0 %1045, %v928
        %v1047 = vpop.permute.xlu0 %1046
        %v1049 = vmul.f32 %v1035, %v246
        %v1050 = vmul.f32 %v1039, %v248
        %v1051 = vmul.f32 %v1043, %v250
        %v1052 = vmul.f32 %v1047, %v252
        %1057 = vrot.lane.b32.xlu0 %v1049, 80
        %v1058 = vpop.permute.xlu0 %1057
        %1059 = vrot.lane.b32.xlu0 %v1050, 80
        %v1060 = vpop.permute.xlu0 %1059
        %1061 = vrot.lane.b32.xlu0 %v1051, 80
        %v1062 = vpop.permute.xlu0 %1061
        %1063 = vrot.lane.b32.xlu0 %v1052, 80
        %v1064 = vpop.permute.xlu0 %1063
        %v1069 = vadd.f32 %v1029, %v1058
        %v1070 = vadd.f32 %v1030, %v1060
        %v1071 = vadd.f32 %v1031, %v1062
        %v1072 = vadd.f32 %v1032, %v1064
        %1073 = vset.pattern.permute.xlu0 12
        %1074 = vperm.xlu0 %1073, %v922
        %v1075 = vpop.permute.xlu0 %1074
        %1077 = vset.pattern.permute.xlu0 12
        %1078 = vperm.xlu0 %1077, %v924
        %v1079 = vpop.permute.xlu0 %1078
        %1081 = vset.pattern.permute.xlu0 12
        %1082 = vperm.xlu0 %1081, %v926
        %v1083 = vpop.permute.xlu0 %1082
        %1085 = vset.pattern.permute.xlu0 12
        %1086 = vperm.xlu0 %1085, %v928
        %v1087 = vpop.permute.xlu0 %1086
        %v1089 = vmul.f32 %v1075, %v246
        %v1090 = vmul.f32 %v1079, %v248
        %v1091 = vmul.f32 %v1083, %v250
        %v1092 = vmul.f32 %v1087, %v252
        %1097 = vrot.lane.b32.xlu0 %v1089, 64
        %v1098 = vpop.permute.xlu0 %1097
        %1099 = vrot.lane.b32.xlu0 %v1090, 64
        %v1100 = vpop.permute.xlu0 %1099
        %1101 = vrot.lane.b32.xlu0 %v1091, 64
        %v1102 = vpop.permute.xlu0 %1101
        %1103 = vrot.lane.b32.xlu0 %v1092, 64
        %v1104 = vpop.permute.xlu0 %1103
        %v1109 = vadd.f32 %v1069, %v1098
        %v1110 = vadd.f32 %v1070, %v1100
        %v1111 = vadd.f32 %v1071, %v1102
        %v1112 = vadd.f32 %v1072, %v1104
        %1113 = vset.pattern.permute.xlu0 13
        %1114 = vperm.xlu0 %1113, %v922
        %v1115 = vpop.permute.xlu0 %1114
        %1117 = vset.pattern.permute.xlu0 13
        %1118 = vperm.xlu0 %1117, %v924
        %v1119 = vpop.permute.xlu0 %1118
        %1121 = vset.pattern.permute.xlu0 13
        %1122 = vperm.xlu0 %1121, %v926
        %v1123 = vpop.permute.xlu0 %1122
        %1125 = vset.pattern.permute.xlu0 13
        %1126 = vperm.xlu0 %1125, %v928
        %v1127 = vpop.permute.xlu0 %1126
        %v1129 = vmul.f32 %v1115, %v246
        %v1130 = vmul.f32 %v1119, %v248
        %v1131 = vmul.f32 %v1123, %v250
        %v1132 = vmul.f32 %v1127, %v252
        %1137 = vrot.lane.b32.xlu0 %v1129, 48
        %v1138 = vpop.permute.xlu0 %1137
        %1139 = vrot.lane.b32.xlu0 %v1130, 48
        %v1140 = vpop.permute.xlu0 %1139
        %1141 = vrot.lane.b32.xlu0 %v1131, 48
        %v1142 = vpop.permute.xlu0 %1141
        %1143 = vrot.lane.b32.xlu0 %v1132, 48
        %v1144 = vpop.permute.xlu0 %1143
        %v1149 = vadd.f32 %v1109, %v1138
        %v1150 = vadd.f32 %v1110, %v1140
        %v1151 = vadd.f32 %v1111, %v1142
        %v1152 = vadd.f32 %v1112, %v1144
        %1153 = vset.pattern.permute.xlu0 14
        %1154 = vperm.xlu0 %1153, %v922
        %v1155 = vpop.permute.xlu0 %1154
        %1157 = vset.pattern.permute.xlu0 14
        %1158 = vperm.xlu0 %1157, %v924
        %v1159 = vpop.permute.xlu0 %1158
        %1161 = vset.pattern.permute.xlu0 14
        %1162 = vperm.xlu0 %1161, %v926
        %v1163 = vpop.permute.xlu0 %1162
        %1165 = vset.pattern.permute.xlu0 14
        %1166 = vperm.xlu0 %1165, %v928
        %v1167 = vpop.permute.xlu0 %1166
        %v1169 = vmul.f32 %v1155, %v246
        %v1170 = vmul.f32 %v1159, %v248
        %v1171 = vmul.f32 %v1163, %v250
        %v1172 = vmul.f32 %v1167, %v252
        %1177 = vrot.lane.b32.xlu0 %v1169, 32
        %v1178 = vpop.permute.xlu0 %1177
        %1179 = vrot.lane.b32.xlu0 %v1170, 32
        %v1180 = vpop.permute.xlu0 %1179
        %1181 = vrot.lane.b32.xlu0 %v1171, 32
        %v1182 = vpop.permute.xlu0 %1181
        %1183 = vrot.lane.b32.xlu0 %v1172, 32
        %v1184 = vpop.permute.xlu0 %1183
        %v1189 = vadd.f32 %v1149, %v1178
        %v1190 = vadd.f32 %v1150, %v1180
        %v1191 = vadd.f32 %v1151, %v1182
        %v1192 = vadd.f32 %v1152, %v1184
        %1193 = vset.pattern.permute.xlu0 15
        %1194 = vperm.xlu0 %1193, %v922
        %v1195 = vpop.permute.xlu0 %1194
        %1197 = vset.pattern.permute.xlu0 15
        %1198 = vperm.xlu0 %1197, %v924
        %v1199 = vpop.permute.xlu0 %1198
        %1201 = vset.pattern.permute.xlu0 15
        %1202 = vperm.xlu0 %1201, %v926
        %v1203 = vpop.permute.xlu0 %1202
        %1205 = vset.pattern.permute.xlu0 15
        %1206 = vperm.xlu0 %1205, %v928
        %v1207 = vpop.permute.xlu0 %1206
        %v1209 = vmul.f32 %v1195, %v246
        %v1210 = vmul.f32 %v1199, %v248
        %v1211 = vmul.f32 %v1203, %v250
        %v1212 = vmul.f32 %v1207, %v252
        %1217 = vrot.lane.b32.xlu0 %v1209, 16
        %v1218 = vpop.permute.xlu0 %1217
        %1219 = vrot.lane.b32.xlu0 %v1210, 16
        %v1220 = vpop.permute.xlu0 %1219
        %1221 = vrot.lane.b32.xlu0 %v1211, 16
        %v1222 = vpop.permute.xlu0 %1221
        %1223 = vrot.lane.b32.xlu0 %v1212, 16
        %v1224 = vpop.permute.xlu0 %1223
        %v1229 = vadd.f32 %v1189, %v1218
        %v1230 = vadd.f32 %v1190, %v1220
        %v1231 = vadd.f32 %v1191, %v1222
        %v1232 = vadd.f32 %v1192, %v1224
        %vm1233 = vcmask 195712
        %v1234 = vsel %vm1233, %v501, -inf
        %1235 = vmax.xlane.f32.xlu0 %v1234
        %v1236 = vpop.xlane.xlu0 %1235
        %v1237 = vsel %vm1233, %v506, -inf
        %1238 = vmax.xlane.f32.xlu0 %v1237
        %v1239 = vpop.xlane.xlu0 %1238
        %v1240 = vsel %vm1233, %v511, -inf
        %1241 = vmax.xlane.f32.xlu0 %v1240
        %v1242 = vpop.xlane.xlu0 %1241
        %v1243 = vsel %vm1233, %v516, -inf
        %1244 = vmax.xlane.f32.xlu0 %v1243
        %v1245 = vpop.xlane.xlu0 %1244
        %v1246 = vsub.f32 %v501, %v1236
        %v1247 = vsub.f32 %v506, %v1239
        %v1248 = vsub.f32 %v511, %v1242
        %v1249 = vsub.f32 %v516, %v1245
        %v1250 = vmul.f32 %v1246, 1.442695
        %v1251 = vpow.pop %v1250
        %v1252 = vmul.f32 %v1247, 1.442695
        %v1253 = vpow.pop %v1252
        %v1254 = vmul.f32 %v1248, 1.442695
        %v1255 = vpow.pop %v1254
        %v1256 = vmul.f32 %v1249, 1.442695
        %v1257 = vpow.pop %v1256
        %1262 = vrot.lane.b32.xlu0 %v1251, 112
        %v1263 = vpop.permute.xlu0 %1262
        %1264 = vrot.lane.b32.xlu0 %v1253, 112
        %v1265 = vpop.permute.xlu0 %1264
        %1266 = vrot.lane.b32.xlu0 %v1255, 112
        %v1267 = vpop.permute.xlu0 %1266
        %1268 = vrot.lane.b32.xlu0 %v1257, 112
        %v1269 = vpop.permute.xlu0 %1268
        %v1274 = vsel %vm519, %v1263, 0.0
        %1275 = vadd.xlane.f32.xlu0 %v1274
        %v1276 = vpop.xlane.xlu0 %1275
        %v1277 = vsel %vm519, %v1265, 0.0
        %1278 = vadd.xlane.f32.xlu0 %v1277
        %v1279 = vpop.xlane.xlu0 %1278
        %v1280 = vsel %vm519, %v1267, 0.0
        %1281 = vadd.xlane.f32.xlu0 %v1280
        %v1282 = vpop.xlane.xlu0 %1281
        %v1283 = vsel %vm519, %v1269, 0.0
        %1284 = vadd.xlane.f32.xlu0 %v1283
        %v1285 = vpop.xlane.xlu0 %1284
        %v1286 = vrcp.pop %v1276
        %v1287 = vmul.f32 %v1251, %v1286
        %v1288 = vrcp.pop %v1279
        %v1289 = vmul.f32 %v1253, %v1288
        %v1290 = vrcp.pop %v1282
        %v1291 = vmul.f32 %v1255, %v1290
        %v1292 = vrcp.pop %v1285
        %v1293 = vmul.f32 %v1257, %v1292
        %1295 = vset.pattern.permute.xlu0 16
        %1296 = vperm.xlu0 %1295, %v1287
        %v1297 = vpop.permute.xlu0 %1296
        %1300 = vset.pattern.permute.xlu0 16
        %1301 = vperm.xlu0 %1300, %v1289
        %v1302 = vpop.permute.xlu0 %1301
        %1305 = vset.pattern.permute.xlu0 16
        %1306 = vperm.xlu0 %1305, %v1291
        %v1307 = vpop.permute.xlu0 %1306
        %1310 = vset.pattern.permute.xlu0 16
        %1311 = vperm.xlu0 %1310, %v1293
        %v1312 = vpop.permute.xlu0 %1311
        %v1314 = vmul.f32 %v1297, %v246
        %v1315 = vmul.f32 %v1302, %v248
        %v1316 = vmul.f32 %v1307, %v250
        %v1317 = vmul.f32 %v1312, %v252
        %1318 = vset.pattern.permute.xlu0 17
        %1319 = vperm.xlu0 %1318, %v1287
        %v1320 = vpop.permute.xlu0 %1319
        %1322 = vset.pattern.permute.xlu0 17
        %1323 = vperm.xlu0 %1322, %v1289
        %v1324 = vpop.permute.xlu0 %1323
        %1326 = vset.pattern.permute.xlu0 17
        %1327 = vperm.xlu0 %1326, %v1291
        %v1328 = vpop.permute.xlu0 %1327
        %1330 = vset.pattern.permute.xlu0 17
        %1331 = vperm.xlu0 %1330, %v1293
        %v1332 = vpop.permute.xlu0 %1331
        %v1334 = vmul.f32 %v1320, %v246
        %v1335 = vmul.f32 %v1324, %v248
        %v1336 = vmul.f32 %v1328, %v250
        %v1337 = vmul.f32 %v1332, %v252
        %1342 = vrot.lane.b32.xlu0 %v1334, 112
        %v1343 = vpop.permute.xlu0 %1342
        %1344 = vrot.lane.b32.xlu0 %v1335, 112
        %v1345 = vpop.permute.xlu0 %1344
        %1346 = vrot.lane.b32.xlu0 %v1336, 112
        %v1347 = vpop.permute.xlu0 %1346
        %1348 = vrot.lane.b32.xlu0 %v1337, 112
        %v1349 = vpop.permute.xlu0 %1348
        %v1354 = vadd.f32 %v1314, %v1343
        %v1355 = vadd.f32 %v1315, %v1345
        %v1356 = vadd.f32 %v1316, %v1347
        %v1357 = vadd.f32 %v1317, %v1349
        %1358 = vset.pattern.permute.xlu0 18
        %1359 = vperm.xlu0 %1358, %v1287
        %v1360 = vpop.permute.xlu0 %1359
        %1362 = vset.pattern.permute.xlu0 18
        %1363 = vperm.xlu0 %1362, %v1289
        %v1364 = vpop.permute.xlu0 %1363
        %1366 = vset.pattern.permute.xlu0 18
        %1367 = vperm.xlu0 %1366, %v1291
        %v1368 = vpop.permute.xlu0 %1367
        %1370 = vset.pattern.permute.xlu0 18
        %1371 = vperm.xlu0 %1370, %v1293
        %v1372 = vpop.permute.xlu0 %1371
        %v1374 = vmul.f32 %v1360, %v246
        %v1375 = vmul.f32 %v1364, %v248
        %v1376 = vmul.f32 %v1368, %v250
        %v1377 = vmul.f32 %v1372, %v252
        %1382 = vrot.lane.b32.xlu0 %v1374, 96
        %v1383 = vpop.permute.xlu0 %1382
        %1384 = vrot.lane.b32.xlu0 %v1375, 96
        %v1385 = vpop.permute.xlu0 %1384
        %1386 = vrot.lane.b32.xlu0 %v1376, 96
        %v1387 = vpop.permute.xlu0 %1386
        %1388 = vrot.lane.b32.xlu0 %v1377, 96
        %v1389 = vpop.permute.xlu0 %1388
        %v1394 = vadd.f32 %v1354, %v1383
        %v1395 = vadd.f32 %v1355, %v1385
        %v1396 = vadd.f32 %v1356, %v1387
        %v1397 = vadd.f32 %v1357, %v1389
        %1398 = vset.pattern.permute.xlu0 19
        %1399 = vperm.xlu0 %1398, %v1287
        %v1400 = vpop.permute.xlu0 %1399
        %1402 = vset.pattern.permute.xlu0 19
        %1403 = vperm.xlu0 %1402, %v1289
        %v1404 = vpop.permute.xlu0 %1403
        %1406 = vset.pattern.permute.xlu0 19
        %1407 = vperm.xlu0 %1406, %v1291
        %v1408 = vpop.permute.xlu0 %1407
        %1410 = vset.pattern.permute.xlu0 19
        %1411 = vperm.xlu0 %1410, %v1293
        %v1412 = vpop.permute.xlu0 %1411
        %v1414 = vmul.f32 %v1400, %v246
        %v1415 = vmul.f32 %v1404, %v248
        %v1416 = vmul.f32 %v1408, %v250
        %v1417 = vmul.f32 %v1412, %v252
        %1422 = vrot.lane.b32.xlu0 %v1414, 80
        %v1423 = vpop.permute.xlu0 %1422
        %1424 = vrot.lane.b32.xlu0 %v1415, 80
        %v1425 = vpop.permute.xlu0 %1424
        %1426 = vrot.lane.b32.xlu0 %v1416, 80
        %v1427 = vpop.permute.xlu0 %1426
        %1428 = vrot.lane.b32.xlu0 %v1417, 80
        %v1429 = vpop.permute.xlu0 %1428
        %v1434 = vadd.f32 %v1394, %v1423
        %v1435 = vadd.f32 %v1395, %v1425
        %v1436 = vadd.f32 %v1396, %v1427
        %v1437 = vadd.f32 %v1397, %v1429
        %1438 = vset.pattern.permute.xlu0 20
        %1439 = vperm.xlu0 %1438, %v1287
        %v1440 = vpop.permute.xlu0 %1439
        %1442 = vset.pattern.permute.xlu0 20
        %1443 = vperm.xlu0 %1442, %v1289
        %v1444 = vpop.permute.xlu0 %1443
        %1446 = vset.pattern.permute.xlu0 20
        %1447 = vperm.xlu0 %1446, %v1291
        %v1448 = vpop.permute.xlu0 %1447
        %1450 = vset.pattern.permute.xlu0 20
        %1451 = vperm.xlu0 %1450, %v1293
        %v1452 = vpop.permute.xlu0 %1451
        %v1454 = vmul.f32 %v1440, %v246
        %v1455 = vmul.f32 %v1444, %v248
        %v1456 = vmul.f32 %v1448, %v250
        %v1457 = vmul.f32 %v1452, %v252
        %1462 = vrot.lane.b32.xlu0 %v1454, 64
        %v1463 = vpop.permute.xlu0 %1462
        %1464 = vrot.lane.b32.xlu0 %v1455, 64
        %v1465 = vpop.permute.xlu0 %1464
        %1466 = vrot.lane.b32.xlu0 %v1456, 64
        %v1467 = vpop.permute.xlu0 %1466
        %1468 = vrot.lane.b32.xlu0 %v1457, 64
        %v1469 = vpop.permute.xlu0 %1468
        %v1474 = vadd.f32 %v1434, %v1463
        %v1475 = vadd.f32 %v1435, %v1465
        %v1476 = vadd.f32 %v1436, %v1467
        %v1477 = vadd.f32 %v1437, %v1469
        %1478 = vset.pattern.permute.xlu0 21
        %1479 = vperm.xlu0 %1478, %v1287
        %v1480 = vpop.permute.xlu0 %1479
        %1482 = vset.pattern.permute.xlu0 21
        %1483 = vperm.xlu0 %1482, %v1289
        %v1484 = vpop.permute.xlu0 %1483
        %1486 = vset.pattern.permute.xlu0 21
        %1487 = vperm.xlu0 %1486, %v1291
        %v1488 = vpop.permute.xlu0 %1487
        %1490 = vset.pattern.permute.xlu0 21
        %1491 = vperm.xlu0 %1490, %v1293
        %v1492 = vpop.permute.xlu0 %1491
        %v1494 = vmul.f32 %v1480, %v246
        %v1495 = vmul.f32 %v1484, %v248
        %v1496 = vmul.f32 %v1488, %v250
        %v1497 = vmul.f32 %v1492, %v252
        %1502 = vrot.lane.b32.xlu0 %v1494, 48
        %v1503 = vpop.permute.xlu0 %1502
        %1504 = vrot.lane.b32.xlu0 %v1495, 48
        %v1505 = vpop.permute.xlu0 %1504
        %1506 = vrot.lane.b32.xlu0 %v1496, 48
        %v1507 = vpop.permute.xlu0 %1506
        %1508 = vrot.lane.b32.xlu0 %v1497, 48
        %v1509 = vpop.permute.xlu0 %1508
        %v1514 = vadd.f32 %v1474, %v1503
        %v1515 = vadd.f32 %v1475, %v1505
        %v1516 = vadd.f32 %v1476, %v1507
        %v1517 = vadd.f32 %v1477, %v1509
        %1518 = vset.pattern.permute.xlu0 22
        %1519 = vperm.xlu0 %1518, %v1287
        %v1520 = vpop.permute.xlu0 %1519
        %1522 = vset.pattern.permute.xlu0 22
        %1523 = vperm.xlu0 %1522, %v1289
        %v1524 = vpop.permute.xlu0 %1523
        %1526 = vset.pattern.permute.xlu0 22
        %1527 = vperm.xlu0 %1526, %v1291
        %v1528 = vpop.permute.xlu0 %1527
        %1530 = vset.pattern.permute.xlu0 22
        %1531 = vperm.xlu0 %1530, %v1293
        %v1532 = vpop.permute.xlu0 %1531
        %v1534 = vmul.f32 %v1520, %v246
        %v1535 = vmul.f32 %v1524, %v248
        %v1536 = vmul.f32 %v1528, %v250
        %v1537 = vmul.f32 %v1532, %v252
        %1542 = vrot.lane.b32.xlu0 %v1534, 32
        %v1543 = vpop.permute.xlu0 %1542
        %1544 = vrot.lane.b32.xlu0 %v1535, 32
        %v1545 = vpop.permute.xlu0 %1544
        %1546 = vrot.lane.b32.xlu0 %v1536, 32
        %v1547 = vpop.permute.xlu0 %1546
        %1548 = vrot.lane.b32.xlu0 %v1537, 32
        %v1549 = vpop.permute.xlu0 %1548
        %v1554 = vadd.f32 %v1514, %v1543
        %v1555 = vadd.f32 %v1515, %v1545
        %v1556 = vadd.f32 %v1516, %v1547
        %v1557 = vadd.f32 %v1517, %v1549
        %1558 = vset.pattern.permute.xlu0 23
        %1559 = vperm.xlu0 %1558, %v1287
        %v1560 = vpop.permute.xlu0 %1559
        %1562 = vset.pattern.permute.xlu0 23
        %1563 = vperm.xlu0 %1562, %v1289
        %v1564 = vpop.permute.xlu0 %1563
        %1566 = vset.pattern.permute.xlu0 23
        %1567 = vperm.xlu0 %1566, %v1291
        %v1568 = vpop.permute.xlu0 %1567
        %1570 = vset.pattern.permute.xlu0 23
        %1571 = vperm.xlu0 %1570, %v1293
        %v1572 = vpop.permute.xlu0 %1571
        %v1574 = vmul.f32 %v1560, %v246
        %v1575 = vmul.f32 %v1564, %v248
        %v1576 = vmul.f32 %v1568, %v250
        %v1577 = vmul.f32 %v1572, %v252
        %1582 = vrot.lane.b32.xlu0 %v1574, 16
        %v1583 = vpop.permute.xlu0 %1582
        %1584 = vrot.lane.b32.xlu0 %v1575, 16
        %v1585 = vpop.permute.xlu0 %1584
        %1586 = vrot.lane.b32.xlu0 %v1576, 16
        %v1587 = vpop.permute.xlu0 %1586
        %1588 = vrot.lane.b32.xlu0 %v1577, 16
        %v1589 = vpop.permute.xlu0 %1588
        %v1594 = vadd.f32 %v1554, %v1583
        %v1595 = vadd.f32 %v1555, %v1585
        %v1596 = vadd.f32 %v1556, %v1587
        %v1597 = vadd.f32 %v1557, %v1589
        %vm1598 = vcmask 261312
        %v1599 = vsel %vm1598, %v501, -inf
        %1600 = vmax.xlane.f32.xlu0 %v1599
        %v1601 = vpop.xlane.xlu0 %1600
        %v1602 = vsel %vm1598, %v506, -inf
        %1603 = vmax.xlane.f32.xlu0 %v1602
        %v1604 = vpop.xlane.xlu0 %1603
        %v1605 = vsel %vm1598, %v511, -inf
        %1606 = vmax.xlane.f32.xlu0 %v1605
        %v1607 = vpop.xlane.xlu0 %1606
        %v1608 = vsel %vm1598, %v516, -inf
        %1609 = vmax.xlane.f32.xlu0 %v1608
        %v1610 = vpop.xlane.xlu0 %1609
        %v1611 = vsub.f32 %v501, %v1601
        %v1612 = vsub.f32 %v506, %v1604
        %v1613 = vsub.f32 %v511, %v1607
        %v1614 = vsub.f32 %v516, %v1610
        %v1615 = vmul.f32 %v1611, 1.442695
        %v1616 = vpow.pop %v1615
        %v1617 = vmul.f32 %v1612, 1.442695
        %v1618 = vpow.pop %v1617
        %v1619 = vmul.f32 %v1613, 1.442695
        %v1620 = vpow.pop %v1619
        %v1621 = vmul.f32 %v1614, 1.442695
        %v1622 = vpow.pop %v1621
        %1627 = vrot.lane.b32.xlu0 %v1616, 104
        %v1628 = vpop.permute.xlu0 %1627
        %1629 = vrot.lane.b32.xlu0 %v1618, 104
        %v1630 = vpop.permute.xlu0 %1629
        %1631 = vrot.lane.b32.xlu0 %v1620, 104
        %v1632 = vpop.permute.xlu0 %1631
        %1633 = vrot.lane.b32.xlu0 %v1622, 104
        %v1634 = vpop.permute.xlu0 %1633
        %v1639 = vsel %vm519, %v1628, 0.0
        %1640 = vadd.xlane.f32.xlu0 %v1639
        %v1641 = vpop.xlane.xlu0 %1640
        %v1642 = vsel %vm519, %v1630, 0.0
        %1643 = vadd.xlane.f32.xlu0 %v1642
        %v1644 = vpop.xlane.xlu0 %1643
        %v1645 = vsel %vm519, %v1632, 0.0
        %1646 = vadd.xlane.f32.xlu0 %v1645
        %v1647 = vpop.xlane.xlu0 %1646
        %v1648 = vsel %vm519, %v1634, 0.0
        %1649 = vadd.xlane.f32.xlu0 %v1648
        %v1650 = vpop.xlane.xlu0 %1649
        %v1651 = vrcp.pop %v1641
        %v1652 = vmul.f32 %v1616, %v1651
        %v1653 = vrcp.pop %v1644
        %v1654 = vmul.f32 %v1618, %v1653
        %v1655 = vrcp.pop %v1647
        %v1656 = vmul.f32 %v1620, %v1655
        %v1657 = vrcp.pop %v1650
        %v1658 = vmul.f32 %v1622, %v1657
        %1660 = vset.pattern.permute.xlu0 24
        %1661 = vperm.xlu0 %1660, %v1652
        %v1662 = vpop.permute.xlu0 %1661
        %1665 = vset.pattern.permute.xlu0 24
        %1666 = vperm.xlu0 %1665, %v1654
        %v1667 = vpop.permute.xlu0 %1666
        %1670 = vset.pattern.permute.xlu0 24
        %1671 = vperm.xlu0 %1670, %v1656
        %v1672 = vpop.permute.xlu0 %1671
        %1675 = vset.pattern.permute.xlu0 24
        %1676 = vperm.xlu0 %1675, %v1658
        %v1677 = vpop.permute.xlu0 %1676
        %v1679 = vmul.f32 %v1662, %v246
        %v1680 = vmul.f32 %v1667, %v248
        %v1681 = vmul.f32 %v1672, %v250
        %v1682 = vmul.f32 %v1677, %v252
        %1683 = vset.pattern.permute.xlu0 25
        %1684 = vperm.xlu0 %1683, %v1652
        %v1685 = vpop.permute.xlu0 %1684
        %1687 = vset.pattern.permute.xlu0 25
        %1688 = vperm.xlu0 %1687, %v1654
        %v1689 = vpop.permute.xlu0 %1688
        %1691 = vset.pattern.permute.xlu0 25
        %1692 = vperm.xlu0 %1691, %v1656
        %v1693 = vpop.permute.xlu0 %1692
        %1695 = vset.pattern.permute.xlu0 25
        %1696 = vperm.xlu0 %1695, %v1658
        %v1697 = vpop.permute.xlu0 %1696
        %v1699 = vmul.f32 %v1685, %v246
        %v1700 = vmul.f32 %v1689, %v248
        %v1701 = vmul.f32 %v1693, %v250
        %v1702 = vmul.f32 %v1697, %v252
        %1707 = vrot.lane.b32.xlu0 %v1699, 112
        %v1708 = vpop.permute.xlu0 %1707
        %1709 = vrot.lane.b32.xlu0 %v1700, 112
        %v1710 = vpop.permute.xlu0 %1709
        %1711 = vrot.lane.b32.xlu0 %v1701, 112
        %v1712 = vpop.permute.xlu0 %1711
        %1713 = vrot.lane.b32.xlu0 %v1702, 112
        %v1714 = vpop.permute.xlu0 %1713
        %v1719 = vadd.f32 %v1679, %v1708
        %v1720 = vadd.f32 %v1680, %v1710
        %v1721 = vadd.f32 %v1681, %v1712
        %v1722 = vadd.f32 %v1682, %v1714
        %1723 = vset.pattern.permute.xlu0 26
        %1724 = vperm.xlu0 %1723, %v1652
        %v1725 = vpop.permute.xlu0 %1724
        %1727 = vset.pattern.permute.xlu0 26
        %1728 = vperm.xlu0 %1727, %v1654
        %v1729 = vpop.permute.xlu0 %1728
        %1731 = vset.pattern.permute.xlu0 26
        %1732 = vperm.xlu0 %1731, %v1656
        %v1733 = vpop.permute.xlu0 %1732
        %1735 = vset.pattern.permute.xlu0 26
        %1736 = vperm.xlu0 %1735, %v1658
        %v1737 = vpop.permute.xlu0 %1736
        %v1739 = vmul.f32 %v1725, %v246
        %v1740 = vmul.f32 %v1729, %v248
        %v1741 = vmul.f32 %v1733, %v250
        %v1742 = vmul.f32 %v1737, %v252
        %1747 = vrot.lane.b32.xlu0 %v1739, 96
        %v1748 = vpop.permute.xlu0 %1747
        %1749 = vrot.lane.b32.xlu0 %v1740, 96
        %v1750 = vpop.permute.xlu0 %1749
        %1751 = vrot.lane.b32.xlu0 %v1741, 96
        %v1752 = vpop.permute.xlu0 %1751
        %1753 = vrot.lane.b32.xlu0 %v1742, 96
        %v1754 = vpop.permute.xlu0 %1753
        %v1759 = vadd.f32 %v1719, %v1748
        %v1760 = vadd.f32 %v1720, %v1750
        %v1761 = vadd.f32 %v1721, %v1752
        %v1762 = vadd.f32 %v1722, %v1754
        %1763 = vset.pattern.permute.xlu0 27
        %1764 = vperm.xlu0 %1763, %v1652
        %v1765 = vpop.permute.xlu0 %1764
        %1767 = vset.pattern.permute.xlu0 27
        %1768 = vperm.xlu0 %1767, %v1654
        %v1769 = vpop.permute.xlu0 %1768
        %1771 = vset.pattern.permute.xlu0 27
        %1772 = vperm.xlu0 %1771, %v1656
        %v1773 = vpop.permute.xlu0 %1772
        %1775 = vset.pattern.permute.xlu0 27
        %1776 = vperm.xlu0 %1775, %v1658
        %v1777 = vpop.permute.xlu0 %1776
        %v1779 = vmul.f32 %v1765, %v246
        %v1780 = vmul.f32 %v1769, %v248
        %v1781 = vmul.f32 %v1773, %v250
        %v1782 = vmul.f32 %v1777, %v252
        %1787 = vrot.lane.b32.xlu0 %v1779, 80
        %v1788 = vpop.permute.xlu0 %1787
        %1789 = vrot.lane.b32.xlu0 %v1780, 80
        %v1790 = vpop.permute.xlu0 %1789
        %1791 = vrot.lane.b32.xlu0 %v1781, 80
        %v1792 = vpop.permute.xlu0 %1791
        %1793 = vrot.lane.b32.xlu0 %v1782, 80
        %v1794 = vpop.permute.xlu0 %1793
        %v1799 = vadd.f32 %v1759, %v1788
        %v1800 = vadd.f32 %v1760, %v1790
        %v1801 = vadd.f32 %v1761, %v1792
        %v1802 = vadd.f32 %v1762, %v1794
        %1803 = vset.pattern.permute.xlu0 28
        %1804 = vperm.xlu0 %1803, %v1652
        %v1805 = vpop.permute.xlu0 %1804
        %1807 = vset.pattern.permute.xlu0 28
        %1808 = vperm.xlu0 %1807, %v1654
        %v1809 = vpop.permute.xlu0 %1808
        %1811 = vset.pattern.permute.xlu0 28
        %1812 = vperm.xlu0 %1811, %v1656
        %v1813 = vpop.permute.xlu0 %1812
        %1815 = vset.pattern.permute.xlu0 28
        %1816 = vperm.xlu0 %1815, %v1658
        %v1817 = vpop.permute.xlu0 %1816
        %v1819 = vmul.f32 %v1805, %v246
        %v1820 = vmul.f32 %v1809, %v248
        %v1821 = vmul.f32 %v1813, %v250
        %v1822 = vmul.f32 %v1817, %v252
        %1827 = vrot.lane.b32.xlu0 %v1819, 64
        %v1828 = vpop.permute.xlu0 %1827
        %1829 = vrot.lane.b32.xlu0 %v1820, 64
        %v1830 = vpop.permute.xlu0 %1829
        %1831 = vrot.lane.b32.xlu0 %v1821, 64
        %v1832 = vpop.permute.xlu0 %1831
        %1833 = vrot.lane.b32.xlu0 %v1822, 64
        %v1834 = vpop.permute.xlu0 %1833
        %v1839 = vadd.f32 %v1799, %v1828
        %v1840 = vadd.f32 %v1800, %v1830
        %v1841 = vadd.f32 %v1801, %v1832
        %v1842 = vadd.f32 %v1802, %v1834
        %1843 = vset.pattern.permute.xlu0 29
        %1844 = vperm.xlu0 %1843, %v1652
        %v1845 = vpop.permute.xlu0 %1844
        %1847 = vset.pattern.permute.xlu0 29
        %1848 = vperm.xlu0 %1847, %v1654
        %v1849 = vpop.permute.xlu0 %1848
        %1851 = vset.pattern.permute.xlu0 29
        %1852 = vperm.xlu0 %1851, %v1656
        %v1853 = vpop.permute.xlu0 %1852
        %1855 = vset.pattern.permute.xlu0 29
        %1856 = vperm.xlu0 %1855, %v1658
        %v1857 = vpop.permute.xlu0 %1856
        %v1859 = vmul.f32 %v1845, %v246
        %v1860 = vmul.f32 %v1849, %v248
        %v1861 = vmul.f32 %v1853, %v250
        %v1862 = vmul.f32 %v1857, %v252
        %1867 = vrot.lane.b32.xlu0 %v1859, 48
        %v1868 = vpop.permute.xlu0 %1867
        %1869 = vrot.lane.b32.xlu0 %v1860, 48
        %v1870 = vpop.permute.xlu0 %1869
        %1871 = vrot.lane.b32.xlu0 %v1861, 48
        %v1872 = vpop.permute.xlu0 %1871
        %1873 = vrot.lane.b32.xlu0 %v1862, 48
        %v1874 = vpop.permute.xlu0 %1873
        %v1879 = vadd.f32 %v1839, %v1868
        %v1880 = vadd.f32 %v1840, %v1870
        %v1881 = vadd.f32 %v1841, %v1872
        %v1882 = vadd.f32 %v1842, %v1874
        %1883 = vset.pattern.permute.xlu0 30
        %1884 = vperm.xlu0 %1883, %v1652
        %v1885 = vpop.permute.xlu0 %1884
        %1887 = vset.pattern.permute.xlu0 30
        %1888 = vperm.xlu0 %1887, %v1654
        %v1889 = vpop.permute.xlu0 %1888
        %1891 = vset.pattern.permute.xlu0 30
        %1892 = vperm.xlu0 %1891, %v1656
        %v1893 = vpop.permute.xlu0 %1892
        %1895 = vset.pattern.permute.xlu0 30
        %1896 = vperm.xlu0 %1895, %v1658
        %v1897 = vpop.permute.xlu0 %1896
        %v1899 = vmul.f32 %v1885, %v246
        %v1900 = vmul.f32 %v1889, %v248
        %v1901 = vmul.f32 %v1893, %v250
        %v1902 = vmul.f32 %v1897, %v252
        %1907 = vrot.lane.b32.xlu0 %v1899, 32
        %v1908 = vpop.permute.xlu0 %1907
        %1909 = vrot.lane.b32.xlu0 %v1900, 32
        %v1910 = vpop.permute.xlu0 %1909
        %1911 = vrot.lane.b32.xlu0 %v1901, 32
        %v1912 = vpop.permute.xlu0 %1911
        %1913 = vrot.lane.b32.xlu0 %v1902, 32
        %v1914 = vpop.permute.xlu0 %1913
        %v1919 = vadd.f32 %v1879, %v1908
        %v1920 = vadd.f32 %v1880, %v1910
        %v1921 = vadd.f32 %v1881, %v1912
        %v1922 = vadd.f32 %v1882, %v1914
        %1923 = vset.pattern.permute.xlu0 31
        %1924 = vperm.xlu0 %1923, %v1652
        %v1925 = vpop.permute.xlu0 %1924
        %1927 = vset.pattern.permute.xlu0 31
        %1928 = vperm.xlu0 %1927, %v1654
        %v1929 = vpop.permute.xlu0 %1928
        %1931 = vset.pattern.permute.xlu0 31
        %1932 = vperm.xlu0 %1931, %v1656
        %v1933 = vpop.permute.xlu0 %1932
        %1935 = vset.pattern.permute.xlu0 31
        %1936 = vperm.xlu0 %1935, %v1658
        %v1937 = vpop.permute.xlu0 %1936
        %v1939 = vmul.f32 %v1925, %v246
        %v1940 = vmul.f32 %v1929, %v248
        %v1941 = vmul.f32 %v1933, %v250
        %v1942 = vmul.f32 %v1937, %v252
        %1947 = vrot.lane.b32.xlu0 %v1939, 16
        %v1948 = vpop.permute.xlu0 %1947
        %1949 = vrot.lane.b32.xlu0 %v1940, 16
        %v1950 = vpop.permute.xlu0 %1949
        %1951 = vrot.lane.b32.xlu0 %v1941, 16
        %v1952 = vpop.permute.xlu0 %1951
        %1953 = vrot.lane.b32.xlu0 %v1942, 16
        %v1954 = vpop.permute.xlu0 %1953
        %v1959 = vadd.f32 %v1919, %v1948
        %v1960 = vadd.f32 %v1920, %v1950
        %v1961 = vadd.f32 %v1921, %v1952
        %v1962 = vadd.f32 %v1922, %v1954
        %1963 = vmatprep.subr.mxu0 %v255
        %1964 = vmatpush1.msra.mxu0 %v254
        %1965 = vmatprep.subr.mxu0 %v257
        %1966 = vmatpush1.msra.mxu0 %v256
        %1967 = vmatprep.subr.mxu0 %v259
        %1968 = vmatpush1.msra.mxu0 %v258
        %1969 = vmatprep.subr.mxu0 %v261
        %1970 = vmatpush1.msra.mxu0 %v260
        %1971 = vmatprep.subr.mxu0 %v263
        %1972 = vmatpush1.msra.mxu0 %v262
        %1973 = vmatprep.subr.mxu0 %v265
        %1974 = vmatpush1.msra.mxu0 %v264
        %1975 = vmatprep.subr.mxu0 %v267
        %1976 = vmatpush1.msra.mxu0 %v266
        %1977 = vmatprep.subr.mxu0 %v269
        %1978 = vmatpush1.msra.mxu0 %v268
        %1979 = vmatprep.subr.mxu0 %v271
        %1980 = vmatpush1.msra.mxu0 %v270
        %1981 = vmatprep.subr.mxu0 %v273
        %1982 = vmatpush1.msra.mxu0 %v272
        %1983 = vmatprep.subr.mxu0 %v275
        %1984 = vmatpush1.msra.mxu0 %v274
        %1985 = vmatprep.subr.mxu0 %v277
        %1986 = vmatpush1.msra.mxu0 %v276
        %1987 = vmatprep.subr.mxu0 %v279
        %1988 = vmatpush1.msra.mxu0 %v278
        %1989 = vmatprep.subr.mxu0 %v281
        %1990 = vmatpush1.msra.mxu0 %v280
        %1991 = vmatprep.subr.mxu0 %v283
        %1992 = vmatpush1.msra.mxu0 %v282
        %1993 = vmatprep.subr.mxu0 %v285
        %1994 = vmatpush1.msra.mxu0 %v284
        %1995 = vmatprep.subr.mxu0 0.0
        %1996 = vmatpush1.msra.mxu0 0.0
        %1997 = vmatprep.subr.mxu0 0.0
        %1998 = vmatpush1.msra.mxu0 0.0
        %1999 = vmatprep.subr.mxu0 0.0
        %2000 = vmatpush1.msra.mxu0 0.0
        %2001 = vmatprep.subr.mxu0 0.0
        %2002 = vmatpush1.msra.mxu0 0.0
        %2003 = vmatprep.subr.mxu0 0.0
        %2004 = vmatpush1.msra.mxu0 0.0
        %2005 = vmatprep.subr.mxu0 0.0
        %2006 = vmatpush1.msra.mxu0 0.0
        %2007 = vmatprep.subr.mxu0 0.0
        %2008 = vmatpush1.msra.mxu0 0.0
        %2009 = vmatprep.subr.mxu0 0.0
        %2010 = vmatpush1.msra.mxu0 0.0
        %2011 = vmatprep.subr.mxu0 0.0
        %2012 = vmatpush1.msra.mxu0 0.0
        %2013 = vmatprep.subr.mxu0 0.0
        %2014 = vmatpush1.msra.mxu0 0.0
        %2015 = vmatprep.subr.mxu0 0.0
        %2016 = vmatpush1.msra.mxu0 0.0
        %2017 = vmatprep.subr.mxu0 0.0
        %2018 = vmatpush1.msra.mxu0 0.0
        %2019 = vmatprep.subr.mxu0 0.0
        %2020 = vmatpush1.msra.mxu0 0.0
        %2021 = vmatprep.subr.mxu0 0.0
        %2022 = vmatpush1.msra.mxu0 0.0
        %2023 = vmatprep.subr.mxu0 0.0
        %2024 = vmatpush1.msra.mxu0 0.0
        %2025 = vmatprep.subr.mxu0 0.0
        %2026 = vmatpush1.msra.mxu0 0.0
        %2027 = vmatprep.mubr.f32.mxu0 0.0
        %2028 = vmatmul.mubr.f32.gmra.mrb[0].mxu0 %v247
        %v2029 = vpop.f32.mrb[0].mxu0
        %v2030 = vadd.f32 %v324, %v2029
        %v2031 = vpop.f32.mrb[0].mxu0
        %v2032 = vadd.f32 %v328, %v2031
        %2033 = vmatprep.mubr.f32.mxu0 0.0
        %2034 = vmatmul.mubr.f32.gmra.mrb[0].mxu0 %v249
        %v2035 = vpop.f32.mrb[0].mxu0
        %v2036 = vadd.f32 %v324, %v2035
        %v2037 = vpop.f32.mrb[0].mxu0
        %v2038 = vadd.f32 %v328, %v2037
        %2039 = vmatprep.mubr.f32.mxu0 0.0
        %2040 = vmatmul.mubr.f32.gmra.mrb[0].mxu0 %v251
        %v2041 = vpop.f32.mrb[0].mxu0
        %v2042 = vadd.f32 %v324, %v2041
        %v2043 = vpop.f32.mrb[0].mxu0
        %v2044 = vadd.f32 %v328, %v2043
        %2045 = vmatprep.mubr.f32.mxu0 0.0
        %2046 = vmatmul.mubr.f32.gmra.mrb[0].mxu0 %v253
        %v2047 = vpop.f32.mrb[0].mxu0
        %v2048 = vadd.f32 %v324, %v2047
        %v2049 = vpop.f32.mrb[0].mxu0
        %v2050 = vadd.f32 %v328, %v2049
        %2051 = vdwg.mxu0
        %v2052 = vmax.f32 %v2030, 0.0
        %v2053 = vmax.f32 %v2032, 0.0
        %v2054 = vmax.f32 %v2036, 0.0
        %v2055 = vmax.f32 %v2038, 0.0
        %v2056 = vmax.f32 %v2042, 0.0
        %v2057 = vmax.f32 %v2044, 0.0
        %v2058 = vmax.f32 %v2048, 0.0
        %v2059 = vmax.f32 %v2050, 0.0
        %2060 = vmatprep.subr.mxu0 0.0
        %2061 = vmatpush1.msra.mxu0 %v287
        %2062 = vmatprep.subr.mxu0 0.0
        %2063 = vmatpush1.msra.mxu0 %v288
        %2064 = vmatprep.subr.mxu0 0.0
        %2065 = vmatpush1.msra.mxu0 %v289
        %2066 = vmatprep.subr.mxu0 0.0
        %2067 = vmatpush1.msra.mxu0 %v290
        %2068 = vmatprep.subr.mxu0 0.0
        %2069 = vmatpush1.msra.mxu0 %v291
        %2070 = vmatprep.subr.mxu0 0.0
        %2071 = vmatpush1.msra.mxu0 %v292
        %2072 = vmatprep.subr.mxu0 0.0
        %2073 = vmatpush1.msra.mxu0 %v293
        %2074 = vmatprep.subr.mxu0 0.0
        %2075 = vmatpush1.msra.mxu0 %v294
        %2076 = vmatprep.subr.mxu0 0.0
        %2077 = vmatpush1.msra.mxu0 %v295
        %2078 = vmatprep.subr.mxu0 0.0
        %2079 = vmatpush1.msra.mxu0 %v296
        %2080 = vmatprep.subr.mxu0 0.0
        %2081 = vmatpush1.msra.mxu0 %v297
        %2082 = vmatprep.subr.mxu0 0.0
        %2083 = vmatpush1.msra.mxu0 %v298
        %2084 = vmatprep.subr.mxu0 0.0
        %2085 = vmatpush1.msra.mxu0 %v299
        %2086 = vmatprep.subr.mxu0 0.0
        %2087 = vmatpush1.msra.mxu0 %v300
        %2088 = vmatprep.subr.mxu0 0.0
        %2089 = vmatpush1.msra.mxu0 %v301
        %2090 = vmatprep.subr.mxu0 0.0
        %2091 = vmatpush1.msra.mxu0 %v302
        %2092 = vmatprep.subr.mxu0 0.0
        %2093 = vmatpush1.msra.mxu0 %v303
        %2094 = vmatprep.subr.mxu0 0.0
        %2095 = vmatpush1.msra.mxu0 %v304
        %2096 = vmatprep.subr.mxu0 0.0
        %2097 = vmatpush1.msra.mxu0 %v305
        %2098 = vmatprep.subr.mxu0 0.0
        %2099 = vmatpush1.msra.mxu0 %v306
        %2100 = vmatprep.subr.mxu0 0.0
        %2101 = vmatpush1.msra.mxu0 %v307
        %2102 = vmatprep.subr.mxu0 0.0
        %2103 = vmatpush1.msra.mxu0 %v308
        %2104 = vmatprep.subr.mxu0 0.0
        %2105 = vmatpush1.msra.mxu0 %v309
        %2106 = vmatprep.subr.mxu0 0.0
        %2107 = vmatpush1.msra.mxu0 %v310
        %2108 = vmatprep.subr.mxu0 0.0
        %2109 = vmatpush1.msra.mxu0 %v311
        %2110 = vmatprep.subr.mxu0 0.0
        %2111 = vmatpush1.msra.mxu0 %v312
        %2112 = vmatprep.subr.mxu0 0.0
        %2113 = vmatpush1.msra.mxu0 %v313
        %2114 = vmatprep.subr.mxu0 0.0
        %2115 = vmatpush1.msra.mxu0 %v314
        %2116 = vmatprep.subr.mxu0 0.0
        %2117 = vmatpush1.msra.mxu0 %v315
        %2118 = vmatprep.subr.mxu0 0.0
        %2119 = vmatpush1.msra.mxu0 %v316
        %2120 = vmatprep.subr.mxu0 0.0
        %2121 = vmatpush1.msra.mxu0 %v317
        %2122 = vmatprep.subr.mxu0 0.0
        %2123 = vmatpush1.msra.mxu0 %v318
        %2124 = vmatprep.mubr.f32.mxu0 %v2053
        %2125 = vmatmul.mubr.f32.gmra.mrb[0].mxu0 %v2052
        %v2126 = vpop.f32.mrb[0].mxu0
        %v2127 = vadd.f32 %v432, %v2126
        %v2128 = vpop.f32.mrb[0].mxu0
        %2129 = vmatprep.mubr.f32.mxu0 %v2055
        %2130 = vmatmul.mubr.f32.gmra.mrb[0].mxu0 %v2054
        %v2131 = vpop.f32.mrb[0].mxu0
        %v2132 = vadd.f32 %v432, %v2131
        %v2133 = vpop.f32.mrb[0].mxu0
        %2134 = vmatprep.mubr.f32.mxu0 %v2057
        %2135 = vmatmul.mubr.f32.gmra.mrb[0].mxu0 %v2056
        %v2136 = vpop.f32.mrb[0].mxu0
        %v2137 = vadd.f32 %v432, %v2136
        %v2138 = vpop.f32.mrb[0].mxu0
        %2139 = vmatprep.mubr.f32.mxu0 %v2059
        %2140 = vmatmul.mubr.f32.gmra.mrb[0].mxu0 %v2058
        %v2141 = vpop.f32.mrb[0].mxu0
        %v2142 = vadd.f32 %v432, %v2141
        %v2143 = vpop.f32.mrb[0].mxu0
        %2144 = vdwg.mxu0
        %v2145 = vsel %vm519, %v2127, -inf
        %2146 = vmax.xlane.f32.xlu0 %v2145
        %v2147 = vpop.xlane.xlu0 %2146
        %v2148 = vsel %vm519, %v2132, -inf
        %2149 = vmax.xlane.f32.xlu0 %v2148
        %v2150 = vpop.xlane.xlu0 %2149
        %v2151 = vsel %vm519, %v2137, -inf
        %2152 = vmax.xlane.f32.xlu0 %v2151
        %v2153 = vpop.xlane.xlu0 %2152
        %v2154 = vsel %vm519, %v2142, -inf
        %2155 = vmax.xlane.f32.xlu0 %v2154
        %v2156 = vpop.xlane.xlu0 %2155
        %v2157 = vsub.f32 %v2127, %v2147
        %v2158 = vsub.f32 %v2132, %v2150
        %v2159 = vsub.f32 %v2137, %v2153
        %v2160 = vsub.f32 %v2142, %v2156
        %v2161 = vmul.f32 %v2157, 1.442695
        %v2162 = vpow.pop %v2161
        %v2163 = vmul.f32 %v2158, 1.442695
        %v2164 = vpow.pop %v2163
        %v2165 = vmul.f32 %v2159, 1.442695
        %v2166 = vpow.pop %v2165
        %v2167 = vmul.f32 %v2160, 1.442695
        %v2168 = vpow.pop %v2167
        %v2169 = vsel %vm519, %v2162, 0.0
        %2170 = vadd.xlane.f32.xlu0 %v2169
        %v2171 = vpop.xlane.xlu0 %2170
        %v2172 = vsel %vm519, %v2164, 0.0
        %2173 = vadd.xlane.f32.xlu0 %v2172
        %v2174 = vpop.xlane.xlu0 %2173
        %v2175 = vsel %vm519, %v2166, 0.0
        %2176 = vadd.xlane.f32.xlu0 %v2175
        %v2177 = vpop.xlane.xlu0 %2176
        %v2178 = vsel %vm519, %v2168, 0.0
        %2179 = vadd.xlane.f32.xlu0 %v2178
        %v2180 = vpop.xlane.xlu0 %2179
        %v2181 = vrcp.pop %v2171
        %v2182 = vmul.f32 %v2162, %v2181
        %v2183 = vrcp.pop %v2174
        %v2184 = vmul.f32 %v2164, %v2183
        %v2185 = vrcp.pop %v2177
        %v2186 = vmul.f32 %v2166, %v2185
        %v2187 = vrcp.pop %v2180
        %v2188 = vmul.f32 %v2168, %v2187
        %2190 = vset.pattern.permute.xlu0 0
        %2191 = vperm.xlu0 %2190, %v2182
        %v2192 = vpop.permute.xlu0 %2191
        %2195 = vset.pattern.permute.xlu0 0
        %2196 = vperm.xlu0 %2195, %v2184
        %v2197 = vpop.permute.xlu0 %2196
        %2200 = vset.pattern.permute.xlu0 0
        %2201 = vperm.xlu0 %2200, %v2186
        %v2202 = vpop.permute.xlu0 %2201
        %2205 = vset.pattern.permute.xlu0 0
        %2206 = vperm.xlu0 %2205, %v2188
        %v2207 = vpop.permute.xlu0 %2206
        %v2209 = vmul.f32 %v2192, %v247
        %v2210 = vmul.f32 %v2197, %v249
        %v2211 = vmul.f32 %v2202, %v251
        %v2212 = vmul.f32 %v2207, %v253
        %2213 = vset.pattern.permute.xlu0 1
        %2214 = vperm.xlu0 %2213, %v2182
        %v2215 = vpop.permute.xlu0 %2214
        %2217 = vset.pattern.permute.xlu0 1
        %2218 = vperm.xlu0 %2217, %v2184
        %v2219 = vpop.permute.xlu0 %2218
        %2221 = vset.pattern.permute.xlu0 1
        %2222 = vperm.xlu0 %2221, %v2186
        %v2223 = vpop.permute.xlu0 %2222
        %2225 = vset.pattern.permute.xlu0 1
        %2226 = vperm.xlu0 %2225, %v2188
        %v2227 = vpop.permute.xlu0 %2226
        %v2229 = vmul.f32 %v2215, %v247
        %v2230 = vmul.f32 %v2219, %v249
        %v2231 = vmul.f32 %v2223, %v251
        %v2232 = vmul.f32 %v2227, %v253
        %2237 = vrot.lane.b32.xlu0 %v2229, 112
        %v2238 = vpop.permute.xlu0 %2237
        %2239 = vrot.lane.b32.xlu0 %v2230, 112
        %v2240 = vpop.permute.xlu0 %2239
        %2241 = vrot.lane.b32.xlu0 %v2231, 112
        %v2242 = vpop.permute.xlu0 %2241
        %2243 = vrot.lane.b32.xlu0 %v2232, 112
        %v2244 = vpop.permute.xlu0 %2243
        %v2249 = vadd.f32 %v2209, %v2238
        %v2250 = vadd.f32 %v2210, %v2240
        %v2251 = vadd.f32 %v2211, %v2242
        %v2252 = vadd.f32 %v2212, %v2244
        %2253 = vset.pattern.permute.xlu0 2
        %2254 = vperm.xlu0 %2253, %v2182
        %v2255 = vpop.permute.xlu0 %2254
        %2257 = vset.pattern.permute.xlu0 2
        %2258 = vperm.xlu0 %2257, %v2184
        %v2259 = vpop.permute.xlu0 %2258
        %2261 = vset.pattern.permute.xlu0 2
        %2262 = vperm.xlu0 %2261, %v2186
        %v2263 = vpop.permute.xlu0 %2262
        %2265 = vset.pattern.permute.xlu0 2
        %2266 = vperm.xlu0 %2265, %v2188
        %v2267 = vpop.permute.xlu0 %2266
        %v2269 = vmul.f32 %v2255, %v247
        %v2270 = vmul.f32 %v2259, %v249
        %v2271 = vmul.f32 %v2263, %v251
        %v2272 = vmul.f32 %v2267, %v253
        %2277 = vrot.lane.b32.xlu0 %v2269, 96
        %v2278 = vpop.permute.xlu0 %2277
        %2279 = vrot.lane.b32.xlu0 %v2270, 96
        %v2280 = vpop.permute.xlu0 %2279
        %2281 = vrot.lane.b32.xlu0 %v2271, 96
        %v2282 = vpop.permute.xlu0 %2281
        %2283 = vrot.lane.b32.xlu0 %v2272, 96
        %v2284 = vpop.permute.xlu0 %2283
        %v2289 = vadd.f32 %v2249, %v2278
        %v2290 = vadd.f32 %v2250, %v2280
        %v2291 = vadd.f32 %v2251, %v2282
        %v2292 = vadd.f32 %v2252, %v2284
        %2293 = vset.pattern.permute.xlu0 3
        %2294 = vperm.xlu0 %2293, %v2182
        %v2295 = vpop.permute.xlu0 %2294
        %2297 = vset.pattern.permute.xlu0 3
        %2298 = vperm.xlu0 %2297, %v2184
        %v2299 = vpop.permute.xlu0 %2298
        %2301 = vset.pattern.permute.xlu0 3
        %2302 = vperm.xlu0 %2301, %v2186
        %v2303 = vpop.permute.xlu0 %2302
        %2305 = vset.pattern.permute.xlu0 3
        %2306 = vperm.xlu0 %2305, %v2188
        %v2307 = vpop.permute.xlu0 %2306
        %v2309 = vmul.f32 %v2295, %v247
        %v2310 = vmul.f32 %v2299, %v249
        %v2311 = vmul.f32 %v2303, %v251
        %v2312 = vmul.f32 %v2307, %v253
        %2317 = vrot.lane.b32.xlu0 %v2309, 80
        %v2318 = vpop.permute.xlu0 %2317
        %2319 = vrot.lane.b32.xlu0 %v2310, 80
        %v2320 = vpop.permute.xlu0 %2319
        %2321 = vrot.lane.b32.xlu0 %v2311, 80
        %v2322 = vpop.permute.xlu0 %2321
        %2323 = vrot.lane.b32.xlu0 %v2312, 80
        %v2324 = vpop.permute.xlu0 %2323
        %v2329 = vadd.f32 %v2289, %v2318
        %v2330 = vadd.f32 %v2290, %v2320
        %v2331 = vadd.f32 %v2291, %v2322
        %v2332 = vadd.f32 %v2292, %v2324
        %2333 = vset.pattern.permute.xlu0 4
        %2334 = vperm.xlu0 %2333, %v2182
        %v2335 = vpop.permute.xlu0 %2334
        %2337 = vset.pattern.permute.xlu0 4
        %2338 = vperm.xlu0 %2337, %v2184
        %v2339 = vpop.permute.xlu0 %2338
        %2341 = vset.pattern.permute.xlu0 4
        %2342 = vperm.xlu0 %2341, %v2186
        %v2343 = vpop.permute.xlu0 %2342
        %2345 = vset.pattern.permute.xlu0 4
        %2346 = vperm.xlu0 %2345, %v2188
        %v2347 = vpop.permute.xlu0 %2346
        %v2349 = vmul.f32 %v2335, %v247
        %v2350 = vmul.f32 %v2339, %v249
        %v2351 = vmul.f32 %v2343, %v251
        %v2352 = vmul.f32 %v2347, %v253
        %2357 = vrot.lane.b32.xlu0 %v2349, 64
        %v2358 = vpop.permute.xlu0 %2357
        %2359 = vrot.lane.b32.xlu0 %v2350, 64
        %v2360 = vpop.permute.xlu0 %2359
        %2361 = vrot.lane.b32.xlu0 %v2351, 64
        %v2362 = vpop.permute.xlu0 %2361
        %2363 = vrot.lane.b32.xlu0 %v2352, 64
        %v2364 = vpop.permute.xlu0 %2363
        %v2369 = vadd.f32 %v2329, %v2358
        %v2370 = vadd.f32 %v2330, %v2360
        %v2371 = vadd.f32 %v2331, %v2362
        %v2372 = vadd.f32 %v2332, %v2364
        %2373 = vset.pattern.permute.xlu0 5
        %2374 = vperm.xlu0 %2373, %v2182
        %v2375 = vpop.permute.xlu0 %2374
        %2377 = vset.pattern.permute.xlu0 5
        %2378 = vperm.xlu0 %2377, %v2184
        %v2379 = vpop.permute.xlu0 %2378
        %2381 = vset.pattern.permute.xlu0 5
        %2382 = vperm.xlu0 %2381, %v2186
        %v2383 = vpop.permute.xlu0 %2382
        %2385 = vset.pattern.permute.xlu0 5
        %2386 = vperm.xlu0 %2385, %v2188
        %v2387 = vpop.permute.xlu0 %2386
        %v2389 = vmul.f32 %v2375, %v247
        %v2390 = vmul.f32 %v2379, %v249
        %v2391 = vmul.f32 %v2383, %v251
        %v2392 = vmul.f32 %v2387, %v253
        %2397 = vrot.lane.b32.xlu0 %v2389, 48
        %v2398 = vpop.permute.xlu0 %2397
        %2399 = vrot.lane.b32.xlu0 %v2390, 48
        %v2400 = vpop.permute.xlu0 %2399
        %2401 = vrot.lane.b32.xlu0 %v2391, 48
        %v2402 = vpop.permute.xlu0 %2401
        %2403 = vrot.lane.b32.xlu0 %v2392, 48
        %v2404 = vpop.permute.xlu0 %2403
        %v2409 = vadd.f32 %v2369, %v2398
        %v2410 = vadd.f32 %v2370, %v2400
        %v2411 = vadd.f32 %v2371, %v2402
        %v2412 = vadd.f32 %v2372, %v2404
        %2413 = vset.pattern.permute.xlu0 6
        %2414 = vperm.xlu0 %2413, %v2182
        %v2415 = vpop.permute.xlu0 %2414
        %2417 = vset.pattern.permute.xlu0 6
        %2418 = vperm.xlu0 %2417, %v2184
        %v2419 = vpop.permute.xlu0 %2418
        %2421 = vset.pattern.permute.xlu0 6
        %2422 = vperm.xlu0 %2421, %v2186
        %v2423 = vpop.permute.xlu0 %2422
        %2425 = vset.pattern.permute.xlu0 6
        %2426 = vperm.xlu0 %2425, %v2188
        %v2427 = vpop.permute.xlu0 %2426
        %v2429 = vmul.f32 %v2415, %v247
        %v2430 = vmul.f32 %v2419, %v249
        %v2431 = vmul.f32 %v2423, %v251
        %v2432 = vmul.f32 %v2427, %v253
        %2437 = vrot.lane.b32.xlu0 %v2429, 32
        %v2438 = vpop.permute.xlu0 %2437
        %2439 = vrot.lane.b32.xlu0 %v2430, 32
        %v2440 = vpop.permute.xlu0 %2439
        %2441 = vrot.lane.b32.xlu0 %v2431, 32
        %v2442 = vpop.permute.xlu0 %2441
        %2443 = vrot.lane.b32.xlu0 %v2432, 32
        %v2444 = vpop.permute.xlu0 %2443
        %v2449 = vadd.f32 %v2409, %v2438
        %v2450 = vadd.f32 %v2410, %v2440
        %v2451 = vadd.f32 %v2411, %v2442
        %v2452 = vadd.f32 %v2412, %v2444
        %2453 = vset.pattern.permute.xlu0 7
        %2454 = vperm.xlu0 %2453, %v2182
        %v2455 = vpop.permute.xlu0 %2454
        %2457 = vset.pattern.permute.xlu0 7
        %2458 = vperm.xlu0 %2457, %v2184
        %v2459 = vpop.permute.xlu0 %2458
        %2461 = vset.pattern.permute.xlu0 7
        %2462 = vperm.xlu0 %2461, %v2186
        %v2463 = vpop.permute.xlu0 %2462
        %2465 = vset.pattern.permute.xlu0 7
        %2466 = vperm.xlu0 %2465, %v2188
        %v2467 = vpop.permute.xlu0 %2466
        %v2469 = vmul.f32 %v2455, %v247
        %v2470 = vmul.f32 %v2459, %v249
        %v2471 = vmul.f32 %v2463, %v251
        %v2472 = vmul.f32 %v2467, %v253
        %2477 = vrot.lane.b32.xlu0 %v2469, 16
        %v2478 = vpop.permute.xlu0 %2477
        %2479 = vrot.lane.b32.xlu0 %v2470, 16
        %v2480 = vpop.permute.xlu0 %2479
        %2481 = vrot.lane.b32.xlu0 %v2471, 16
        %v2482 = vpop.permute.xlu0 %2481
        %2483 = vrot.lane.b32.xlu0 %v2472, 16
        %v2484 = vpop.permute.xlu0 %2483
        %v2489 = vadd.f32 %v2449, %v2478
        %v2490 = vadd.f32 %v2450, %v2480
        %v2491 = vadd.f32 %v2451, %v2482
        %v2492 = vadd.f32 %v2452, %v2484
        %v2493 = vsel %vm868, %v2127, -inf
        %2494 = vmax.xlane.f32.xlu0 %v2493
        %v2495 = vpop.xlane.xlu0 %2494
        %v2496 = vsel %vm868, %v2132, -inf
        %2497 = vmax.xlane.f32.xlu0 %v2496
        %v2498 = vpop.xlane.xlu0 %2497
        %v2499 = vsel %vm868, %v2137, -inf
        %2500 = vmax.xlane.f32.xlu0 %v2499
        %v2501 = vpop.xlane.xlu0 %2500
        %v2502 = vsel %vm868, %v2142, -inf
        %2503 = vmax.xlane.f32.xlu0 %v2502
        %v2504 = vpop.xlane.xlu0 %2503
        %v2505 = vsub.f32 %v2127, %v2495
        %v2506 = vsub.f32 %v2132, %v2498
        %v2507 = vsub.f32 %v2137, %v2501
        %v2508 = vsub.f32 %v2142, %v2504
        %v2509 = vmul.f32 %v2505, 1.442695
        %v2510 = vpow.pop %v2509
        %v2511 = vmul.f32 %v2506, 1.442695
        %v2512 = vpow.pop %v2511
        %v2513 = vmul.f32 %v2507, 1.442695
        %v2514 = vpow.pop %v2513
        %v2515 = vmul.f32 %v2508, 1.442695
        %v2516 = vpow.pop %v2515
        %2521 = vrot.lane.b32.xlu0 %v2510, 120
        %v2522 = vpop.permute.xlu0 %2521
        %2523 = vrot.lane.b32.xlu0 %v2512, 120
        %v2524 = vpop.permute.xlu0 %2523
        %2525 = vrot.lane.b32.xlu0 %v2514, 120
        %v2526 = vpop.permute.xlu0 %2525
        %2527 = vrot.lane.b32.xlu0 %v2516, 120
        %v2528 = vpop.permute.xlu0 %2527
        %v2533 = vsel %vm519, %v2522, 0.0
        %2534 = vadd.xlane.f32.xlu0 %v2533
        %v2535 = vpop.xlane.xlu0 %2534
        %v2536 = vsel %vm519, %v2524, 0.0
        %2537 = vadd.xlane.f32.xlu0 %v2536
        %v2538 = vpop.xlane.xlu0 %2537
        %v2539 = vsel %vm519, %v2526, 0.0
        %2540 = vadd.xlane.f32.xlu0 %v2539
        %v2541 = vpop.xlane.xlu0 %2540
        %v2542 = vsel %vm519, %v2528, 0.0
        %2543 = vadd.xlane.f32.xlu0 %v2542
        %v2544 = vpop.xlane.xlu0 %2543
        %v2545 = vrcp.pop %v2535
        %v2546 = vmul.f32 %v2510, %v2545
        %v2547 = vrcp.pop %v2538
        %v2548 = vmul.f32 %v2512, %v2547
        %v2549 = vrcp.pop %v2541
        %v2550 = vmul.f32 %v2514, %v2549
        %v2551 = vrcp.pop %v2544
        %v2552 = vmul.f32 %v2516, %v2551
        %2554 = vset.pattern.permute.xlu0 8
        %2555 = vperm.xlu0 %2554, %v2546
        %v2556 = vpop.permute.xlu0 %2555
        %2559 = vset.pattern.permute.xlu0 8
        %2560 = vperm.xlu0 %2559, %v2548
        %v2561 = vpop.permute.xlu0 %2560
        %2564 = vset.pattern.permute.xlu0 8
        %2565 = vperm.xlu0 %2564, %v2550
        %v2566 = vpop.permute.xlu0 %2565
        %2569 = vset.pattern.permute.xlu0 8
        %2570 = vperm.xlu0 %2569, %v2552
        %v2571 = vpop.permute.xlu0 %2570
        %v2573 = vmul.f32 %v2556, %v247
        %v2574 = vmul.f32 %v2561, %v249
        %v2575 = vmul.f32 %v2566, %v251
        %v2576 = vmul.f32 %v2571, %v253
        %2577 = vset.pattern.permute.xlu0 9
        %2578 = vperm.xlu0 %2577, %v2546
        %v2579 = vpop.permute.xlu0 %2578
        %2581 = vset.pattern.permute.xlu0 9
        %2582 = vperm.xlu0 %2581, %v2548
        %v2583 = vpop.permute.xlu0 %2582
        %2585 = vset.pattern.permute.xlu0 9
        %2586 = vperm.xlu0 %2585, %v2550
        %v2587 = vpop.permute.xlu0 %2586
        %2589 = vset.pattern.permute.xlu0 9
        %2590 = vperm.xlu0 %2589, %v2552
        %v2591 = vpop.permute.xlu0 %2590
        %v2593 = vmul.f32 %v2579, %v247
        %v2594 = vmul.f32 %v2583, %v249
        %v2595 = vmul.f32 %v2587, %v251
        %v2596 = vmul.f32 %v2591, %v253
        %2601 = vrot.lane.b32.xlu0 %v2593, 112
        %v2602 = vpop.permute.xlu0 %2601
        %2603 = vrot.lane.b32.xlu0 %v2594, 112
        %v2604 = vpop.permute.xlu0 %2603
        %2605 = vrot.lane.b32.xlu0 %v2595, 112
        %v2606 = vpop.permute.xlu0 %2605
        %2607 = vrot.lane.b32.xlu0 %v2596, 112
        %v2608 = vpop.permute.xlu0 %2607
        %v2613 = vadd.f32 %v2573, %v2602
        %v2614 = vadd.f32 %v2574, %v2604
        %v2615 = vadd.f32 %v2575, %v2606
        %v2616 = vadd.f32 %v2576, %v2608
        %2617 = vset.pattern.permute.xlu0 10
        %2618 = vperm.xlu0 %2617, %v2546
        %v2619 = vpop.permute.xlu0 %2618
        %2621 = vset.pattern.permute.xlu0 10
        %2622 = vperm.xlu0 %2621, %v2548
        %v2623 = vpop.permute.xlu0 %2622
        %2625 = vset.pattern.permute.xlu0 10
        %2626 = vperm.xlu0 %2625, %v2550
        %v2627 = vpop.permute.xlu0 %2626
        %2629 = vset.pattern.permute.xlu0 10
        %2630 = vperm.xlu0 %2629, %v2552
        %v2631 = vpop.permute.xlu0 %2630
        %v2633 = vmul.f32 %v2619, %v247
        %v2634 = vmul.f32 %v2623, %v249
        %v2635 = vmul.f32 %v2627, %v251
        %v2636 = vmul.f32 %v2631, %v253
        %2641 = vrot.lane.b32.xlu0 %v2633, 96
        %v2642 = vpop.permute.xlu0 %2641
        %2643 = vrot.lane.b32.xlu0 %v2634, 96
        %v2644 = vpop.permute.xlu0 %2643
        %2645 = vrot.lane.b32.xlu0 %v2635, 96
        %v2646 = vpop.permute.xlu0 %2645
        %2647 = vrot.lane.b32.xlu0 %v2636, 96
        %v2648 = vpop.permute.xlu0 %2647
        %v2653 = vadd.f32 %v2613, %v2642
        %v2654 = vadd.f32 %v2614, %v2644
        %v2655 = vadd.f32 %v2615, %v2646
        %v2656 = vadd.f32 %v2616, %v2648
        %2657 = vset.pattern.permute.xlu0 11
        %2658 = vperm.xlu0 %2657, %v2546
        %v2659 = vpop.permute.xlu0 %2658
        %2661 = vset.pattern.permute.xlu0 11
        %2662 = vperm.xlu0 %2661, %v2548
        %v2663 = vpop.permute.xlu0 %2662
        %2665 = vset.pattern.permute.xlu0 11
        %2666 = vperm.xlu0 %2665, %v2550
        %v2667 = vpop.permute.xlu0 %2666
        %2669 = vset.pattern.permute.xlu0 11
        %2670 = vperm.xlu0 %2669, %v2552
        %v2671 = vpop.permute.xlu0 %2670
        %v2673 = vmul.f32 %v2659, %v247
        %v2674 = vmul.f32 %v2663, %v249
        %v2675 = vmul.f32 %v2667, %v251
        %v2676 = vmul.f32 %v2671, %v253
        %2681 = vrot.lane.b32.xlu0 %v2673, 80
        %v2682 = vpop.permute.xlu0 %2681
        %2683 = vrot.lane.b32.xlu0 %v2674, 80
        %v2684 = vpop.permute.xlu0 %2683
        %2685 = vrot.lane.b32.xlu0 %v2675, 80
        %v2686 = vpop.permute.xlu0 %2685
        %2687 = vrot.lane.b32.xlu0 %v2676, 80
        %v2688 = vpop.permute.xlu0 %2687
        %v2693 = vadd.f32 %v2653, %v2682
        %v2694 = vadd.f32 %v2654, %v2684
        %v2695 = vadd.f32 %v2655, %v2686
        %v2696 = vadd.f32 %v2656, %v2688
        %2697 = vset.pattern.permute.xlu0 12
        %2698 = vperm.xlu0 %2697, %v2546
        %v2699 = vpop.permute.xlu0 %2698
        %2701 = vset.pattern.permute.xlu0 12
        %2702 = vperm.xlu0 %2701, %v2548
        %v2703 = vpop.permute.xlu0 %2702
        %2705 = vset.pattern.permute.xlu0 12
        %2706 = vperm.xlu0 %2705, %v2550
        %v2707 = vpop.permute.xlu0 %2706
        %2709 = vset.pattern.permute.xlu0 12
        %2710 = vperm.xlu0 %2709, %v2552
        %v2711 = vpop.permute.xlu0 %2710
        %v2713 = vmul.f32 %v2699, %v247
        %v2714 = vmul.f32 %v2703, %v249
        %v2715 = vmul.f32 %v2707, %v251
        %v2716 = vmul.f32 %v2711, %v253
        %2721 = vrot.lane.b32.xlu0 %v2713, 64
        %v2722 = vpop.permute.xlu0 %2721
        %2723 = vrot.lane.b32.xlu0 %v2714, 64
        %v2724 = vpop.permute.xlu0 %2723
        %2725 = vrot.lane.b32.xlu0 %v2715, 64
        %v2726 = vpop.permute.xlu0 %2725
        %2727 = vrot.lane.b32.xlu0 %v2716, 64
        %v2728 = vpop.permute.xlu0 %2727
        %v2733 = vadd.f32 %v2693, %v2722
        %v2734 = vadd.f32 %v2694, %v2724
        %v2735 = vadd.f32 %v2695, %v2726
        %v2736 = vadd.f32 %v2696, %v2728
        %2737 = vset.pattern.permute.xlu0 13
        %2738 = vperm.xlu0 %2737, %v2546
        %v2739 = vpop.permute.xlu0 %2738
        %2741 = vset.pattern.permute.xlu0 13
        %2742 = vperm.xlu0 %2741, %v2548
        %v2743 = vpop.permute.xlu0 %2742
        %2745 = vset.pattern.permute.xlu0 13
        %2746 = vperm.xlu0 %2745, %v2550
        %v2747 = vpop.permute.xlu0 %2746
        %2749 = vset.pattern.permute.xlu0 13
        %2750 = vperm.xlu0 %2749, %v2552
        %v2751 = vpop.permute.xlu0 %2750
        %v2753 = vmul.f32 %v2739, %v247
        %v2754 = vmul.f32 %v2743, %v249
        %v2755 = vmul.f32 %v2747, %v251
        %v2756 = vmul.f32 %v2751, %v253
        %2761 = vrot.lane.b32.xlu0 %v2753, 48
        %v2762 = vpop.permute.xlu0 %2761
        %2763 = vrot.lane.b32.xlu0 %v2754, 48
        %v2764 = vpop.permute.xlu0 %2763
        %2765 = vrot.lane.b32.xlu0 %v2755, 48
        %v2766 = vpop.permute.xlu0 %2765
        %2767 = vrot.lane.b32.xlu0 %v2756, 48
        %v2768 = vpop.permute.xlu0 %2767
        %v2773 = vadd.f32 %v2733, %v2762
        %v2774 = vadd.f32 %v2734, %v2764
        %v2775 = vadd.f32 %v2735, %v2766
        %v2776 = vadd.f32 %v2736, %v2768
        %2777 = vset.pattern.permute.xlu0 14
        %2778 = vperm.xlu0 %2777, %v2546
        %v2779 = vpop.permute.xlu0 %2778
        %2781 = vset.pattern.permute.xlu0 14
        %2782 = vperm.xlu0 %2781, %v2548
        %v2783 = vpop.permute.xlu0 %2782
        %2785 = vset.pattern.permute.xlu0 14
        %2786 = vperm.xlu0 %2785, %v2550
        %v2787 = vpop.permute.xlu0 %2786
        %2789 = vset.pattern.permute.xlu0 14
        %2790 = vperm.xlu0 %2789, %v2552
        %v2791 = vpop.permute.xlu0 %2790
        %v2793 = vmul.f32 %v2779, %v247
        %v2794 = vmul.f32 %v2783, %v249
        %v2795 = vmul.f32 %v2787, %v251
        %v2796 = vmul.f32 %v2791, %v253
        %2801 = vrot.lane.b32.xlu0 %v2793, 32
        %v2802 = vpop.permute.xlu0 %2801
        %2803 = vrot.lane.b32.xlu0 %v2794, 32
        %v2804 = vpop.permute.xlu0 %2803
        %2805 = vrot.lane.b32.xlu0 %v2795, 32
        %v2806 = vpop.permute.xlu0 %2805
        %2807 = vrot.lane.b32.xlu0 %v2796, 32
        %v2808 = vpop.permute.xlu0 %2807
        %v2813 = vadd.f32 %v2773, %v2802
        %v2814 = vadd.f32 %v2774, %v2804
        %v2815 = vadd.f32 %v2775, %v2806
        %v2816 = vadd.f32 %v2776, %v2808
        %2817 = vset.pattern.permute.xlu0 15
        %2818 = vperm.xlu0 %2817, %v2546
        %v2819 = vpop.permute.xlu0 %2818
        %2821 = vset.pattern.permute.xlu0 15
        %2822 = vperm.xlu0 %2821, %v2548
        %v2823 = vpop.permute.xlu0 %2822
        %2825 = vset.pattern.permute.xlu0 15
        %2826 = vperm.xlu0 %2825, %v2550
        %v2827 = vpop.permute.xlu0 %2826
        %2829 = vset.pattern.permute.xlu0 15
        %2830 = vperm.xlu0 %2829, %v2552
        %v2831 = vpop.permute.xlu0 %2830
        %v2833 = vmul.f32 %v2819, %v247
        %v2834 = vmul.f32 %v2823, %v249
        %v2835 = vmul.f32 %v2827, %v251
        %v2836 = vmul.f32 %v2831, %v253
        %2841 = vrot.lane.b32.xlu0 %v2833, 16
        %v2842 = vpop.permute.xlu0 %2841
        %2843 = vrot.lane.b32.xlu0 %v2834, 16
        %v2844 = vpop.permute.xlu0 %2843
        %2845 = vrot.lane.b32.xlu0 %v2835, 16
        %v2846 = vpop.permute.xlu0 %2845
        %2847 = vrot.lane.b32.xlu0 %v2836, 16
        %v2848 = vpop.permute.xlu0 %2847
        %v2853 = vadd.f32 %v2813, %v2842
        %v2854 = vadd.f32 %v2814, %v2844
        %v2855 = vadd.f32 %v2815, %v2846
        %v2856 = vadd.f32 %v2816, %v2848
        %v2857 = vsel %vm1233, %v2127, -inf
        %2858 = vmax.xlane.f32.xlu0 %v2857
        %v2859 = vpop.xlane.xlu0 %2858
        %v2860 = vsel %vm1233, %v2132, -inf
        %2861 = vmax.xlane.f32.xlu0 %v2860
        %v2862 = vpop.xlane.xlu0 %2861
        %v2863 = vsel %vm1233, %v2137, -inf
        %2864 = vmax.xlane.f32.xlu0 %v2863
        %v2865 = vpop.xlane.xlu0 %2864
        %v2866 = vsel %vm1233, %v2142, -inf
        %2867 = vmax.xlane.f32.xlu0 %v2866
        %v2868 = vpop.xlane.xlu0 %2867
        %v2869 = vsub.f32 %v2127, %v2859
        %v2870 = vsub.f32 %v2132, %v2862
        %v2871 = vsub.f32 %v2137, %v2865
        %v2872 = vsub.f32 %v2142, %v2868
        %v2873 = vmul.f32 %v2869, 1.442695
        %v2874 = vpow.pop %v2873
        %v2875 = vmul.f32 %v2870, 1.442695
        %v2876 = vpow.pop %v2875
        %v2877 = vmul.f32 %v2871, 1.442695
        %v2878 = vpow.pop %v2877
        %v2879 = vmul.f32 %v2872, 1.442695
        %v2880 = vpow.pop %v2879
        %2885 = vrot.lane.b32.xlu0 %v2874, 112
        %v2886 = vpop.permute.xlu0 %2885
        %2887 = vrot.lane.b32.xlu0 %v2876, 112
        %v2888 = vpop.permute.xlu0 %2887
        %2889 = vrot.lane.b32.xlu0 %v2878, 112
        %v2890 = vpop.permute.xlu0 %2889
        %2891 = vrot.lane.b32.xlu0 %v2880, 112
        %v2892 = vpop.permute.xlu0 %2891
        %v2897 = vsel %vm519, %v2886, 0.0
        %2898 = vadd.xlane.f32.xlu0 %v2897
        %v2899 = vpop.xlane.xlu0 %2898
        %v2900 = vsel %vm519, %v2888, 0.0
        %2901 = vadd.xlane.f32.xlu0 %v2900
        %v2902 = vpop.xlane.xlu0 %2901
        %v2903 = vsel %vm519, %v2890, 0.0
        %2904 = vadd.xlane.f32.xlu0 %v2903
        %v2905 = vpop.xlane.xlu0 %2904
        %v2906 = vsel %vm519, %v2892, 0.0
        %2907 = vadd.xlane.f32.xlu0 %v2906
        %v2908 = vpop.xlane.xlu0 %2907
        %v2909 = vrcp.pop %v2899
        %v2910 = vmul.f32 %v2874, %v2909
        %v2911 = vrcp.pop %v2902
        %v2912 = vmul.f32 %v2876, %v2911
        %v2913 = vrcp.pop %v2905
        %v2914 = vmul.f32 %v2878, %v2913
        %v2915 = vrcp.pop %v2908
        %v2916 = vmul.f32 %v2880, %v2915
        %2918 = vset.pattern.permute.xlu0 16
        %2919 = vperm.xlu0 %2918, %v2910
        %v2920 = vpop.permute.xlu0 %2919
        %2923 = vset.pattern.permute.xlu0 16
        %2924 = vperm.xlu0 %2923, %v2912
        %v2925 = vpop.permute.xlu0 %2924
        %2928 = vset.pattern.permute.xlu0 16
        %2929 = vperm.xlu0 %2928, %v2914
        %v2930 = vpop.permute.xlu0 %2929
        %2933 = vset.pattern.permute.xlu0 16
        %2934 = vperm.xlu0 %2933, %v2916
        %v2935 = vpop.permute.xlu0 %2934
        %v2937 = vmul.f32 %v2920, %v247
        %v2938 = vmul.f32 %v2925, %v249
        %v2939 = vmul.f32 %v2930, %v251
        %v2940 = vmul.f32 %v2935, %v253
        %2941 = vset.pattern.permute.xlu0 17
        %2942 = vperm.xlu0 %2941, %v2910
        %v2943 = vpop.permute.xlu0 %2942
        %2945 = vset.pattern.permute.xlu0 17
        %2946 = vperm.xlu0 %2945, %v2912
        %v2947 = vpop.permute.xlu0 %2946
        %2949 = vset.pattern.permute.xlu0 17
        %2950 = vperm.xlu0 %2949, %v2914
        %v2951 = vpop.permute.xlu0 %2950
        %2953 = vset.pattern.permute.xlu0 17
        %2954 = vperm.xlu0 %2953, %v2916
        %v2955 = vpop.permute.xlu0 %2954
        %v2957 = vmul.f32 %v2943, %v247
        %v2958 = vmul.f32 %v2947, %v249
        %v2959 = vmul.f32 %v2951, %v251
        %v2960 = vmul.f32 %v2955, %v253
        %2965 = vrot.lane.b32.xlu0 %v2957, 112
        %v2966 = vpop.permute.xlu0 %2965
        %2967 = vrot.lane.b32.xlu0 %v2958, 112
        %v2968 = vpop.permute.xlu0 %2967
        %2969 = vrot.lane.b32.xlu0 %v2959, 112
        %v2970 = vpop.permute.xlu0 %2969
        %2971 = vrot.lane.b32.xlu0 %v2960, 112
        %v2972 = vpop.permute.xlu0 %2971
        %v2977 = vadd.f32 %v2937, %v2966
        %v2978 = vadd.f32 %v2938, %v2968
        %v2979 = vadd.f32 %v2939, %v2970
        %v2980 = vadd.f32 %v2940, %v2972
        %2981 = vset.pattern.permute.xlu0 18
        %2982 = vperm.xlu0 %2981, %v2910
        %v2983 = vpop.permute.xlu0 %2982
        %2985 = vset.pattern.permute.xlu0 18
        %2986 = vperm.xlu0 %2985, %v2912
        %v2987 = vpop.permute.xlu0 %2986
        %2989 = vset.pattern.permute.xlu0 18
        %2990 = vperm.xlu0 %2989, %v2914
        %v2991 = vpop.permute.xlu0 %2990
        %2993 = vset.pattern.permute.xlu0 18
        %2994 = vperm.xlu0 %2993, %v2916
        %v2995 = vpop.permute.xlu0 %2994
        %v2997 = vmul.f32 %v2983, %v247
        %v2998 = vmul.f32 %v2987, %v249
        %v2999 = vmul.f32 %v2991, %v251
        %v3000 = vmul.f32 %v2995, %v253
        %3005 = vrot.lane.b32.xlu0 %v2997, 96
        %v3006 = vpop.permute.xlu0 %3005
        %3007 = vrot.lane.b32.xlu0 %v2998, 96
        %v3008 = vpop.permute.xlu0 %3007
        %3009 = vrot.lane.b32.xlu0 %v2999, 96
        %v3010 = vpop.permute.xlu0 %3009
        %3011 = vrot.lane.b32.xlu0 %v3000, 96
        %v3012 = vpop.permute.xlu0 %3011
        %v3017 = vadd.f32 %v2977, %v3006
        %v3018 = vadd.f32 %v2978, %v3008
        %v3019 = vadd.f32 %v2979, %v3010
        %v3020 = vadd.f32 %v2980, %v3012
        %3021 = vset.pattern.permute.xlu0 19
        %3022 = vperm.xlu0 %3021, %v2910
        %v3023 = vpop.permute.xlu0 %3022
        %3025 = vset.pattern.permute.xlu0 19
        %3026 = vperm.xlu0 %3025, %v2912
        %v3027 = vpop.permute.xlu0 %3026
        %3029 = vset.pattern.permute.xlu0 19
        %3030 = vperm.xlu0 %3029, %v2914
        %v3031 = vpop.permute.xlu0 %3030
        %3033 = vset.pattern.permute.xlu0 19
        %3034 = vperm.xlu0 %3033, %v2916
        %v3035 = vpop.permute.xlu0 %3034
        %v3037 = vmul.f32 %v3023, %v247
        %v3038 = vmul.f32 %v3027, %v249
        %v3039 = vmul.f32 %v3031, %v251
        %v3040 = vmul.f32 %v3035, %v253
        %3045 = vrot.lane.b32.xlu0 %v3037, 80
        %v3046 = vpop.permute.xlu0 %3045
        %3047 = vrot.lane.b32.xlu0 %v3038, 80
        %v3048 = vpop.permute.xlu0 %3047
        %3049 = vrot.lane.b32.xlu0 %v3039, 80
        %v3050 = vpop.permute.xlu0 %3049
        %3051 = vrot.lane.b32.xlu0 %v3040, 80
        %v3052 = vpop.permute.xlu0 %3051
        %v3057 = vadd.f32 %v3017, %v3046
        %v3058 = vadd.f32 %v3018, %v3048
        %v3059 = vadd.f32 %v3019, %v3050
        %v3060 = vadd.f32 %v3020, %v3052
        %3061 = vset.pattern.permute.xlu0 20
        %3062 = vperm.xlu0 %3061, %v2910
        %v3063 = vpop.permute.xlu0 %3062
        %3065 = vset.pattern.permute.xlu0 20
        %3066 = vperm.xlu0 %3065, %v2912
        %v3067 = vpop.permute.xlu0 %3066
        %3069 = vset.pattern.permute.xlu0 20
        %3070 = vperm.xlu0 %3069, %v2914
        %v3071 = vpop.permute.xlu0 %3070
        %3073 = vset.pattern.permute.xlu0 20
        %3074 = vperm.xlu0 %3073, %v2916
        %v3075 = vpop.permute.xlu0 %3074
        %v3077 = vmul.f32 %v3063, %v247
        %v3078 = vmul.f32 %v3067, %v249
        %v3079 = vmul.f32 %v3071, %v251
        %v3080 = vmul.f32 %v3075, %v253
        %3085 = vrot.lane.b32.xlu0 %v3077, 64
        %v3086 = vpop.permute.xlu0 %3085
        %3087 = vrot.lane.b32.xlu0 %v3078, 64
        %v3088 = vpop.permute.xlu0 %3087
        %3089 = vrot.lane.b32.xlu0 %v3079, 64
        %v3090 = vpop.permute.xlu0 %3089
        %3091 = vrot.lane.b32.xlu0 %v3080, 64
        %v3092 = vpop.permute.xlu0 %3091
        %v3097 = vadd.f32 %v3057, %v3086
        %v3098 = vadd.f32 %v3058, %v3088
        %v3099 = vadd.f32 %v3059, %v3090
        %v3100 = vadd.f32 %v3060, %v3092
        %3101 = vset.pattern.permute.xlu0 21
        %3102 = vperm.xlu0 %3101, %v2910
        %v3103 = vpop.permute.xlu0 %3102
        %3105 = vset.pattern.permute.xlu0 21
        %3106 = vperm.xlu0 %3105, %v2912
        %v3107 = vpop.permute.xlu0 %3106
        %3109 = vset.pattern.permute.xlu0 21
        %3110 = vperm.xlu0 %3109, %v2914
        %v3111 = vpop.permute.xlu0 %3110
        %3113 = vset.pattern.permute.xlu0 21
        %3114 = vperm.xlu0 %3113, %v2916
        %v3115 = vpop.permute.xlu0 %3114
        %v3117 = vmul.f32 %v3103, %v247
        %v3118 = vmul.f32 %v3107, %v249
        %v3119 = vmul.f32 %v3111, %v251
        %v3120 = vmul.f32 %v3115, %v253
        %3125 = vrot.lane.b32.xlu0 %v3117, 48
        %v3126 = vpop.permute.xlu0 %3125
        %3127 = vrot.lane.b32.xlu0 %v3118, 48
        %v3128 = vpop.permute.xlu0 %3127
        %3129 = vrot.lane.b32.xlu0 %v3119, 48
        %v3130 = vpop.permute.xlu0 %3129
        %3131 = vrot.lane.b32.xlu0 %v3120, 48
        %v3132 = vpop.permute.xlu0 %3131
        %v3137 = vadd.f32 %v3097, %v3126
        %v3138 = vadd.f32 %v3098, %v3128
        %v3139 = vadd.f32 %v3099, %v3130
        %v3140 = vadd.f32 %v3100, %v3132
        %3141 = vset.pattern.permute.xlu0 22
        %3142 = vperm.xlu0 %3141, %v2910
        %v3143 = vpop.permute.xlu0 %3142
        %3145 = vset.pattern.permute.xlu0 22
        %3146 = vperm.xlu0 %3145, %v2912
        %v3147 = vpop.permute.xlu0 %3146
        %3149 = vset.pattern.permute.xlu0 22
        %3150 = vperm.xlu0 %3149, %v2914
        %v3151 = vpop.permute.xlu0 %3150
        %3153 = vset.pattern.permute.xlu0 22
        %3154 = vperm.xlu0 %3153, %v2916
        %v3155 = vpop.permute.xlu0 %3154
        %v3157 = vmul.f32 %v3143, %v247
        %v3158 = vmul.f32 %v3147, %v249
        %v3159 = vmul.f32 %v3151, %v251
        %v3160 = vmul.f32 %v3155, %v253
        %3165 = vrot.lane.b32.xlu0 %v3157, 32
        %v3166 = vpop.permute.xlu0 %3165
        %3167 = vrot.lane.b32.xlu0 %v3158, 32
        %v3168 = vpop.permute.xlu0 %3167
        %3169 = vrot.lane.b32.xlu0 %v3159, 32
        %v3170 = vpop.permute.xlu0 %3169
        %3171 = vrot.lane.b32.xlu0 %v3160, 32
        %v3172 = vpop.permute.xlu0 %3171
        %v3177 = vadd.f32 %v3137, %v3166
        %v3178 = vadd.f32 %v3138, %v3168
        %v3179 = vadd.f32 %v3139, %v3170
        %v3180 = vadd.f32 %v3140, %v3172
        %3181 = vset.pattern.permute.xlu0 23
        %3182 = vperm.xlu0 %3181, %v2910
        %v3183 = vpop.permute.xlu0 %3182
        %3185 = vset.pattern.permute.xlu0 23
        %3186 = vperm.xlu0 %3185, %v2912
        %v3187 = vpop.permute.xlu0 %3186
        %3189 = vset.pattern.permute.xlu0 23
        %3190 = vperm.xlu0 %3189, %v2914
        %v3191 = vpop.permute.xlu0 %3190
        %3193 = vset.pattern.permute.xlu0 23
        %3194 = vperm.xlu0 %3193, %v2916
        %v3195 = vpop.permute.xlu0 %3194
        %v3197 = vmul.f32 %v3183, %v247
        %v3198 = vmul.f32 %v3187, %v249
        %v3199 = vmul.f32 %v3191, %v251
        %v3200 = vmul.f32 %v3195, %v253
        %3205 = vrot.lane.b32.xlu0 %v3197, 16
        %v3206 = vpop.permute.xlu0 %3205
        %3207 = vrot.lane.b32.xlu0 %v3198, 16
        %v3208 = vpop.permute.xlu0 %3207
        %3209 = vrot.lane.b32.xlu0 %v3199, 16
        %v3210 = vpop.permute.xlu0 %3209
        %3211 = vrot.lane.b32.xlu0 %v3200, 16
        %v3212 = vpop.permute.xlu0 %3211
        %v3217 = vadd.f32 %v3177, %v3206
        %v3218 = vadd.f32 %v3178, %v3208
        %v3219 = vadd.f32 %v3179, %v3210
        %v3220 = vadd.f32 %v3180, %v3212
        %v3221 = vsel %vm1598, %v2127, -inf
        %3222 = vmax.xlane.f32.xlu0 %v3221
        %v3223 = vpop.xlane.xlu0 %3222
        %v3224 = vsel %vm1598, %v2132, -inf
        %3225 = vmax.xlane.f32.xlu0 %v3224
        %v3226 = vpop.xlane.xlu0 %3225
        %v3227 = vsel %vm1598, %v2137, -inf
        %3228 = vmax.xlane.f32.xlu0 %v3227
        %v3229 = vpop.xlane.xlu0 %3228
        %v3230 = vsel %vm1598, %v2142, -inf
        %3231 = vmax.xlane.f32.xlu0 %v3230
        %v3232 = vpop.xlane.xlu0 %3231
        %v3233 = vsub.f32 %v2127, %v3223
        %v3234 = vsub.f32 %v2132, %v3226
        %v3235 = vsub.f32 %v2137, %v3229
        %v3236 = vsub.f32 %v2142, %v3232
        %v3237 = vmul.f32 %v3233, 1.442695
        %v3238 = vpow.pop %v3237
        %v3239 = vmul.f32 %v3234, 1.442695
        %v3240 = vpow.pop %v3239
        %v3241 = vmul.f32 %v3235, 1.442695
        %v3242 = vpow.pop %v3241
        %v3243 = vmul.f32 %v3236, 1.442695
        %v3244 = vpow.pop %v3243
        %3249 = vrot.lane.b32.xlu0 %v3238, 104
        %v3250 = vpop.permute.xlu0 %3249
        %3251 = vrot.lane.b32.xlu0 %v3240, 104
        %v3252 = vpop.permute.xlu0 %3251
        %3253 = vrot.lane.b32.xlu0 %v3242, 104
        %v3254 = vpop.permute.xlu0 %3253
        %3255 = vrot.lane.b32.xlu0 %v3244, 104
        %v3256 = vpop.permute.xlu0 %3255
        %v3261 = vsel %vm519, %v3250, 0.0
        %3262 = vadd.xlane.f32.xlu0 %v3261
        %v3263 = vpop.xlane.xlu0 %3262
        %v3264 = vsel %vm519, %v3252, 0.0
        %3265 = vadd.xlane.f32.xlu0 %v3264
        %v3266 = vpop.xlane.xlu0 %3265
        %v3267 = vsel %vm519, %v3254, 0.0
        %3268 = vadd.xlane.f32.xlu0 %v3267
        %v3269 = vpop.xlane.xlu0 %3268
        %v3270 = vsel %vm519, %v3256, 0.0
        %3271 = vadd.xlane.f32.xlu0 %v3270
        %v3272 = vpop.xlane.xlu0 %3271
        %v3273 = vrcp.pop %v3263
        %v3274 = vmul.f32 %v3238, %v3273
        %v3275 = vrcp.pop %v3266
        %v3276 = vmul.f32 %v3240, %v3275
        %v3277 = vrcp.pop %v3269
        %v3278 = vmul.f32 %v3242, %v3277
        %v3279 = vrcp.pop %v3272
        %v3280 = vmul.f32 %v3244, %v3279
        %3282 = vset.pattern.permute.xlu0 24
        %3283 = vperm.xlu0 %3282, %v3274
        %v3284 = vpop.permute.xlu0 %3283
        %3287 = vset.pattern.permute.xlu0 24
        %3288 = vperm.xlu0 %3287, %v3276
        %v3289 = vpop.permute.xlu0 %3288
        %3292 = vset.pattern.permute.xlu0 24
        %3293 = vperm.xlu0 %3292, %v3278
        %v3294 = vpop.permute.xlu0 %3293
        %3297 = vset.pattern.permute.xlu0 24
        %3298 = vperm.xlu0 %3297, %v3280
        %v3299 = vpop.permute.xlu0 %3298
        %v3301 = vmul.f32 %v3284, %v247
        %v3302 = vmul.f32 %v3289, %v249
        %v3303 = vmul.f32 %v3294, %v251
        %v3304 = vmul.f32 %v3299, %v253
        %3305 = vset.pattern.permute.xlu0 25
        %3306 = vperm.xlu0 %3305, %v3274
        %v3307 = vpop.permute.xlu0 %3306
        %3309 = vset.pattern.permute.xlu0 25
        %3310 = vperm.xlu0 %3309, %v3276
        %v3311 = vpop.permute.xlu0 %3310
        %3313 = vset.pattern.permute.xlu0 25
        %3314 = vperm.xlu0 %3313, %v3278
        %v3315 = vpop.permute.xlu0 %3314
        %3317 = vset.pattern.permute.xlu0 25
        %3318 = vperm.xlu0 %3317, %v3280
        %v3319 = vpop.permute.xlu0 %3318
        %v3321 = vmul.f32 %v3307, %v247
        %v3322 = vmul.f32 %v3311, %v249
        %v3323 = vmul.f32 %v3315, %v251
        %v3324 = vmul.f32 %v3319, %v253
        %3329 = vrot.lane.b32.xlu0 %v3321, 112
        %v3330 = vpop.permute.xlu0 %3329
        %3331 = vrot.lane.b32.xlu0 %v3322, 112
        %v3332 = vpop.permute.xlu0 %3331
        %3333 = vrot.lane.b32.xlu0 %v3323, 112
        %v3334 = vpop.permute.xlu0 %3333
        %3335 = vrot.lane.b32.xlu0 %v3324, 112
        %v3336 = vpop.permute.xlu0 %3335
        %v3341 = vadd.f32 %v3301, %v3330
        %v3342 = vadd.f32 %v3302, %v3332
        %v3343 = vadd.f32 %v3303, %v3334
        %v3344 = vadd.f32 %v3304, %v3336
        %3345 = vset.pattern.permute.xlu0 26
        %3346 = vperm.xlu0 %3345, %v3274
        %v3347 = vpop.permute.xlu0 %3346
        %3349 = vset.pattern.permute.xlu0 26
        %3350 = vperm.xlu0 %3349, %v3276
        %v3351 = vpop.permute.xlu0 %3350
        %3353 = vset.pattern.permute.xlu0 26
        %3354 = vperm.xlu0 %3353, %v3278
        %v3355 = vpop.permute.xlu0 %3354
        %3357 = vset.pattern.permute.xlu0 26
        %3358 = vperm.xlu0 %3357, %v3280
        %v3359 = vpop.permute.xlu0 %3358
        %v3361 = vmul.f32 %v3347, %v247
        %v3362 = vmul.f32 %v3351, %v249
        %v3363 = vmul.f32 %v3355, %v251
        %v3364 = vmul.f32 %v3359, %v253
        %3369 = vrot.lane.b32.xlu0 %v3361, 96
        %v3370 = vpop.permute.xlu0 %3369
        %3371 = vrot.lane.b32.xlu0 %v3362, 96
        %v3372 = vpop.permute.xlu0 %3371
        %3373 = vrot.lane.b32.xlu0 %v3363, 96
        %v3374 = vpop.permute.xlu0 %3373
        %3375 = vrot.lane.b32.xlu0 %v3364, 96
        %v3376 = vpop.permute.xlu0 %3375
        %v3381 = vadd.f32 %v3341, %v3370
        %v3382 = vadd.f32 %v3342, %v3372
        %v3383 = vadd.f32 %v3343, %v3374
        %v3384 = vadd.f32 %v3344, %v3376
        %3385 = vset.pattern.permute.xlu0 27
        %3386 = vperm.xlu0 %3385, %v3274
        %v3387 = vpop.permute.xlu0 %3386
        %3389 = vset.pattern.permute.xlu0 27
        %3390 = vperm.xlu0 %3389, %v3276
        %v3391 = vpop.permute.xlu0 %3390
        %3393 = vset.pattern.permute.xlu0 27
        %3394 = vperm.xlu0 %3393, %v3278
        %v3395 = vpop.permute.xlu0 %3394
        %3397 = vset.pattern.permute.xlu0 27
        %3398 = vperm.xlu0 %3397, %v3280
        %v3399 = vpop.permute.xlu0 %3398
        %v3401 = vmul.f32 %v3387, %v247
        %v3402 = vmul.f32 %v3391, %v249
        %v3403 = vmul.f32 %v3395, %v251
        %v3404 = vmul.f32 %v3399, %v253
        %3409 = vrot.lane.b32.xlu0 %v3401, 80
        %v3410 = vpop.permute.xlu0 %3409
        %3411 = vrot.lane.b32.xlu0 %v3402, 80
        %v3412 = vpop.permute.xlu0 %3411
        %3413 = vrot.lane.b32.xlu0 %v3403, 80
        %v3414 = vpop.permute.xlu0 %3413
        %3415 = vrot.lane.b32.xlu0 %v3404, 80
        %v3416 = vpop.permute.xlu0 %3415
        %v3421 = vadd.f32 %v3381, %v3410
        %v3422 = vadd.f32 %v3382, %v3412
        %v3423 = vadd.f32 %v3383, %v3414
        %v3424 = vadd.f32 %v3384, %v3416
        %3425 = vset.pattern.permute.xlu0 28
        %3426 = vperm.xlu0 %3425, %v3274
        %v3427 = vpop.permute.xlu0 %3426
        %3429 = vset.pattern.permute.xlu0 28
        %3430 = vperm.xlu0 %3429, %v3276
        %v3431 = vpop.permute.xlu0 %3430
        %3433 = vset.pattern.permute.xlu0 28
        %3434 = vperm.xlu0 %3433, %v3278
        %v3435 = vpop.permute.xlu0 %3434
        %3437 = vset.pattern.permute.xlu0 28
        %3438 = vperm.xlu0 %3437, %v3280
        %v3439 = vpop.permute.xlu0 %3438
        %v3441 = vmul.f32 %v3427, %v247
        %v3442 = vmul.f32 %v3431, %v249
        %v3443 = vmul.f32 %v3435, %v251
        %v3444 = vmul.f32 %v3439, %v253
        %3449 = vrot.lane.b32.xlu0 %v3441, 64
        %v3450 = vpop.permute.xlu0 %3449
        %3451 = vrot.lane.b32.xlu0 %v3442, 64
        %v3452 = vpop.permute.xlu0 %3451
        %3453 = vrot.lane.b32.xlu0 %v3443, 64
        %v3454 = vpop.permute.xlu0 %3453
        %3455 = vrot.lane.b32.xlu0 %v3444, 64
        %v3456 = vpop.permute.xlu0 %3455
        %v3461 = vadd.f32 %v3421, %v3450
        %v3462 = vadd.f32 %v3422, %v3452
        %v3463 = vadd.f32 %v3423, %v3454
        %v3464 = vadd.f32 %v3424, %v3456
        %3465 = vset.pattern.permute.xlu0 29
        %3466 = vperm.xlu0 %3465, %v3274
        %v3467 = vpop.permute.xlu0 %3466
        %3469 = vset.pattern.permute.xlu0 29
        %3470 = vperm.xlu0 %3469, %v3276
        %v3471 = vpop.permute.xlu0 %3470
        %3473 = vset.pattern.permute.xlu0 29
        %3474 = vperm.xlu0 %3473, %v3278
        %v3475 = vpop.permute.xlu0 %3474
        %3477 = vset.pattern.permute.xlu0 29
        %3478 = vperm.xlu0 %3477, %v3280
        %v3479 = vpop.permute.xlu0 %3478
        %v3481 = vmul.f32 %v3467, %v247
        %v3482 = vmul.f32 %v3471, %v249
        %v3483 = vmul.f32 %v3475, %v251
        %v3484 = vmul.f32 %v3479, %v253
        %3489 = vrot.lane.b32.xlu0 %v3481, 48
        %v3490 = vpop.permute.xlu0 %3489
        %3491 = vrot.lane.b32.xlu0 %v3482, 48
        %v3492 = vpop.permute.xlu0 %3491
        %3493 = vrot.lane.b32.xlu0 %v3483, 48
        %v3494 = vpop.permute.xlu0 %3493
        %3495 = vrot.lane.b32.xlu0 %v3484, 48
        %v3496 = vpop.permute.xlu0 %3495
        %v3501 = vadd.f32 %v3461, %v3490
        %v3502 = vadd.f32 %v3462, %v3492
        %v3503 = vadd.f32 %v3463, %v3494
        %v3504 = vadd.f32 %v3464, %v3496
        %3505 = vset.pattern.permute.xlu0 30
        %3506 = vperm.xlu0 %3505, %v3274
        %v3507 = vpop.permute.xlu0 %3506
        %3509 = vset.pattern.permute.xlu0 30
        %3510 = vperm.xlu0 %3509, %v3276
        %v3511 = vpop.permute.xlu0 %3510
        %3513 = vset.pattern.permute.xlu0 30
        %3514 = vperm.xlu0 %3513, %v3278
        %v3515 = vpop.permute.xlu0 %3514
        %3517 = vset.pattern.permute.xlu0 30
        %3518 = vperm.xlu0 %3517, %v3280
        %v3519 = vpop.permute.xlu0 %3518
        %v3521 = vmul.f32 %v3507, %v247
        %v3522 = vmul.f32 %v3511, %v249
        %v3523 = vmul.f32 %v3515, %v251
        %v3524 = vmul.f32 %v3519, %v253
        %3529 = vrot.lane.b32.xlu0 %v3521, 32
        %v3530 = vpop.permute.xlu0 %3529
        %3531 = vrot.lane.b32.xlu0 %v3522, 32
        %v3532 = vpop.permute.xlu0 %3531
        %3533 = vrot.lane.b32.xlu0 %v3523, 32
        %v3534 = vpop.permute.xlu0 %3533
        %3535 = vrot.lane.b32.xlu0 %v3524, 32
        %v3536 = vpop.permute.xlu0 %3535
        %v3541 = vadd.f32 %v3501, %v3530
        %v3542 = vadd.f32 %v3502, %v3532
        %v3543 = vadd.f32 %v3503, %v3534
        %v3544 = vadd.f32 %v3504, %v3536
        %3545 = vset.pattern.permute.xlu0 31
        %3546 = vperm.xlu0 %3545, %v3274
        %v3547 = vpop.permute.xlu0 %3546
        %3549 = vset.pattern.permute.xlu0 31
        %3550 = vperm.xlu0 %3549, %v3276
        %v3551 = vpop.permute.xlu0 %3550
        %3553 = vset.pattern.permute.xlu0 31
        %3554 = vperm.xlu0 %3553, %v3278
        %v3555 = vpop.permute.xlu0 %3554
        %3557 = vset.pattern.permute.xlu0 31
        %3558 = vperm.xlu0 %3557, %v3280
        %v3559 = vpop.permute.xlu0 %3558
        %v3561 = vmul.f32 %v3547, %v247
        %v3562 = vmul.f32 %v3551, %v249
        %v3563 = vmul.f32 %v3555, %v251
        %v3564 = vmul.f32 %v3559, %v253
        %3569 = vrot.lane.b32.xlu0 %v3561, 16
        %v3570 = vpop.permute.xlu0 %3569
        %3571 = vrot.lane.b32.xlu0 %v3562, 16
        %v3572 = vpop.permute.xlu0 %3571
        %3573 = vrot.lane.b32.xlu0 %v3563, 16
        %v3574 = vpop.permute.xlu0 %3573
        %3575 = vrot.lane.b32.xlu0 %v3564, 16
        %v3576 = vpop.permute.xlu0 %3575
        %v3581 = vadd.f32 %v3541, %v3570
        %v3582 = vadd.f32 %v3542, %v3572
        %v3583 = vadd.f32 %v3543, %v3574
        %v3584 = vadd.f32 %v3544, %v3576
        %3589 = vrot.lane.b32.xlu0 %v1229, 16
        %v3590 = vpop.permute.xlu0 %3589
        %3591 = vrot.lane.b32.xlu0 %v1230, 16
        %v3592 = vpop.permute.xlu0 %3591
        %3593 = vrot.lane.b32.xlu0 %v1231, 16
        %v3594 = vpop.permute.xlu0 %3593
        %3595 = vrot.lane.b32.xlu0 %v1232, 16
        %v3596 = vpop.permute.xlu0 %3595
        %3605 = vrot.lane.b32.xlu0 %v1594, 32
        %v3606 = vpop.permute.xlu0 %3605
        %3607 = vrot.lane.b32.xlu0 %v1595, 32
        %v3608 = vpop.permute.xlu0 %3607
        %3609 = vrot.lane.b32.xlu0 %v1596, 32
        %v3610 = vpop.permute.xlu0 %3609
        %3611 = vrot.lane.b32.xlu0 %v1597, 32
        %v3612 = vpop.permute.xlu0 %3611
        %3621 = vrot.lane.b32.xlu0 %v1959, 48
        %v3622 = vpop.permute.xlu0 %3621
        %3623 = vrot.lane.b32.xlu0 %v1960, 48
        %v3624 = vpop.permute.xlu0 %3623
        %3625 = vrot.lane.b32.xlu0 %v1961, 48
        %v3626 = vpop.permute.xlu0 %3625
        %3627 = vrot.lane.b32.xlu0 %v1962, 48
        %v3628 = vpop.permute.xlu0 %3627
        %3637 = vrot.lane.b32.xlu0 %v2489, 64
        %v3638 = vpop.permute.xlu0 %3637
        %3639 = vrot.lane.b32.xlu0 %v2490, 64
        %v3640 = vpop.permute.xlu0 %3639
        %3641 = vrot.lane.b32.xlu0 %v2491, 64
        %v3642 = vpop.permute.xlu0 %3641
        %3643 = vrot.lane.b32.xlu0 %v2492, 64
        %v3644 = vpop.permute.xlu0 %3643
        %3653 = vrot.lane.b32.xlu0 %v2853, 80
        %v3654 = vpop.permute.xlu0 %3653
        %3655 = vrot.lane.b32.xlu0 %v2854, 80
        %v3656 = vpop.permute.xlu0 %3655
        %3657 = vrot.lane.b32.xlu0 %v2855, 80
        %v3658 = vpop.permute.xlu0 %3657
        %3659 = vrot.lane.b32.xlu0 %v2856, 80
        %v3660 = vpop.permute.xlu0 %3659
        %3669 = vrot.lane.b32.xlu0 %v3217, 96
        %v3670 = vpop.permute.xlu0 %3669
        %3671 = vrot.lane.b32.xlu0 %v3218, 96
        %v3672 = vpop.permute.xlu0 %3671
        %3673 = vrot.lane.b32.xlu0 %v3219, 96
        %v3674 = vpop.permute.xlu0 %3673
        %3675 = vrot.lane.b32.xlu0 %v3220, 96
        %v3676 = vpop.permute.xlu0 %3675
        %3685 = vrot.lane.b32.xlu0 %v3581, 112
        %v3686 = vpop.permute.xlu0 %3685
        %3687 = vrot.lane.b32.xlu0 %v3582, 112
        %v3688 = vpop.permute.xlu0 %3687
        %3689 = vrot.lane.b32.xlu0 %v3583, 112
        %v3690 = vpop.permute.xlu0 %3689
        %3691 = vrot.lane.b32.xlu0 %v3584, 112
        %v3692 = vpop.permute.xlu0 %3691
        %vm3697 = vcmask 130048
        %v3698 = vsel %vm3697, %v864, %v3590
        %v3699 = vsel %vm3697, %v865, %v3592
        %v3700 = vsel %vm3697, %v866, %v3594
        %v3701 = vsel %vm3697, %v867, %v3596
        %vm3702 = vcmask 261120
        %v3703 = vsel %vm3702, %v3698, %v3606
        %v3704 = vsel %vm3702, %v3699, %v3608
        %v3705 = vsel %vm3702, %v3700, %v3610
        %v3706 = vsel %vm3702, %v3701, %v3612
        %vm3707 = vcmask 392192
        %v3708 = vsel %vm3707, %v3703, %v3622
        %v3709 = vsel %vm3707, %v3704, %v3624
        %v3710 = vsel %vm3707, %v3705, %v3626
        %v3711 = vsel %vm3707, %v3706, %v3628
        %vm3712 = vcmask 523264
        %v3713 = vsel %vm3712, %v3708, %v3638
        %v3714 = vsel %vm3712, %v3709, %v3640
        %v3715 = vsel %vm3712, %v3710, %v3642
        %v3716 = vsel %vm3712, %v3711, %v3644
        %vm3717 = vcmask 654336
        %v3718 = vsel %vm3717, %v3713, %v3654
        %v3719 = vsel %vm3717, %v3714, %v3656
        %v3720 = vsel %vm3717, %v3715, %v3658
        %v3721 = vsel %vm3717, %v3716, %v3660
        %vm3722 = vcmask 785408
        %v3723 = vsel %vm3722, %v3718, %v3670
        %v3724 = vsel %vm3722, %v3719, %v3672
        %v3725 = vsel %vm3722, %v3720, %v3674
        %v3726 = vsel %vm3722, %v3721, %v3676
        %vm3727 = vcmask 916480
        %v3728 = vsel %vm3727, %v3723, %v3686
        %v3729 = vsel %vm3727, %v3724, %v3688
        %v3730 = vsel %vm3727, %v3725, %v3690
        %v3731 = vsel %vm3727, %v3726, %v3692
        %3732 = vst [vmem:[%s243] sm:$0xff] %v3728
        %3733 = vst [vmem:[%s243 + $0x8] sm:$0xff] %v3729
        %3734 = vst [vmem:[%s243 + $0x10] sm:$0xff] %v3730
        %3735 = vst [vmem:[%s243 + $0x18] sm:$0xff] %v3731
        %s3736 = sand.u32 %s140, 1
        %s3737 = scalar_lea.sflag [#allocation4], %s3736
        %s3738 = sand.u32 %s140, 1
        %s3739 = smul.addr %s3738, 32
        %s3740 = scalar_lea.vmem [#allocation5], %s3739
        // Predicated region
        $region45: #{tpu_custom_call.1} parent=39 // pred_check
          %p3741 = pneg %p150
        $region46: #{tpu_custom_call.1} parent=39 // pred_check_branch
          %3743 = sbr.rel (%p3741) target = $region48
        $region47: #{tpu_custom_call.1} parent=39 // pred_region
          %s3744 = smul.u32 4, %s22
          %s3746 = ssub.s32 512, 512
          %3747 = vsyncadd %s3737, %s3746
          %s3748 = smul.addr %s3744, 128
          %s3749 = scalar_lea.hbm %s5, %s3748
          %s3750 = sshll.u32 %s3740, 4
          %s3751 = int_to_ptr.vmem [resolvable:$true] %s3750
          %3756 = dma.vmem_to_hbm [thread:$0]  %s3751, 512, %s3749, %s3737, 128, 128, 8
        $region48: #{tpu_custom_call.1} parent=39 // pred_fallthru
          _
      $region40: #{tpu_custom_call.1} parent=5 // pred_fallthru
        _
      %p3757 = scmp.le.s32.totalorder 2, %s17
      // Predicated region
      $region49: #{tpu_custom_call.1} parent=5 // pred_check
        %p3758 = pneg %p3757
      $region50: #{tpu_custom_call.1} parent=5 // pred_check_branch
        %3760 = sbr.rel (%p3758) target = $region52
      $region51: #{tpu_custom_call.1} parent=5 // pred_region
        %s3761 = ssub.s32 %s17, 2
        // Predicated region
        $region53: #{tpu_custom_call.1} parent=51 // pred_check
          %p3762 = pneg %p156
        $region54: #{tpu_custom_call.1} parent=51 // pred_check_branch
          %3764 = sbr.rel (%p3762) target = $region56
        $region55: #{tpu_custom_call.1} parent=51 // pred_region
          %s3765 = sand.u32 %s141, 1
          %s3766 = scalar_lea.sflag [#allocation4], %s3765
          %s3767 = sand.u32 %s141, 1
          %s3768 = smul.addr %s3767, 32
          %s3769 = scalar_lea.vmem [#allocation5], %s3768
          %3770 = dma.done %s3766, 512
        $region56: #{tpu_custom_call.1} parent=51 // pred_fallthru
          _
      $region52: #{tpu_custom_call.1} parent=5 // pred_fallthru
        _
    $region6: #{tpu_custom_call.1} parent=1 // loop_footer
      %s21 = sadd.s32 1, %s17
    $region7: #{tpu_custom_call.1} parent=1 // loop_footer_branch
      %16 = sbr.rel target = $region3
    $region8: #{tpu_custom_call.1} parent=1 // loop_exit
      _
    %3771 = vsyncpa [#allocation3], 1
    %s3772 = scalar_lea.sflag [#allocation3], 1
    %3773 = vsyncpa %s3772, 1
    %3774 = vsyncpa [#allocation4], 1
    %s3775 = scalar_lea.sflag [#allocation4], 1
    %3776 = vsyncpa %s3775, 1

</llo_original>
